<compile_context>
chip_gen: v7x
topology: tpu7x:2x2x1
jax: 0.10.0
libtpu: 0.0.40
codegen_flags: <defaults>
</compile_context>

<pallas_src>
import functools

import jax
import jax.numpy as jnp
from jax import lax
from jax.experimental import pallas as pl
from jax.experimental.pallas import tpu as pltpu


# ----------------------------------------------------------------------------
# Pallas kernels
# ----------------------------------------------------------------------------
def _conv1x1_relu_kernel(x_ref, w_ref, b_ref, o_ref):
    # x_ref: (1, Cin, T)  w_ref: (Cout, Cin)  b_ref: (Cout, 1)  o_ref: (1, Cout, T)
    y = jnp.dot(w_ref[...], x_ref[0], preferred_element_type=jnp.float32)
    y = jnp.maximum(y + b_ref[...], 0.0)
    o_ref[...] = y[None].astype(o_ref.dtype)


def _dyn_grouped_conv_kernel(x_ref, w_ref, expand_ref, gmask_ref, scale_ref,
                             shift_ref, o_ref, *, H, W, pad, size):
    # x_ref     : (1, C, R)        channel-major padded activation,
    #                              R = (H + 2*pad + 1) * (W + 2*pad)
    # w_ref     : (1, k*k, C, cpg) compact per-sample grouped weights w[t, co, l]
    # expand_ref: (cpg, C)         expand[l, ci] = 1 if ci % cpg == l
    # gmask_ref : (C, C)           gmask[co, ci] = 1 if co, ci in the same group
    # scale_ref, shift_ref: (C, 1) folded eval-mode BatchNorm
    # o_ref     : (1, C, H*Wp)     output in padded-column space (junk cols >= W)
    C = o_ref.shape[1]
    cpg = w_ref.shape[3]
    Wp = W + 2 * pad
    HWp = H * Wp
    taps = size * size

    # Expand the compact grouped weights for all taps with ONE small matmul:
    #   w_all[t*C + co, ci] = w[t, co, ci % cpg]
    w_all = jnp.dot(w_ref[0].reshape(taps * C, cpg), expand_ref[...],
                    preferred_element_type=jnp.float32)       # (k*k*C, C)
    gmask = gmask_ref[...]                                     # (C, C)

    # Accumulator lives in vregs (~12 vregs at demo size).
    # TODO(synk): at production tile sizes move acc into a VMEM scratch ref.
    acc = jnp.zeros((C, HWp), dtype=jnp.float32)
    for t in range(taps):                        # static unrolled taps
        off = (t // size) * Wp + (t % size)
        wbdT = w_all[t * C:(t + 1) * C] * gmask             # (C, C) block-diag^T
        window = x_ref[0, :, off:off + HWp]                 # (C, HWp) shifted view
        acc = acc + jnp.dot(wbdT, window,
                            preferred_element_type=jnp.float32)

    # F.conv2d(bias=None) -> ReLU -> BatchNorm(eval) folded to scale/shift.
    y = jnp.maximum(acc, 0.0) * scale_ref[...] + shift_ref[...]
    o_ref[...] = y[None].astype(o_ref.dtype)


# ----------------------------------------------------------------------------
# Pallas wrappers
# ----------------------------------------------------------------------------
def _pick_spatial_tile(hw):
    for t in (1024, 512, 256, 128):
        if hw % t == 0:
            return t
    return hw                                    # single block == full dim


def _conv1x1_relu(x_cm, w, b):
    # x_cm: (N, Cin, HW) channel-major, w: (Cout, Cin), b: (Cout,)
    N, Cin, HW = x_cm.shape
    Cout = w.shape[0]
    T = _pick_spatial_tile(HW)
    return pl.pallas_call(
        _conv1x1_relu_kernel,
        out_shape=jax.ShapeDtypeStruct((N, Cout, HW), jnp.float32),
        grid_spec=pltpu.PrefetchScalarGridSpec(
            num_scalar_prefetch=0,
            grid=(N, HW // T),
            in_specs=[
                pl.BlockSpec((1, Cin, T), lambda n, j: (n, 0, j)),
                pl.BlockSpec((Cout, Cin), lambda n, j: (0, 0)),
                pl.BlockSpec((Cout, 1), lambda n, j: (0, 0)),
            ],
            out_specs=pl.BlockSpec((1, Cout, T), lambda n, j: (n, 0, j)),
        ),
        compiler_params=pltpu.CompilerParams(
            dimension_semantics=("parallel", "parallel"),
            vmem_limit_bytes=32 * 1024 * 1024),
    )(x_cm, w, b.reshape(Cout, 1))


def _dyn_grouped_conv(act_nchw, wk, scale, shift, *, groups, size):
    # act_nchw: (N, C, H, W), wk: (N, k*k, C, C//G), scale/shift: (C, 1)
    N, C, H, W = act_nchw.shape
    pad = size // 2
    Wp = W + 2 * pad
    HWp = H * Wp
    R = (H + 2 * pad + 1) * Wp          # +1 bottom row so every tap window fits
    cpg = C // groups

    # channel-major padded slab; the reshape is free (contiguous).
    xp = jnp.pad(act_nchw, ((0, 0), (0, 0), (pad, pad + 1), (pad, pad)))
    x_flat = xp.reshape(N, C, R)

    # small constant helpers used to expand the compact grouped weights
    ci = jnp.arange(C, dtype=jnp.int32)
    ll = jnp.arange(cpg, dtype=jnp.int32)
    expand = (ci[None, :] % cpg == ll[:, None]).astype(jnp.float32)      # (cpg, C)
    gmask = ((ci[:, None] // cpg) == (ci[None, :] // cpg)).astype(jnp.float32)

    kern = functools.partial(_dyn_grouped_conv_kernel,
                             H=H, W=W, pad=pad, size=size)
    out_full = pl.pallas_call(
        kern,
        out_shape=jax.ShapeDtypeStruct((N, C, HWp), jnp.float32),
        grid_spec=pltpu.PrefetchScalarGridSpec(
            num_scalar_prefetch=0,
            grid=(N,),
            in_specs=[
                pl.BlockSpec((1, C, R), lambda n: (n, 0, 0)),
                pl.BlockSpec((1, size * size, C, cpg), lambda n: (n, 0, 0, 0)),
                pl.BlockSpec((cpg, C), lambda n: (0, 0)),
                pl.BlockSpec((C, C), lambda n: (0, 0)),
                pl.BlockSpec((C, 1), lambda n: (0, 0)),
                pl.BlockSpec((C, 1), lambda n: (0, 0)),
            ],
            out_specs=pl.BlockSpec((1, C, HWp), lambda n: (n, 0, 0)),
        ),
        compiler_params=pltpu.CompilerParams(
            dimension_semantics=("parallel",),
            vmem_limit_bytes=32 * 1024 * 1024),
    )(x_flat, wk, expand, gmask, scale, shift)

    # drop the 2*pad junk columns per row; the result is already NCHW.
    return out_full.reshape(N, C, H, Wp)[:, :, :, :W]


# ----------------------------------------------------------------------------
# Plain-JAX glue (tiny weight-generating branch, NCHW like PyTorch)
# ----------------------------------------------------------------------------
def _conv2d_nchw(x, w, b, padding):
    out = lax.conv_general_dilated(
        x, w, window_strides=(1, 1),
        padding=[(padding, padding), (padding, padding)],
        dimension_numbers=("NCHW", "OIHW", "NCHW"),
        precision=lax.Precision.HIGHEST)
    return out + b[None, :, None, None]


def _adaptive_avg_pool(x, pool_size):
    # exact AdaptiveAvgPool2d when H, W are multiples of pool_size
    N, C, H, W = x.shape
    return x.reshape(N, C, pool_size, H // pool_size,
                     pool_size, W // pool_size).mean(axis=(3, 5))


# ----------------------------------------------------------------------------
# ACBlock forward
# ----------------------------------------------------------------------------
def ac_block_forward(x_nchw, params, *, in_channels, out_channels, reduction,
                     pool_size, groups, size):
    N, _, H, W = x_nchw.shape
    C = out_channels
    cpg = C // groups

    # ---- conv0 (1x1) + ReLU, channel-major Pallas matmul ---------------------
    if in_channels != out_channels:
        act_cm = _conv1x1_relu(x_nchw.reshape(N, in_channels, H * W),
                               params["conv0_w"][:, :, 0, 0], params["conv0_b"])
        act_nchw = act_cm.reshape(N, C, H, W)
    else:
        act_nchw = x_nchw

    # ---- weight-generating branch (tiny, plain JAX) --------------------------
    w = _adaptive_avg_pool(act_nchw, pool_size)
    w = _conv2d_nchw(w, params["conv1_w"], params["conv1_b"], padding=0)
    w = jnp.maximum(w, 0.0)
    k2 = 1 if pool_size == 1 else 3
    w = _conv2d_nchw(w, params["conv2_w"], params["conv2_b"], padding=k2 // 2)
    if pool_size == 1:
        w_per = w.reshape(N, C, cpg, size, size)
    else:
        wc = w.shape[1]
        w_per = jnp.transpose(w.reshape(N, wc, pool_size * pool_size),
                              (0, 2, 1)).reshape(N, C, cpg, size, size)
    # compact grouped weights for the kernel: wk[n, t, co, l] = w_per[n, co, l, t]
    wk = jnp.transpose(w_per.reshape(N, C, cpg, size * size), (0, 3, 1, 2))

    # ---- folded eval-mode BatchNorm (post-ReLU, cannot fold into conv) -------
    eps = 1e-5
    scale = params["bn_gamma"] / jnp.sqrt(params["bn_var"] + eps)
    shift = params["bn_beta"] - params["bn_mean"] * scale

    # ---- dynamic grouped conv + ReLU + BN, in Pallas --------------------------
    return _dyn_grouped_conv(act_nchw, wk, scale.reshape(C, 1),
                             shift.reshape(C, 1), groups=groups, size=size)


# ----------------------------------------------------------------------------
# Pure-JAX reference (for the in-script correctness check)
# ----------------------------------------------------------------------------
def ac_block_reference(x, params, *, in_channels, out_channels, reduction,
                       pool_size, groups, size):
    N, _, H, W = x.shape
    C = out_channels
    pad = size // 2
    if in_channels != out_channels:
        x = jnp.maximum(
            jnp.einsum("oc,nchw->nohw", params["conv0_w"][:, :, 0, 0], x,
                       precision=lax.Precision.HIGHEST)
            + params["conv0_b"][None, :, None, None], 0.0)
    w = _adaptive_avg_pool(x, pool_size)
    w = _conv2d_nchw(w, params["conv1_w"], params["conv1_b"], padding=0)
    w = jnp.maximum(w, 0.0)
    k2 = 1 if pool_size == 1 else 3
    w = _conv2d_nchw(w, params["conv2_w"], params["conv2_b"], padding=k2 // 2)
    if pool_size == 1:
        w_per = w.reshape(N, C, C // groups, size, size)
    else:
        wc = w.shape[1]
        w_per = jnp.transpose(w.reshape(N, wc, pool_size * pool_size),
                              (0, 2, 1)).reshape(N, C, C // groups, size, size)

    def per_sample(xi, wi):
        return lax.conv_general_dilated(
            xi[None], wi, (1, 1), [(pad, pad), (pad, pad)],
            dimension_numbers=("NCHW", "OIHW", "NCHW"),
            feature_group_count=groups,
            precision=lax.Precision.HIGHEST)[0]

    out = jnp.maximum(jax.vmap(per_sample)(x, w_per), 0.0)
    eps = 1e-5
    scale = params["bn_gamma"] / jnp.sqrt(params["bn_var"] + eps)
    shift = params["bn_beta"] - params["bn_mean"] * scale
    return out * scale[None, :, None, None] + shift[None, :, None, None]


# ----------------------------------------------------------------------------
# Deterministic parameter construction + demo run
# ----------------------------------------------------------------------------
def make_params(key, *, in_channels, out_channels, reduction, pool_size,
                groups, size):
    C = out_channels
    Cred = C // reduction
    weight_channel = (C ** 2 * size ** 2) // (groups * pool_size ** 2)
    k2 = 1 if pool_size == 1 else 3
    ks = jax.random.split(key, 10)
    return {
        "conv0_w": 0.2 * jax.random.normal(ks[0], (C, in_channels, 1, 1), jnp.float32),
        "conv0_b": 0.05 * jax.random.normal(ks[1], (C,), jnp.float32),
        "conv1_w": 0.2 * jax.random.normal(ks[2], (Cred, C, 1, 1), jnp.float32),
        "conv1_b": 0.05 * jax.random.normal(ks[3], (Cred,), jnp.float32),
        "conv2_w": 0.1 * jax.random.normal(ks[4], (weight_channel, Cred, k2, k2), jnp.float32),
        "conv2_b": 0.02 * jax.random.normal(ks[5], (weight_channel,), jnp.float32),
        "bn_gamma": 1.0 + 0.1 * jax.random.normal(ks[6], (C,), jnp.float32),
        "bn_beta": 0.1 * jax.random.normal(ks[7], (C,), jnp.float32),
        "bn_mean": 0.1 * jax.random.normal(ks[8], (C,), jnp.float32),
        "bn_var": 0.5 + jax.nn.softplus(jax.random.normal(ks[9], (C,), jnp.float32)),
    }


if __name__ == "__main__":
    # small config consistent with the module's integer constraints
    in_channels = 8
    out_channels = 32
    reduction = 4
    pool_size = 4
    groups = 4
    size = 3
    N, H, W = 2, 16, 16

    key = jax.random.PRNGKey(0)
    kx, kp = jax.random.split(key)
    x = jax.random.normal(kx, (N, in_channels, H, W), jnp.float32)   # NCHW input
    params = make_params(kp, in_channels=in_channels, out_channels=out_channels,
                         reduction=reduction, pool_size=pool_size,
                         groups=groups, size=size)

    kwargs = dict(in_channels=in_channels, out_channels=out_channels,
                  reduction=reduction, pool_size=pool_size, groups=groups,
                  size=size)
    fwd = jax.jit(functools.partial(ac_block_forward, **kwargs))

    out = fwd(x, params)
    jax.block_until_ready(out)
    assert out.shape == (N, out_channels, H, W)

    # correctness check vs a pure-JAX reference of the same forward pass
    ref = jax.jit(functools.partial(ac_block_reference, **kwargs))(x, params)
    jax.block_until_ready(ref)
    err = float(jnp.max(jnp.abs(out - ref)))
    assert err < 3e-2, f"max abs error vs reference: {err}"
    print("KERNEL_OK")
</pallas_src>

<mosaic_0001>
module attributes {stable_mosaic.version = 11 : i64} {
  func.func @_conv1x1_relu_kernel(%arg0: i32, %arg1: i32, %arg2: memref<1x8x256xf32, #tpu.memory_space<vmem>>, %arg3: memref<32x8xf32, #tpu.memory_space<vmem>>, %arg4: memref<32x1xf32, #tpu.memory_space<vmem>>, %arg5: memref<1x32x256xf32, #tpu.memory_space<vmem>>) attributes {dimension_semantics = [#tpu.dimension_semantics<parallel>, #tpu.dimension_semantics<parallel>], iteration_bounds = array<i64: 2, 1>, scalar_prefetch = 0 : i64, scratch_operands = 0 : i64, tpu.core_type = #tpu.core_type<tc>, window_params = [{transform_indices = @transform_0, window_bounds = array<i64: 1, 8, 256>}, {pipeline_mode = #tpu.pipeline_mode<synchronous>, transform_indices = @transform_1, window_bounds = array<i64: 32, 8>}, {pipeline_mode = #tpu.pipeline_mode<synchronous>, transform_indices = @transform_2, window_bounds = array<i64: 32, 1>}, {transform_indices = @transform_3, window_bounds = array<i64: 1, 32, 256>}]} {
    %c0 = arith.constant 0 : index
    %c0_0 = arith.constant 0 : index
    %0 = vector.load %arg3[%c0, %c0_0] : memref<32x8xf32, #tpu.memory_space<vmem>>, vector<32x8xf32>
    %c0_1 = arith.constant 0 : index
    %c0_2 = arith.constant 0 : index
    %c0_3 = arith.constant 0 : index
    %1 = vector.load %arg2[%c0_1, %c0_2, %c0_3] : memref<1x8x256xf32, #tpu.memory_space<vmem>>, vector<1x8x256xf32>
    %2 = vector.shape_cast %1 : vector<1x8x256xf32> to vector<8x256xf32>
    %cst = arith.constant dense<0.000000e+00> : vector<32x256xf32>
    %3 = tpu.matmul %0, %2, %cst {dimension_numbers = #tpu.dot_dimension_numbers<[1], [0], [0], [1], [0, 0, 1, 1], [], []>} : vector<32x8xf32>, vector<8x256xf32>, vector<32x256xf32> -> vector<32x256xf32>
    %c0_4 = arith.constant 0 : index
    %c0_5 = arith.constant 0 : index
    %4 = vector.load %arg4[%c0_4, %c0_5] : memref<32x1xf32, #tpu.memory_space<vmem>>, vector<32x1xf32>
    %5 = vector.broadcast %4 : vector<32x1xf32> to vector<32x256xf32>
    %6 = arith.addf %3, %5 : vector<32x256xf32>
    %cst_6 = arith.constant 0.000000e+00 : f32
    %7 = vector.broadcast %cst_6 : f32 to vector<32x256xf32>
    %8 = arith.maximumf %6, %7 : vector<32x256xf32>
    %9 = vector.shape_cast %8 : vector<32x256xf32> to vector<1x32x256xf32>
    %c0_7 = arith.constant 0 : index
    %c0_8 = arith.constant 0 : index
    %c0_9 = arith.constant 0 : index
    %10 = vector.load %arg5[%c0_7, %c0_8, %c0_9] : memref<1x32x256xf32, #tpu.memory_space<vmem>>, vector<1x32x256xf32>
    tpu.vector_store %arg5[%c0_7, %c0_8, %c0_9], %9 {strides = array<i32>} : memref<1x32x256xf32, #tpu.memory_space<vmem>>, vector<1x32x256xf32>,
    return
  }
  func.func @transform_0(%arg0: i32, %arg1: i32) -> (i32, i32, i32) {
    %c0_i32 = arith.constant 0 : i32
    %c0_i32_0 = arith.constant 0 : i32
    return %arg0, %c0_i32, %arg1 : i32, i32, i32
  }
  func.func @transform_1(%arg0: i32, %arg1: i32) -> (i32, i32) {
    %c0_i32 = arith.constant 0 : i32
    %c0_i32_0 = arith.constant 0 : i32
    %c0_i32_1 = arith.constant 0 : i32
    return %c0_i32, %c0_i32_0 : i32, i32
  }
  func.func @transform_2(%arg0: i32, %arg1: i32) -> (i32, i32) {
    %c0_i32 = arith.constant 0 : i32
    %c0_i32_0 = arith.constant 0 : i32
    %c0_i32_1 = arith.constant 0 : i32
    return %c0_i32, %c0_i32_0 : i32, i32
  }
  func.func @transform_3(%arg0: i32, %arg1: i32) -> (i32, i32, i32) {
    %c0_i32 = arith.constant 0 : i32
    %c0_i32_0 = arith.constant 0 : i32
    return %arg0, %c0_i32, %arg1 : i32, i32, i32
  }
}

module attributes {stable_mosaic.version = 11 : i64} {
  func.func @_dyn_grouped_conv_kernel(%arg0: i32, %arg1: memref<1x32x342xf32, #tpu.memory_space<vmem>>, %arg2: memref<1x9x32x8xf32, #tpu.memory_space<vmem>>, %arg3: memref<8x32xf32, #tpu.memory_space<vmem>>, %arg4: memref<32x32xf32, #tpu.memory_space<vmem>>, %arg5: memref<32x1xf32, #tpu.memory_space<vmem>>, %arg6: memref<32x1xf32, #tpu.memory_space<vmem>>, %arg7: memref<1x32x288xf32, #tpu.memory_space<vmem>>) attributes {dimension_semantics = [#tpu.dimension_semantics<parallel>], iteration_bounds = array<i64: 2>, scalar_prefetch = 0 : i64, scratch_operands = 0 : i64, tpu.core_type = #tpu.core_type<tc>, window_params = [{transform_indices = @transform_0, window_bounds = array<i64: 1, 32, 342>}, {transform_indices = @transform_1, window_bounds = array<i64: 1, 9, 32, 8>}, {pipeline_mode = #tpu.pipeline_mode<synchronous>, transform_indices = @transform_2, window_bounds = array<i64: 8, 32>}, {pipeline_mode = #tpu.pipeline_mode<synchronous>, transform_indices = @transform_3, window_bounds = array<i64: 32, 32>}, {pipeline_mode = #tpu.pipeline_mode<synchronous>, transform_indices = @transform_4, window_bounds = array<i64: 32, 1>}, {pipeline_mode = #tpu.pipeline_mode<synchronous>, transform_indices = @transform_5, window_bounds = array<i64: 32, 1>}, {transform_indices = @transform_6, window_bounds = array<i64: 1, 32, 288>}]} {
    %c0 = arith.constant 0 : index
    %c0_0 = arith.constant 0 : index
    %c0_1 = arith.constant 0 : index
    %c0_2 = arith.constant 0 : index
    %0 = vector.load %arg2[%c0, %c0_0, %c0_1, %c0_2] : memref<1x9x32x8xf32, #tpu.memory_space<vmem>>, vector<1x9x32x8xf32>
    %1 = vector.shape_cast %0 : vector<1x9x32x8xf32> to vector<9x32x8xf32>
    %2 = vector.shape_cast %1 : vector<9x32x8xf32> to vector<288x8xf32>
    %c0_3 = arith.constant 0 : index
    %c0_4 = arith.constant 0 : index
    %3 = vector.load %arg3[%c0_3, %c0_4] : memref<8x32xf32, #tpu.memory_space<vmem>>, vector<8x32xf32>
    %cst = arith.constant dense<0.000000e+00> : vector<288x32xf32>
    %4 = tpu.matmul %2, %3, %cst {dimension_numbers = #tpu.dot_dimension_numbers<[1], [0], [0], [1], [0, 0, 1, 1], [], []>} : vector<288x8xf32>, vector<8x32xf32>, vector<288x32xf32> -> vector<288x32xf32>
    %c0_5 = arith.constant 0 : index
    %c0_6 = arith.constant 0 : index
    %5 = vector.load %arg4[%c0_5, %c0_6] : memref<32x32xf32, #tpu.memory_space<vmem>>, vector<32x32xf32>
    %cst_7 = arith.constant 0.000000e+00 : f32
    %6 = vector.broadcast %cst_7 : f32 to vector<32x288xf32>
    %7 = vector.extract_strided_slice %4 {offsets = [0, 0], sizes = [32, 32], strides = [1, 1]} : vector<288x32xf32> to vector<32x32xf32>
    %8 = arith.mulf %7, %5 : vector<32x32xf32>
    %c0_8 = arith.constant 0 : index
    %c0_9 = arith.constant 0 : index
    %c0_10 = arith.constant 0 : index
    %9 = vector.load %arg1[%c0_8, %c0_9, %c0_10] : memref<1x32x342xf32, #tpu.memory_space<vmem>>, vector<1x32x288xf32>
    %10 = vector.shape_cast %9 : vector<1x32x288xf32> to vector<32x288xf32>
    %cst_11 = arith.constant dense<0.000000e+00> : vector<32x288xf32>
    %11 = tpu.matmul %8, %10, %cst_11 {dimension_numbers = #tpu.dot_dimension_numbers<[1], [0], [0], [1], [0, 0, 1, 1], [], []>} : vector<32x32xf32>, vector<32x288xf32>, vector<32x288xf32> -> vector<32x288xf32>
    %12 = arith.addf %6, %11 : vector<32x288xf32>
    %13 = vector.extract_strided_slice %4 {offsets = [32, 0], sizes = [32, 32], strides = [1, 1]} : vector<288x32xf32> to vector<32x32xf32>
    %14 = arith.mulf %13, %5 : vector<32x32xf32>
    %c0_12 = arith.constant 0 : index
    %c0_13 = arith.constant 0 : index
    %c1 = arith.constant 1 : index
    %15 = vector.load %arg1[%c0_12, %c0_13, %c1] : memref<1x32x342xf32, #tpu.memory_space<vmem>>, vector<1x32x288xf32>
    %16 = vector.shape_cast %15 : vector<1x32x288xf32> to vector<32x288xf32>
    %cst_14 = arith.constant dense<0.000000e+00> : vector<32x288xf32>
    %17 = tpu.matmul %14, %16, %cst_14 {dimension_numbers = #tpu.dot_dimension_numbers<[1], [0], [0], [1], [0, 0, 1, 1], [], []>} : vector<32x32xf32>, vector<32x288xf32>, vector<32x288xf32> -> vector<32x288xf32>
    %18 = arith.addf %12, %17 : vector<32x288xf32>
    %19 = vector.extract_strided_slice %4 {offsets = [64, 0], sizes = [32, 32], strides = [1, 1]} : vector<288x32xf32> to vector<32x32xf32>
    %20 = arith.mulf %19, %5 : vector<32x32xf32>
    %c0_15 = arith.constant 0 : index
    %c0_16 = arith.constant 0 : index
    %c2 = arith.constant 2 : index
    %21 = vector.load %arg1[%c0_15, %c0_16, %c2] : memref<1x32x342xf32, #tpu.memory_space<vmem>>, vector<1x32x288xf32>
    %22 = vector.shape_cast %21 : vector<1x32x288xf32> to vector<32x288xf32>
    %cst_17 = arith.constant dense<0.000000e+00> : vector<32x288xf32>
    %23 = tpu.matmul %20, %22, %cst_17 {dimension_numbers = #tpu.dot_dimension_numbers<[1], [0], [0], [1], [0, 0, 1, 1], [], []>} : vector<32x32xf32>, vector<32x288xf32>, vector<32x288xf32> -> vector<32x288xf32>
    %24 = arith.addf %18, %23 : vector<32x288xf32>
    %25 = vector.extract_strided_slice %4 {offsets = [96, 0], sizes = [32, 32], strides = [1, 1]} : vector<288x32xf32> to vector<32x32xf32>
    %26 = arith.mulf %25, %5 : vector<32x32xf32>
    %c0_18 = arith.constant 0 : index
    %c0_19 = arith.constant 0 : index
    %c18 = arith.constant 18 : index
    %27 = vector.load %arg1[%c0_18, %c0_19, %c18] : memref<1x32x342xf32, #tpu.memory_space<vmem>>, vector<1x32x288xf32>
    %28 = vector.shape_cast %27 : vector<1x32x288xf32> to vector<32x288xf32>
    %cst_20 = arith.constant dense<0.000000e+00> : vector<32x288xf32>
    %29 = tpu.matmul %26, %28, %cst_20 {dimension_numbers = #tpu.dot_dimension_numbers<[1], [0], [0], [1], [0, 0, 1, 1], [], []>} : vector<32x32xf32>, vector<32x288xf32>, vector<32x288xf32> -> vector<32x288xf32>
    %30 = arith.addf %24, %29 : vector<32x288xf32>
    %31 = vector.extract_strided_slice %4 {offsets = [128, 0], sizes = [32, 32], strides = [1, 1]} : vector<288x32xf32> to vector<32x32xf32>
    %32 = arith.mulf %31, %5 : vector<32x32xf32>
    %c0_21 = arith.constant 0 : index
    %c0_22 = arith.constant 0 : index
    %c19 = arith.constant 19 : index
    %33 = vector.load %arg1[%c0_21, %c0_22, %c19] : memref<1x32x342xf32, #tpu.memory_space<vmem>>, vector<1x32x288xf32>
    %34 = vector.shape_cast %33 : vector<1x32x288xf32> to vector<32x288xf32>
    %cst_23 = arith.constant dense<0.000000e+00> : vector<32x288xf32>
    %35 = tpu.matmul %32, %34, %cst_23 {dimension_numbers = #tpu.dot_dimension_numbers<[1], [0], [0], [1], [0, 0, 1, 1], [], []>} : vector<32x32xf32>, vector<32x288xf32>, vector<32x288xf32> -> vector<32x288xf32>
    %36 = arith.addf %30, %35 : vector<32x288xf32>
    %37 = vector.extract_strided_slice %4 {offsets = [160, 0], sizes = [32, 32], strides = [1, 1]} : vector<288x32xf32> to vector<32x32xf32>
    %38 = arith.mulf %37, %5 : vector<32x32xf32>
    %c0_24 = arith.constant 0 : index
    %c0_25 = arith.constant 0 : index
    %c20 = arith.constant 20 : index
    %39 = vector.load %arg1[%c0_24, %c0_25, %c20] : memref<1x32x342xf32, #tpu.memory_space<vmem>>, vector<1x32x288xf32>
    %40 = vector.shape_cast %39 : vector<1x32x288xf32> to vector<32x288xf32>
    %cst_26 = arith.constant dense<0.000000e+00> : vector<32x288xf32>
    %41 = tpu.matmul %38, %40, %cst_26 {dimension_numbers = #tpu.dot_dimension_numbers<[1], [0], [0], [1], [0, 0, 1, 1], [], []>} : vector<32x32xf32>, vector<32x288xf32>, vector<32x288xf32> -> vector<32x288xf32>
    %42 = arith.addf %36, %41 : vector<32x288xf32>
    %43 = vector.extract_strided_slice %4 {offsets = [192, 0], sizes = [32, 32], strides = [1, 1]} : vector<288x32xf32> to vector<32x32xf32>
    %44 = arith.mulf %43, %5 : vector<32x32xf32>
    %c0_27 = arith.constant 0 : index
    %c0_28 = arith.constant 0 : index
    %c36 = arith.constant 36 : index
    %45 = vector.load %arg1[%c0_27, %c0_28, %c36] : memref<1x32x342xf32, #tpu.memory_space<vmem>>, vector<1x32x288xf32>
    %46 = vector.shape_cast %45 : vector<1x32x288xf32> to vector<32x288xf32>
    %cst_29 = arith.constant dense<0.000000e+00> : vector<32x288xf32>
    %47 = tpu.matmul %44, %46, %cst_29 {dimension_numbers = #tpu.dot_dimension_numbers<[1], [0], [0], [1], [0, 0, 1, 1], [], []>} : vector<32x32xf32>, vector<32x288xf32>, vector<32x288xf32> -> vector<32x288xf32>
    %48 = arith.addf %42, %47 : vector<32x288xf32>
    %49 = vector.extract_strided_slice %4 {offsets = [224, 0], sizes = [32, 32], strides = [1, 1]} : vector<288x32xf32> to vector<32x32xf32>
    %50 = arith.mulf %49, %5 : vector<32x32xf32>
    %c0_30 = arith.constant 0 : index
    %c0_31 = arith.constant 0 : index
    %c37 = arith.constant 37 : index
    %51 = vector.load %arg1[%c0_30, %c0_31, %c37] : memref<1x32x342xf32, #tpu.memory_space<vmem>>, vector<1x32x288xf32>
    %52 = vector.shape_cast %51 : vector<1x32x288xf32> to vector<32x288xf32>
    %cst_32 = arith.constant dense<0.000000e+00> : vector<32x288xf32>
    %53 = tpu.matmul %50, %52, %cst_32 {dimension_numbers = #tpu.dot_dimension_numbers<[1], [0], [0], [1], [0, 0, 1, 1], [], []>} : vector<32x32xf32>, vector<32x288xf32>, vector<32x288xf32> -> vector<32x288xf32>
    %54 = arith.addf %48, %53 : vector<32x288xf32>
    %55 = vector.extract_strided_slice %4 {offsets = [256, 0], sizes = [32, 32], strides = [1, 1]} : vector<288x32xf32> to vector<32x32xf32>
    %56 = arith.mulf %55, %5 : vector<32x32xf32>
    %c0_33 = arith.constant 0 : index
    %c0_34 = arith.constant 0 : index
    %c38 = arith.constant 38 : index
    %57 = vector.load %arg1[%c0_33, %c0_34, %c38] : memref<1x32x342xf32, #tpu.memory_space<vmem>>, vector<1x32x288xf32>
    %58 = vector.shape_cast %57 : vector<1x32x288xf32> to vector<32x288xf32>
    %cst_35 = arith.constant dense<0.000000e+00> : vector<32x288xf32>
    %59 = tpu.matmul %56, %58, %cst_35 {dimension_numbers = #tpu.dot_dimension_numbers<[1], [0], [0], [1], [0, 0, 1, 1], [], []>} : vector<32x32xf32>, vector<32x288xf32>, vector<32x288xf32> -> vector<32x288xf32>
    %60 = arith.addf %54, %59 : vector<32x288xf32>
    %cst_36 = arith.constant 0.000000e+00 : f32
    %61 = vector.broadcast %cst_36 : f32 to vector<32x288xf32>
    %62 = arith.maximumf %60, %61 : vector<32x288xf32>
    %c0_37 = arith.constant 0 : index
    %c0_38 = arith.constant 0 : index
    %63 = vector.load %arg5[%c0_37, %c0_38] : memref<32x1xf32, #tpu.memory_space<vmem>>, vector<32x1xf32>
    %64 = vector.broadcast %63 : vector<32x1xf32> to vector<32x288xf32>
    %65 = arith.mulf %62, %64 : vector<32x288xf32>
    %c0_39 = arith.constant 0 : index
    %c0_40 = arith.constant 0 : index
    %66 = vector.load %arg6[%c0_39, %c0_40] : memref<32x1xf32, #tpu.memory_space<vmem>>, vector<32x1xf32>
    %67 = vector.broadcast %66 : vector<32x1xf32> to vector<32x288xf32>
    %68 = arith.addf %65, %67 : vector<32x288xf32>
    %69 = vector.shape_cast %68 : vector<32x288xf32> to vector<1x32x288xf32>
    %c0_41 = arith.constant 0 : index
    %c0_42 = arith.constant 0 : index
    %c0_43 = arith.constant 0 : index
    %70 = vector.load %arg7[%c0_41, %c0_42, %c0_43] : memref<1x32x288xf32, #tpu.memory_space<vmem>>, vector<1x32x288xf32>
    tpu.vector_store %arg7[%c0_41, %c0_42, %c0_43], %69 {strides = array<i32>} : memref<1x32x288xf32, #tpu.memory_space<vmem>>, vector<1x32x288xf32>,
    return
  }
  func.func @transform_0(%arg0: i32) -> (i32, i32, i32) {
    %c0_i32 = arith.constant 0 : i32
    %c0_i32_0 = arith.constant 0 : i32
    %c0_i32_1 = arith.constant 0 : i32
    return %arg0, %c0_i32, %c0_i32_0 : i32, i32, i32
  }
  func.func @transform_1(%arg0: i32) -> (i32, i32, i32, i32) {
    %c0_i32 = arith.constant 0 : i32
    %c0_i32_0 = arith.constant 0 : i32
    %c0_i32_1 = arith.constant 0 : i32
    %c0_i32_2 = arith.constant 0 : i32
    return %arg0, %c0_i32, %c0_i32_0, %c0_i32_1 : i32, i32, i32, i32
  }
  func.func @transform_2(%arg0: i32) -> (i32, i32) {
    %c0_i32 = arith.constant 0 : i32
    %c0_i32_0 = arith.constant 0 : i32
    %c0_i32_1 = arith.constant 0 : i32
    return %c0_i32, %c0_i32_0 : i32, i32
  }
  func.func @transform_3(%arg0: i32) -> (i32, i32) {
    %c0_i32 = arith.constant 0 : i32
    %c0_i32_0 = arith.constant 0 : i32
    %c0_i32_1 = arith.constant 0 : i32
    return %c0_i32, %c0_i32_0 : i32, i32
  }
  func.func @transform_4(%arg0: i32) -> (i32, i32) {
    %c0_i32 = arith.constant 0 : i32
    %c0_i32_0 = arith.constant 0 : i32
    %c0_i32_1 = arith.constant 0 : i32
    return %c0_i32, %c0_i32_0 : i32, i32
  }
  func.func @transform_5(%arg0: i32) -> (i32, i32) {
    %c0_i32 = arith.constant 0 : i32
    %c0_i32_0 = arith.constant 0 : i32
    %c0_i32_1 = arith.constant 0 : i32
    return %c0_i32, %c0_i32_0 : i32, i32
  }
  func.func @transform_6(%arg0: i32) -> (i32, i32, i32) {
    %c0_i32 = arith.constant 0 : i32
    %c0_i32_0 = arith.constant 0 : i32
    %c0_i32_1 = arith.constant 0 : i32
    return %arg0, %c0_i32, %c0_i32_0 : i32, i32, i32
  }
}

</mosaic_0001>

<llo_original>
// kernel: ac_block_forward.2
$region0: #{ac_block_forward.2}
  #allocation0 [shape = 'u32[]', space=smem, size = 0x4, offset = 0x4, fixed_abs, tag = 'smem constant byte address 0x4 - core index']
  #allocation1 [shape = 'u32[144,128]{1,0:T(1,128)}', space=vmem, size = 0x12000, scoped, tag = 'internal scratch']
  %s0 = inlined_call_operand.vmem [shape: f32[2,8,256], index: 0, kind: input, shape index: {}]
  %s1 = inlined_call_operand.vmem [shape: f32[32,8], index: 1, kind: input, shape index: {}]
  %s2 = inlined_call_operand.vmem [shape: f32[32,1], index: 2, kind: input, shape index: {}]
  %s3 = inlined_call_operand.vmem [shape: f32[2,32,256], index: 3, kind: output, shape index: {}]
  %s4 = sld [smem:[#allocation0]]
  $region45: #{ac_block_forward.2} parent=0
    _
  %s6 = ssub.s32 1, %s4
  %s7 = scalar_select 0, %s6, %s4
  loop: start=0, step=1, limit=4
  $region2: #{ac_block_forward.2} parent=0 // loop_pre_header
    _
  $region3: #{ac_block_forward.2} parent=0 // loop_header
    %s9 = sphi 0, %s13
    %p10 = scmp.ge.s32.totalorder %s9, 4
    %s16 = sphi 0, %s28
    %s17 = sphi 0, %s24
    %s18 = sphi 0, %s16
    %s19 = sphi 0, %s17
    %s20 = sphi 0, %s18
    %s21 = sphi 0, %s19
    %s33 = sphi 0, %s35
    %s36 = sphi 0, %s33
    %s37 = sphi 0, %s36
    %s53 = sphi 0, %s37
    %s57 = sphi 0, %s57
    %s59 = sphi 0, %s57
    %s60 = sphi 0, %s59
    %s74 = sphi 0, %s60
    %s78 = sphi 0, %s78
    %s80 = sphi 0, %s78
    %s81 = sphi 0, %s80
    %s95 = sphi 0, %s81
    %s103 = sphi 0, %s105
    %s106 = sphi 0, %s103
    %s107 = sphi 0, %s106
    %s123 = sphi 0, %s107
  $region4: #{ac_block_forward.2} parent=0 // loop_header_branch
    %12 = sbr.rel (%p10) target = $region8
  $region5: #{ac_block_forward.2} parent=0 // loop_body
    %s14 = ssub.s32 %s9, 1
    %s15 = ssub.s32 %s9, 2
    %s22 = sadd.s32 1, %s17
    %p23 = scmp.ge.s32.totalorder %s22, 1
    %s24 = scalar_select %p23, 0, %s22
    %s25 = sadd.s32 1, %s16
    %s26 = scalar_select %p23, %s25, %s16
    %p27 = scmp.ge.s32.totalorder %s26, 2
    %s28 = scalar_select %p27, 0, %s26
    %s29 = ssub.s32 %s16, %s28
    %s30 = ssub.s32 %s17, %s24
    %s31 = sor.u32 %s29, %s30
    %p32 = scmp.eq.s32.totalorder %s31, 0
    %s34 = sadd.s32 %s33, 1
    %s35 = scalar_select %p32, %s33, %s34
    %p38 = pneg %p32
    %p39 = scmp.eq.s32.totalorder %s9, 1
    %p40 = por %p38, %p39
    %p41 = scmp.ne.s32.totalorder %s33, %s36
    %p42 = scmp.eq.s32.totalorder %s9, 0
    %p43 = por %p41, %p42
    %p44 = scmp.ne.s32.totalorder %s33, %s36
    %p45 = scmp.eq.s32.totalorder %s14, 1
    %p46 = por %p44, %p45
    %p47 = scmp.ne.s32.totalorder %s36, %s37
    %p48 = scmp.eq.s32.totalorder %s14, 0
    %p49 = por %p47, %p48
    %p50 = scmp.ne.s32.totalorder %s36, %s37
    %p51 = scmp.eq.s32.totalorder %s15, 1
    %p52 = por %p50, %p51
    %p54 = scmp.ne.s32.totalorder %s37, %s53
    %p55 = scmp.eq.s32.totalorder %s15, 0
    %p56 = por %p54, %p55
    %s58 = sadd.s32 %s57, 1
    %p61 = scmp.eq.s32.totalorder %s9, 1
    %p62 = scmp.ne.s32.totalorder %s57, %s59
    %p63 = scmp.eq.s32.totalorder %s9, 0
    %p64 = por %p62, %p63
    %p65 = scmp.ne.s32.totalorder %s57, %s59
    %p66 = scmp.eq.s32.totalorder %s14, 1
    %p67 = por %p65, %p66
    %p68 = scmp.ne.s32.totalorder %s59, %s60
    %p69 = scmp.eq.s32.totalorder %s14, 0
    %p70 = por %p68, %p69
    %p71 = scmp.ne.s32.totalorder %s59, %s60
    %p72 = scmp.eq.s32.totalorder %s15, 1
    %p73 = por %p71, %p72
    %p75 = scmp.ne.s32.totalorder %s60, %s74
    %p76 = scmp.eq.s32.totalorder %s15, 0
    %p77 = por %p75, %p76
    %s79 = sadd.s32 %s78, 1
    %p82 = scmp.eq.s32.totalorder %s9, 1
    %p83 = scmp.ne.s32.totalorder %s78, %s80
    %p84 = scmp.eq.s32.totalorder %s9, 0
    %p85 = por %p83, %p84
    %p86 = scmp.ne.s32.totalorder %s78, %s80
    %p87 = scmp.eq.s32.totalorder %s14, 1
    %p88 = por %p86, %p87
    %p89 = scmp.ne.s32.totalorder %s80, %s81
    %p90 = scmp.eq.s32.totalorder %s14, 0
    %p91 = por %p89, %p90
    %p92 = scmp.ne.s32.totalorder %s80, %s81
    %p93 = scmp.eq.s32.totalorder %s15, 1
    %p94 = por %p92, %p93
    %p96 = scmp.ne.s32.totalorder %s81, %s95
    %p97 = scmp.eq.s32.totalorder %s15, 0
    %p98 = por %p96, %p97
    %s99 = ssub.s32 %s16, %s28
    %s100 = ssub.s32 %s17, %s24
    %s101 = sor.u32 %s99, %s100
    %p102 = scmp.eq.s32.totalorder %s101, 0
    %s104 = sadd.s32 %s103, 1
    %s105 = scalar_select %p102, %s103, %s104
    %p108 = pneg %p102
    %p109 = scmp.eq.s32.totalorder %s9, 1
    %p110 = por %p108, %p109
    %p111 = scmp.ne.s32.totalorder %s103, %s106
    %p112 = scmp.eq.s32.totalorder %s9, 0
    %p113 = por %p111, %p112
    %p114 = scmp.ne.s32.totalorder %s103, %s106
    %p115 = scmp.eq.s32.totalorder %s14, 1
    %p116 = por %p114, %p115
    %p117 = scmp.ne.s32.totalorder %s106, %s107
    %p118 = scmp.eq.s32.totalorder %s14, 0
    %p119 = por %p117, %p118
    %p120 = scmp.ne.s32.totalorder %s106, %s107
    %p121 = scmp.eq.s32.totalorder %s15, 1
    %p122 = por %p120, %p121
    %p124 = scmp.ne.s32.totalorder %s107, %s123
    %p125 = scmp.eq.s32.totalorder %s15, 0
    %p126 = por %p124, %p125
    %p127 = scmp.le.s32.totalorder 1, %s9
    %p128 = scmp.lt.s32.totalorder %s9, 3
    %p129 = pnand %p127, %p128
    %p130 = pneg %p129
    // Predicated region
    $region9: #{ac_block_forward.2} parent=5 // pred_check
      _
    $region10: #{ac_block_forward.2} parent=5 // pred_check_branch
      %132 = sbr.rel (%p129) target = $region12
    $region11: #{ac_block_forward.2} parent=5 // pred_region
      %s133 = ssub.s32 %s9, 1
      // Predicated region
      $region13: #{ac_block_forward.2} parent=11 // pred_check
        %p134 = pneg %p70
      $region14: #{ac_block_forward.2} parent=11 // pred_check_branch
        %136 = sbr.rel (%p134) target = $region16
      $region15: #{ac_block_forward.2} parent=11 // pred_region
        _
      $region16: #{ac_block_forward.2} parent=11 // pred_fallthru
        _
      // Predicated region
      $region17: #{ac_block_forward.2} parent=11 // pred_check
        %p137 = pneg %p91
      $region18: #{ac_block_forward.2} parent=11 // pred_check_branch
        %139 = sbr.rel (%p137) target = $region20
      $region19: #{ac_block_forward.2} parent=11 // pred_region
        _
      $region20: #{ac_block_forward.2} parent=11 // pred_fallthru
        _
    $region12: #{ac_block_forward.2} parent=5 // pred_fallthru
      _
    %p140 = scmp.lt.s32.totalorder %s9, 2
    // Predicated region
    $region21: #{ac_block_forward.2} parent=5 // pred_check
      %p141 = pneg %p140
    $region22: #{ac_block_forward.2} parent=5 // pred_check_branch
      %143 = sbr.rel (%p141) target = $region24
    $region23: #{ac_block_forward.2} parent=5 // pred_region
      // Predicated region
      $region25: #{ac_block_forward.2} parent=23 // pred_check
        %p144 = pneg %p43
      $region26: #{ac_block_forward.2} parent=23 // pred_check_branch
        %146 = sbr.rel (%p144) target = $region28
      $region27: #{ac_block_forward.2} parent=23 // pred_region
        %s147 = smul.u32 2, %s17
        %p148 = scmp.lt.s32.totalorder %s16, 1
        %s149 = scalar_select %p148, %s16, 1
        %p150 = scmp.lt.s32.totalorder %s147, 1
        %s151 = scalar_select %p150, %s147, 1
        %s152 = smul.addr %s149, 2
        %s153 = sadd.s32 %s151, %s152
        %s154 = smul.addr %s153, 8
        %s155 = scalar_lea.vmem %s0, %s154
        %s156 = smul.u32 2, %s17
      $region28: #{ac_block_forward.2} parent=23 // pred_fallthru
        _
    $region24: #{ac_block_forward.2} parent=5 // pred_fallthru
      _
    %p157 = scmp.le.s32.totalorder 1, %s9
    %p158 = scmp.lt.s32.totalorder %s9, 3
    %p159 = pnand %p157, %p158
    %p160 = pneg %p159
    // Predicated region
    $region29: #{ac_block_forward.2} parent=5 // pred_check
      _
    $region30: #{ac_block_forward.2} parent=5 // pred_check_branch
      %162 = sbr.rel (%p159) target = $region32
    $region31: #{ac_block_forward.2} parent=5 // pred_region
      %s163 = ssub.s32 %s9, 1
      %s164 = smul.u32 2, %s19
      %p165 = scmp.lt.s32.totalorder %s18, 1
      %s166 = scalar_select %p165, %s18, 1
      %p167 = scmp.lt.s32.totalorder %s164, 1
      %s168 = scalar_select %p167, %s164, 1
      %s169 = smul.addr %s166, 2
      %s170 = sadd.s32 %s168, %s169
      %s171 = smul.addr %s170, 8
      %s172 = scalar_lea.vmem %s0, %s171
      %p173 = pneg %p49
      %p174 = pneg %p46
      %p175 = pneg %p70
      %p176 = pneg %p67
      %p177 = pneg %p91
      %p178 = pneg %p88
      %p179 = pneg %p119
      %p180 = pneg %p116
      %s181 = smul.u32 2, %s19
      %p182 = scmp.lt.s32.totalorder %s18, 1
      %s183 = scalar_select %p182, %s18, 1
      %p184 = scmp.lt.s32.totalorder %s181, 1
      %s185 = scalar_select %p184, %s181, 1
      %s186 = smul.addr %s183, 8
      %s187 = sadd.s32 %s185, %s186
      %s188 = smul.addr %s187, 8
      %s189 = scalar_lea.vmem %s3, %s188
      %s190 = smul.u32 2, %s19
      %p191 = scmp.lt.s32.totalorder %s18, 1
      %s192 = scalar_select %p191, %s18, 1
      %p193 = scmp.lt.s32.totalorder %s190, 1
      %s194 = scalar_select %p193, %s190, 1
      %s195 = smul.addr %s192, 2
      %s196 = sadd.s32 %s194, %s195
      %s197 = smul.addr %s196, 8
      %s198 = scalar_lea.vmem %s0, %s197
      %s199 = smul.u32 2, %s19
      %s200 = smul.u32 2, %s19
      %p201 = scmp.lt.s32.totalorder %s18, 1
      %s202 = scalar_select %p201, %s18, 1
      %p203 = scmp.lt.s32.totalorder %s200, 1
      %s204 = scalar_select %p203, %s200, 1
      %s205 = smul.addr %s202, 8
      %s206 = sadd.s32 %s204, %s205
      %s207 = smul.addr %s206, 8
      %s208 = scalar_lea.vmem %s3, %s207
      %s209 = smul.u32 2, %s19
      %v210 = vld [vmem:[%s1] sm:$0xff]
      %v211 = vld [vmem:[%s1 + $0x8] sm:$0xff]
      %v212 = vld [vmem:[%s1 + $0x10] sm:$0xff]
      %v213 = vld [vmem:[%s1 + $0x18] sm:$0xff]
      %v214 = vld [vmem:[%s198] sm:$0xff]
      %v215 = vld [vmem:[%s198 + $0x8] sm:$0xff]
      %v216 = vld [vmem:[%s2] sm:$0xff]
      %v217 = vld [vmem:[%s2 + $0x8] sm:$0xff]
      %v218 = vld [vmem:[%s2 + $0x10] sm:$0xff]
      %v219 = vld [vmem:[%s2 + $0x18] sm:$0xff]
      %221 = vset.pattern.permute.xlu0 0
      %222 = vperm.xlu0 %221, %v216
      %v223 = vpop.permute.xlu0 %222
      %226 = vset.pattern.permute.xlu0 0
      %227 = vperm.xlu0 %226, %v217
      %v228 = vpop.permute.xlu0 %227
      %231 = vset.pattern.permute.xlu0 0
      %232 = vperm.xlu0 %231, %v218
      %v233 = vpop.permute.xlu0 %232
      %236 = vset.pattern.permute.xlu0 0
      %237 = vperm.xlu0 %236, %v219
      %v238 = vpop.permute.xlu0 %237
      %vm240 = vcmask 64512
      %v242 = vsel %vm240, %v210, 0
      %v245 = vsel %vm240, %v211, 0
      %v248 = vsel %vm240, %v212, 0
      %v251 = vsel %vm240, %v213, 0
      %253 = vmatprep.subr.mxu0 %v215
      %254 = vmatpush1.msra.mxu0 %v214
      %255 = vmatprep.subr.mxu0 0.0
      %256 = vmatpush1.msra.mxu0 0.0
      %257 = vmatprep.subr.mxu0 0.0
      %258 = vmatpush1.msra.mxu0 0.0
      %259 = vmatprep.subr.mxu0 0.0
      %260 = vmatpush1.msra.mxu0 0.0
      %261 = vmatprep.subr.mxu0 0.0
      %262 = vmatpush1.msra.mxu0 0.0
      %263 = vmatprep.subr.mxu0 0.0
      %264 = vmatpush1.msra.mxu0 0.0
      %265 = vmatprep.subr.mxu0 0.0
      %266 = vmatpush1.msra.mxu0 0.0
      %267 = vmatprep.subr.mxu0 0.0
      %268 = vmatpush1.msra.mxu0 0.0
      %269 = vmatprep.subr.mxu0 0.0
      %270 = vmatpush1.msra.mxu0 0.0
      %271 = vmatprep.subr.mxu0 0.0
      %272 = vmatpush1.msra.mxu0 0.0
      %273 = vmatprep.subr.mxu0 0.0
      %274 = vmatpush1.msra.mxu0 0.0
      %275 = vmatprep.subr.mxu0 0.0
      %276 = vmatpush1.msra.mxu0 0.0
      %277 = vmatprep.subr.mxu0 0.0
      %278 = vmatpush1.msra.mxu0 0.0
      %279 = vmatprep.subr.mxu0 0.0
      %280 = vmatpush1.msra.mxu0 0.0
      %281 = vmatprep.subr.mxu0 0.0
      %282 = vmatpush1.msra.mxu0 0.0
      %283 = vmatprep.subr.mxu0 0.0
      %284 = vmatpush1.msra.mxu0 0.0
      %285 = vmatprep.subr.mxu0 0.0
      %286 = vmatpush1.msra.mxu0 0.0
      %287 = vmatprep.subr.mxu0 0.0
      %288 = vmatpush1.msra.mxu0 0.0
      %289 = vmatprep.subr.mxu0 0.0
      %290 = vmatpush1.msra.mxu0 0.0
      %291 = vmatprep.subr.mxu0 0.0
      %292 = vmatpush1.msra.mxu0 0.0
      %293 = vmatprep.subr.mxu0 0.0
      %294 = vmatpush1.msra.mxu0 0.0
      %295 = vmatprep.subr.mxu0 0.0
      %296 = vmatpush1.msra.mxu0 0.0
      %297 = vmatprep.subr.mxu0 0.0
      %298 = vmatpush1.msra.mxu0 0.0
      %299 = vmatprep.subr.mxu0 0.0
      %300 = vmatpush1.msra.mxu0 0.0
      %301 = vmatprep.subr.mxu0 0.0
      %302 = vmatpush1.msra.mxu0 0.0
      %303 = vmatprep.subr.mxu0 0.0
      %304 = vmatpush1.msra.mxu0 0.0
      %305 = vmatprep.subr.mxu0 0.0
      %306 = vmatpush1.msra.mxu0 0.0
      %307 = vmatprep.subr.mxu0 0.0
      %308 = vmatpush1.msra.mxu0 0.0
      %309 = vmatprep.subr.mxu0 0.0
      %310 = vmatpush1.msra.mxu0 0.0
      %311 = vmatprep.subr.mxu0 0.0
      %312 = vmatpush1.msra.mxu0 0.0
      %313 = vmatprep.subr.mxu0 0.0
      %314 = vmatpush1.msra.mxu0 0.0
      %315 = vmatprep.subr.mxu0 0.0
      %316 = vmatpush1.msra.mxu0 0.0
      %317 = vmatprep.mubr.f32.mxu0 0.0
      %318 = vmatmul.mubr.f32.gmra.mrb[0].mxu0 %v242
      %v319 = vpop.f32.mrb[0].mxu0
      %v320 = vadd.f32 %v223, %v319
      %v321 = vpop.f32.mrb[0].mxu0
      %v322 = vadd.f32 %v223, %v321
      %323 = vmatprep.mubr.f32.mxu0 0.0
      %324 = vmatmul.mubr.f32.gmra.mrb[0].mxu0 %v245
      %v325 = vpop.f32.mrb[0].mxu0
      %v326 = vadd.f32 %v228, %v325
      %v327 = vpop.f32.mrb[0].mxu0
      %v328 = vadd.f32 %v228, %v327
      %329 = vmatprep.mubr.f32.mxu0 0.0
      %330 = vmatmul.mubr.f32.gmra.mrb[0].mxu0 %v248
      %v331 = vpop.f32.mrb[0].mxu0
      %v332 = vadd.f32 %v233, %v331
      %v333 = vpop.f32.mrb[0].mxu0
      %v334 = vadd.f32 %v233, %v333
      %335 = vmatprep.mubr.f32.mxu0 0.0
      %336 = vmatmul.mubr.f32.gmra.mrb[0].mxu0 %v251
      %v337 = vpop.f32.mrb[0].mxu0
      %v338 = vadd.f32 %v238, %v337
      %v339 = vpop.f32.mrb[0].mxu0
      %v340 = vadd.f32 %v238, %v339
      %341 = vdwg.mxu0
      %v342 = vmax.f32 %v320, 0.0
      %v343 = vmax.f32 %v322, 0.0
      %v344 = vmax.f32 %v326, 0.0
      %v345 = vmax.f32 %v328, 0.0
      %v346 = vmax.f32 %v332, 0.0
      %v347 = vmax.f32 %v334, 0.0
      %v348 = vmax.f32 %v338, 0.0
      %v349 = vmax.f32 %v340, 0.0
      %350 = vst [vmem:[%s208] sm:$0xff] %v342
      %351 = vst [vmem:[%s208 + $0x8] sm:$0xff] %v343
      %352 = vst [vmem:[%s208 + $0x10] sm:$0xff] %v344
      %353 = vst [vmem:[%s208 + $0x18] sm:$0xff] %v345
      %354 = vst [vmem:[%s208 + $0x20] sm:$0xff] %v346
      %355 = vst [vmem:[%s208 + $0x28] sm:$0xff] %v347
      %356 = vst [vmem:[%s208 + $0x30] sm:$0xff] %v348
      %357 = vst [vmem:[%s208 + $0x38] sm:$0xff] %v349
      %s358 = smul.u32 2, %s19
      %p359 = scmp.lt.s32.totalorder %s18, 1
      %s360 = scalar_select %p359, %s18, 1
      %p361 = scmp.lt.s32.totalorder %s358, 1
      %s362 = scalar_select %p361, %s358, 1
      %s363 = smul.addr %s360, 8
      %s364 = sadd.s32 %s362, %s363
      %s365 = smul.addr %s364, 8
      %s366 = scalar_lea.vmem %s3, %s365
      // Predicated region
      $region33: #{ac_block_forward.2} parent=31 // pred_check
        %p367 = pneg %p116
      $region34: #{ac_block_forward.2} parent=31 // pred_check_branch
        %369 = sbr.rel (%p367) target = $region36
      $region35: #{ac_block_forward.2} parent=31 // pred_region
        %s370 = smul.u32 2, %s19
      $region36: #{ac_block_forward.2} parent=31 // pred_fallthru
        _
    $region32: #{ac_block_forward.2} parent=5 // pred_fallthru
      _
    %p371 = scmp.le.s32.totalorder 2, %s9
    // Predicated region
    $region37: #{ac_block_forward.2} parent=5 // pred_check
      %p372 = pneg %p371
    $region38: #{ac_block_forward.2} parent=5 // pred_check_branch
      %374 = sbr.rel (%p372) target = $region40
    $region39: #{ac_block_forward.2} parent=5 // pred_region
      %s375 = ssub.s32 %s9, 2
      // Predicated region
      $region41: #{ac_block_forward.2} parent=39 // pred_check
        %p376 = pneg %p122
      $region42: #{ac_block_forward.2} parent=39 // pred_check_branch
        %378 = sbr.rel (%p376) target = $region44
      $region43: #{ac_block_forward.2} parent=39 // pred_region
        %s379 = smul.u32 2, %s21
        %p380 = scmp.lt.s32.totalorder %s20, 1
        %s381 = scalar_select %p380, %s20, 1
        %p382 = scmp.lt.s32.totalorder %s379, 1
        %s383 = scalar_select %p382, %s379, 1
        %s384 = smul.addr %s381, 8
        %s385 = sadd.s32 %s383, %s384
        %s386 = smul.addr %s385, 8
        %s387 = scalar_lea.vmem %s3, %s386
      $region44: #{ac_block_forward.2} parent=39 // pred_fallthru
        _
    $region40: #{ac_block_forward.2} parent=5 // pred_fallthru
      _
  $region6: #{ac_block_forward.2} parent=0 // loop_footer
    %s13 = sadd.s32 1, %s9
  $region7: #{ac_block_forward.2} parent=0 // loop_footer_branch
    %8 = sbr.rel target = $region3
  $region8: #{ac_block_forward.2} parent=0 // loop_exit
    _

// kernel: ac_block_forward.3
$region0: #{ac_block_forward.3}
  #allocation0 [shape = 'u32[]', space=smem, size = 0x4, offset = 0x4, fixed_abs, tag = 'smem constant byte address 0x4 - core index']
  #allocation1 [shape = 'u32[144,128]{1,0:T(1,128)}', space=vmem, size = 0x12000, scoped, tag = 'internal scratch']
  %s0 = inlined_call_operand.vmem [shape: f32[2,32,342], index: 0, kind: input, shape index: {}]
  %s1 = inlined_call_operand.vmem [shape: f32[2,9,32,8], index: 1, kind: input, shape index: {}]
  %s2 = inlined_call_operand.vmem [shape: f32[8,32], index: 2, kind: input, shape index: {}]
  %s3 = inlined_call_operand.vmem [shape: f32[32,32], index: 3, kind: input, shape index: {}]
  %s4 = inlined_call_operand.vmem [shape: f32[32,1], index: 4, kind: input, shape index: {}]
  %s5 = inlined_call_operand.vmem [shape: f32[32,1], index: 5, kind: input, shape index: {}]
  %s6 = inlined_call_operand.vmem [shape: f32[2,32,288], index: 6, kind: output, shape index: {}]
  %s7 = sld [smem:[#allocation0]]
  $region57: #{ac_block_forward.3} parent=0
    _
  %s9 = ssub.s32 1, %s7
  %s10 = scalar_select 0, %s9, %s7
  loop: start=0, step=1, limit=4
  $region2: #{ac_block_forward.3} parent=0 // loop_pre_header
    _
  $region3: #{ac_block_forward.3} parent=0 // loop_header
    %s12 = sphi 0, %s16
    %p13 = scmp.ge.s32.totalorder %s12, 4
    %s22 = sphi 0, %s24
    %s25 = sphi 0, %s22
    %s26 = sphi 0, %s25
    %s42 = sphi 0, %s26
    %s48 = sphi 0, %s50
    %s51 = sphi 0, %s48
    %s52 = sphi 0, %s51
    %s68 = sphi 0, %s52
    %s72 = sphi 0, %s72
    %s74 = sphi 0, %s72
    %s75 = sphi 0, %s74
    %s89 = sphi 0, %s75
    %s93 = sphi 0, %s93
    %s95 = sphi 0, %s93
    %s96 = sphi 0, %s95
    %s110 = sphi 0, %s96
    %s114 = sphi 0, %s114
    %s116 = sphi 0, %s114
    %s117 = sphi 0, %s116
    %s131 = sphi 0, %s117
    %s135 = sphi 0, %s135
    %s137 = sphi 0, %s135
    %s138 = sphi 0, %s137
    %s152 = sphi 0, %s138
    %s158 = sphi 0, %s160
    %s161 = sphi 0, %s158
    %s162 = sphi 0, %s161
    %s178 = sphi 0, %s162
  $region4: #{ac_block_forward.3} parent=0 // loop_header_branch
    %15 = sbr.rel (%p13) target = $region8
  $region5: #{ac_block_forward.3} parent=0 // loop_body
    %s17 = ssub.s32 %s12, 1
    %s18 = ssub.s32 %s12, 2
    %s19 = sadd.s32 %s12, 1
    %s20 = ssub.s32 %s12, %s19
    %p21 = scmp.eq.s32.totalorder %s20, 0
    %s23 = sadd.s32 %s22, 1
    %s24 = scalar_select %p21, %s22, %s23
    %p27 = pneg %p21
    %p28 = scmp.eq.s32.totalorder %s12, 1
    %p29 = por %p27, %p28
    %p30 = scmp.ne.s32.totalorder %s22, %s25
    %p31 = scmp.eq.s32.totalorder %s12, 0
    %p32 = por %p30, %p31
    %p33 = scmp.ne.s32.totalorder %s22, %s25
    %p34 = scmp.eq.s32.totalorder %s17, 1
    %p35 = por %p33, %p34
    %p36 = scmp.ne.s32.totalorder %s25, %s26
    %p37 = scmp.eq.s32.totalorder %s17, 0
    %p38 = por %p36, %p37
    %p39 = scmp.ne.s32.totalorder %s25, %s26
    %p40 = scmp.eq.s32.totalorder %s18, 1
    %p41 = por %p39, %p40
    %p43 = scmp.ne.s32.totalorder %s26, %s42
    %p44 = scmp.eq.s32.totalorder %s18, 0
    %p45 = por %p43, %p44
    %s46 = ssub.s32 %s12, %s19
    %p47 = scmp.eq.s32.totalorder %s46, 0
    %s49 = sadd.s32 %s48, 1
    %s50 = scalar_select %p47, %s48, %s49
    %p53 = pneg %p47
    %p54 = scmp.eq.s32.totalorder %s12, 1
    %p55 = por %p53, %p54
    %p56 = scmp.ne.s32.totalorder %s48, %s51
    %p57 = scmp.eq.s32.totalorder %s12, 0
    %p58 = por %p56, %p57
    %p59 = scmp.ne.s32.totalorder %s48, %s51
    %p60 = scmp.eq.s32.totalorder %s17, 1
    %p61 = por %p59, %p60
    %p62 = scmp.ne.s32.totalorder %s51, %s52
    %p63 = scmp.eq.s32.totalorder %s17, 0
    %p64 = por %p62, %p63
    %p65 = scmp.ne.s32.totalorder %s51, %s52
    %p66 = scmp.eq.s32.totalorder %s18, 1
    %p67 = por %p65, %p66
    %p69 = scmp.ne.s32.totalorder %s52, %s68
    %p70 = scmp.eq.s32.totalorder %s18, 0
    %p71 = por %p69, %p70
    %s73 = sadd.s32 %s72, 1
    %p76 = scmp.eq.s32.totalorder %s12, 1
    %p77 = scmp.ne.s32.totalorder %s72, %s74
    %p78 = scmp.eq.s32.totalorder %s12, 0
    %p79 = por %p77, %p78
    %p80 = scmp.ne.s32.totalorder %s72, %s74
    %p81 = scmp.eq.s32.totalorder %s17, 1
    %p82 = por %p80, %p81
    %p83 = scmp.ne.s32.totalorder %s74, %s75
    %p84 = scmp.eq.s32.totalorder %s17, 0
    %p85 = por %p83, %p84
    %p86 = scmp.ne.s32.totalorder %s74, %s75
    %p87 = scmp.eq.s32.totalorder %s18, 1
    %p88 = por %p86, %p87
    %p90 = scmp.ne.s32.totalorder %s75, %s89
    %p91 = scmp.eq.s32.totalorder %s18, 0
    %p92 = por %p90, %p91
    %s94 = sadd.s32 %s93, 1
    %p97 = scmp.eq.s32.totalorder %s12, 1
    %p98 = scmp.ne.s32.totalorder %s93, %s95
    %p99 = scmp.eq.s32.totalorder %s12, 0
    %p100 = por %p98, %p99
    %p101 = scmp.ne.s32.totalorder %s93, %s95
    %p102 = scmp.eq.s32.totalorder %s17, 1
    %p103 = por %p101, %p102
    %p104 = scmp.ne.s32.totalorder %s95, %s96
    %p105 = scmp.eq.s32.totalorder %s17, 0
    %p106 = por %p104, %p105
    %p107 = scmp.ne.s32.totalorder %s95, %s96
    %p108 = scmp.eq.s32.totalorder %s18, 1
    %p109 = por %p107, %p108
    %p111 = scmp.ne.s32.totalorder %s96, %s110
    %p112 = scmp.eq.s32.totalorder %s18, 0
    %p113 = por %p111, %p112
    %s115 = sadd.s32 %s114, 1
    %p118 = scmp.eq.s32.totalorder %s12, 1
    %p119 = scmp.ne.s32.totalorder %s114, %s116
    %p120 = scmp.eq.s32.totalorder %s12, 0
    %p121 = por %p119, %p120
    %p122 = scmp.ne.s32.totalorder %s114, %s116
    %p123 = scmp.eq.s32.totalorder %s17, 1
    %p124 = por %p122, %p123
    %p125 = scmp.ne.s32.totalorder %s116, %s117
    %p126 = scmp.eq.s32.totalorder %s17, 0
    %p127 = por %p125, %p126
    %p128 = scmp.ne.s32.totalorder %s116, %s117
    %p129 = scmp.eq.s32.totalorder %s18, 1
    %p130 = por %p128, %p129
    %p132 = scmp.ne.s32.totalorder %s117, %s131
    %p133 = scmp.eq.s32.totalorder %s18, 0
    %p134 = por %p132, %p133
    %s136 = sadd.s32 %s135, 1
    %p139 = scmp.eq.s32.totalorder %s12, 1
    %p140 = scmp.ne.s32.totalorder %s135, %s137
    %p141 = scmp.eq.s32.totalorder %s12, 0
    %p142 = por %p140, %p141
    %p143 = scmp.ne.s32.totalorder %s135, %s137
    %p144 = scmp.eq.s32.totalorder %s17, 1
    %p145 = por %p143, %p144
    %p146 = scmp.ne.s32.totalorder %s137, %s138
    %p147 = scmp.eq.s32.totalorder %s17, 0
    %p148 = por %p146, %p147
    %p149 = scmp.ne.s32.totalorder %s137, %s138
    %p150 = scmp.eq.s32.totalorder %s18, 1
    %p151 = por %p149, %p150
    %p153 = scmp.ne.s32.totalorder %s138, %s152
    %p154 = scmp.eq.s32.totalorder %s18, 0
    %p155 = por %p153, %p154
    %s156 = ssub.s32 %s12, %s19
    %p157 = scmp.eq.s32.totalorder %s156, 0
    %s159 = sadd.s32 %s158, 1
    %s160 = scalar_select %p157, %s158, %s159
    %p163 = pneg %p157
    %p164 = scmp.eq.s32.totalorder %s12, 1
    %p165 = por %p163, %p164
    %p166 = scmp.ne.s32.totalorder %s158, %s161
    %p167 = scmp.eq.s32.totalorder %s12, 0
    %p168 = por %p166, %p167
    %p169 = scmp.ne.s32.totalorder %s158, %s161
    %p170 = scmp.eq.s32.totalorder %s17, 1
    %p171 = por %p169, %p170
    %p172 = scmp.ne.s32.totalorder %s161, %s162
    %p173 = scmp.eq.s32.totalorder %s17, 0
    %p174 = por %p172, %p173
    %p175 = scmp.ne.s32.totalorder %s161, %s162
    %p176 = scmp.eq.s32.totalorder %s18, 1
    %p177 = por %p175, %p176
    %p179 = scmp.ne.s32.totalorder %s162, %s178
    %p180 = scmp.eq.s32.totalorder %s18, 0
    %p181 = por %p179, %p180
    %p182 = scmp.le.s32.totalorder 1, %s12
    %p183 = scmp.lt.s32.totalorder %s12, 3
    %p184 = pnand %p182, %p183
    %p185 = pneg %p184
    // Predicated region
    $region9: #{ac_block_forward.3} parent=5 // pred_check
      _
    $region10: #{ac_block_forward.3} parent=5 // pred_check_branch
      %187 = sbr.rel (%p184) target = $region12
    $region11: #{ac_block_forward.3} parent=5 // pred_region
      %s188 = ssub.s32 %s12, 1
      // Predicated region
      $region13: #{ac_block_forward.3} parent=11 // pred_check
        %p189 = pneg %p85
      $region14: #{ac_block_forward.3} parent=11 // pred_check_branch
        %191 = sbr.rel (%p189) target = $region16
      $region15: #{ac_block_forward.3} parent=11 // pred_region
        _
      $region16: #{ac_block_forward.3} parent=11 // pred_fallthru
        _
      // Predicated region
      $region17: #{ac_block_forward.3} parent=11 // pred_check
        %p192 = pneg %p106
      $region18: #{ac_block_forward.3} parent=11 // pred_check_branch
        %194 = sbr.rel (%p192) target = $region20
      $region19: #{ac_block_forward.3} parent=11 // pred_region
        _
      $region20: #{ac_block_forward.3} parent=11 // pred_fallthru
        _
      // Predicated region
      $region21: #{ac_block_forward.3} parent=11 // pred_check
        %p195 = pneg %p127
      $region22: #{ac_block_forward.3} parent=11 // pred_check_branch
        %197 = sbr.rel (%p195) target = $region24
      $region23: #{ac_block_forward.3} parent=11 // pred_region
        _
      $region24: #{ac_block_forward.3} parent=11 // pred_fallthru
        _
      // Predicated region
      $region25: #{ac_block_forward.3} parent=11 // pred_check
        %p198 = pneg %p148
      $region26: #{ac_block_forward.3} parent=11 // pred_check_branch
        %200 = sbr.rel (%p198) target = $region28
      $region27: #{ac_block_forward.3} parent=11 // pred_region
        _
      $region28: #{ac_block_forward.3} parent=11 // pred_fallthru
        _
    $region12: #{ac_block_forward.3} parent=5 // pred_fallthru
      _
    %p201 = scmp.lt.s32.totalorder %s12, 2
    // Predicated region
    $region29: #{ac_block_forward.3} parent=5 // pred_check
      %p202 = pneg %p201
    $region30: #{ac_block_forward.3} parent=5 // pred_check_branch
      %204 = sbr.rel (%p202) target = $region32
    $region31: #{ac_block_forward.3} parent=5 // pred_region
      // Predicated region
      $region33: #{ac_block_forward.3} parent=31 // pred_check
        %p205 = pneg %p32
      $region34: #{ac_block_forward.3} parent=31 // pred_check_branch
        %207 = sbr.rel (%p205) target = $region36
      $region35: #{ac_block_forward.3} parent=31 // pred_region
        %p208 = scmp.lt.s32.totalorder %s12, 1
        %s209 = scalar_select %p208, %s12, 1
        %s210 = smul.addr %s209, 12
        %s211 = smul.addr %s210, 8
        %s212 = scalar_lea.vmem %s0, %s211
      $region36: #{ac_block_forward.3} parent=31 // pred_fallthru
        _
      // Predicated region
      $region37: #{ac_block_forward.3} parent=31 // pred_check
        %p213 = pneg %p58
      $region38: #{ac_block_forward.3} parent=31 // pred_check_branch
        %215 = sbr.rel (%p213) target = $region40
      $region39: #{ac_block_forward.3} parent=31 // pred_region
        %p216 = scmp.lt.s32.totalorder %s12, 1
        %s217 = scalar_select %p216, %s12, 1
        %s218 = smul.addr %s217, 36
        %s219 = smul.addr %s218, 8
        %s220 = scalar_lea.vmem %s1, %s219
      $region40: #{ac_block_forward.3} parent=31 // pred_fallthru
        _
    $region32: #{ac_block_forward.3} parent=5 // pred_fallthru
      _
    %p221 = scmp.le.s32.totalorder 1, %s12
    %p222 = scmp.lt.s32.totalorder %s12, 3
    %p223 = pnand %p221, %p222
    %p224 = pneg %p223
    // Predicated region
    $region41: #{ac_block_forward.3} parent=5 // pred_check
      _
    $region42: #{ac_block_forward.3} parent=5 // pred_check_branch
      %226 = sbr.rel (%p223) target = $region44
    $region43: #{ac_block_forward.3} parent=5 // pred_region
      %s227 = ssub.s32 %s12, 1
      %p228 = scmp.lt.s32.totalorder %s17, 1
      %s229 = scalar_select %p228, %s17, 1
      %s230 = smul.addr %s229, 12
      %s231 = smul.addr %s230, 8
      %s232 = scalar_lea.vmem %s0, %s231
      %p233 = pneg %p38
      %p234 = pneg %p35
      %p235 = scmp.lt.s32.totalorder %s17, 1
      %s236 = scalar_select %p235, %s17, 1
      %s237 = smul.addr %s236, 36
      %s238 = smul.addr %s237, 8
      %s239 = scalar_lea.vmem %s1, %s238
      %p240 = pneg %p64
      %p241 = pneg %p61
      %p242 = pneg %p85
      %p243 = pneg %p82
      %p244 = pneg %p106
      %p245 = pneg %p103
      %p246 = pneg %p127
      %p247 = pneg %p124
      %p248 = pneg %p148
      %p249 = pneg %p145
      %p250 = pneg %p174
      %p251 = pneg %p171
      %p252 = scmp.lt.s32.totalorder %s17, 1
      %s253 = scalar_select %p252, %s17, 1
      %s254 = smul.addr %s253, 12
      %s255 = smul.addr %s254, 8
      %s256 = scalar_lea.vmem %s6, %s255
      %p257 = scmp.lt.s32.totalorder %s17, 1
      %s258 = scalar_select %p257, %s17, 1
      %s259 = smul.addr %s258, 12
      %s260 = smul.addr %s259, 8
      %s261 = scalar_lea.vmem %s0, %s260
      %p262 = scmp.lt.s32.totalorder %s17, 1
      %s263 = scalar_select %p262, %s17, 1
      %s264 = smul.addr %s263, 36
      %s265 = smul.addr %s264, 8
      %s266 = scalar_lea.vmem %s1, %s265
      %p267 = scmp.lt.s32.totalorder %s17, 1
      %s268 = scalar_select %p267, %s17, 1
      %s269 = smul.addr %s268, 12
      %s270 = smul.addr %s269, 8
      %s271 = scalar_lea.vmem %s6, %s270
      %v272 = vld [vmem:[%s266] sm:$0xff]
      %v273 = vld [vmem:[%s266 + $0x8] sm:$0xff]
      %v274 = vld [vmem:[%s266 + $0x10] sm:$0xff]
      %v275 = vld [vmem:[%s266 + $0x18] sm:$0xff]
      %v276 = vld [vmem:[%s266 + $0x20] sm:$0xff]
      %v277 = vld [vmem:[%s266 + $0x28] sm:$0xff]
      %v278 = vld [vmem:[%s266 + $0x30] sm:$0xff]
      %v279 = vld [vmem:[%s266 + $0x38] sm:$0xff]
      %v280 = vld [vmem:[%s266 + $0x40] sm:$0xff]
      %v281 = vld [vmem:[%s266 + $0x48] sm:$0xff]
      %v282 = vld [vmem:[%s266 + $0x50] sm:$0xff]
      %v283 = vld [vmem:[%s266 + $0x58] sm:$0xff]
      %v284 = vld [vmem:[%s266 + $0x60] sm:$0xff]
      %v285 = vld [vmem:[%s266 + $0x68] sm:$0xff]
      %v286 = vld [vmem:[%s266 + $0x70] sm:$0xff]
      %v287 = vld [vmem:[%s266 + $0x78] sm:$0xff]
      %v288 = vld [vmem:[%s266 + $0x80] sm:$0xff]
      %v289 = vld [vmem:[%s266 + $0x88] sm:$0xff]
      %v290 = vld [vmem:[%s266 + $0x90] sm:$0xff]
      %v291 = vld [vmem:[%s266 + $0x98] sm:$0xff]
      %v292 = vld [vmem:[%s266 + $0xa0] sm:$0xff]
      %v293 = vld [vmem:[%s266 + $0xa8] sm:$0xff]
      %v294 = vld [vmem:[%s266 + $0xb0] sm:$0xff]
      %v295 = vld [vmem:[%s266 + $0xb8] sm:$0xff]
      %v296 = vld [vmem:[%s266 + $0xc0] sm:$0xff]
      %v297 = vld [vmem:[%s266 + $0xc8] sm:$0xff]
      %v298 = vld [vmem:[%s266 + $0xd0] sm:$0xff]
      %v299 = vld [vmem:[%s266 + $0xd8] sm:$0xff]
      %v300 = vld [vmem:[%s266 + $0xe0] sm:$0xff]
      %v301 = vld [vmem:[%s266 + $0xe8] sm:$0xff]
      %v302 = vld [vmem:[%s266 + $0xf0] sm:$0xff]
      %v303 = vld [vmem:[%s266 + $0xf8] sm:$0xff]
      %v304 = vld [vmem:[%s266 + $0x100] sm:$0xff]
      %v305 = vld [vmem:[%s266 + $0x108] sm:$0xff]
      %v306 = vld [vmem:[%s266 + $0x110] sm:$0xff]
      %v307 = vld [vmem:[%s266 + $0x118] sm:$0xff]
      %v308 = vld [vmem:[%s2] sm:$0xff]
      %vm309 = vcmask 64512
      %v311 = vsel %vm309, %v272, 0
      %v314 = vsel %vm309, %v273, 0
      %v317 = vsel %vm309, %v274, 0
      %v320 = vsel %vm309, %v275, 0
      %v323 = vsel %vm309, %v276, 0
      %v326 = vsel %vm309, %v277, 0
      %v329 = vsel %vm309, %v278, 0
      %v332 = vsel %vm309, %v279, 0
      %v335 = vsel %vm309, %v280, 0
      %v338 = vsel %vm309, %v281, 0
      %v341 = vsel %vm309, %v282, 0
      %v344 = vsel %vm309, %v283, 0
      %v347 = vsel %vm309, %v284, 0
      %v350 = vsel %vm309, %v285, 0
      %v353 = vsel %vm309, %v286, 0
      %v356 = vsel %vm309, %v287, 0
      %v359 = vsel %vm309, %v288, 0
      %v362 = vsel %vm309, %v289, 0
      %v365 = vsel %vm309, %v290, 0
      %v368 = vsel %vm309, %v291, 0
      %v371 = vsel %vm309, %v292, 0
      %v374 = vsel %vm309, %v293, 0
      %v377 = vsel %vm309, %v294, 0
      %v380 = vsel %vm309, %v295, 0
      %v383 = vsel %vm309, %v296, 0
      %v386 = vsel %vm309, %v297, 0
      %v389 = vsel %vm309, %v298, 0
      %v392 = vsel %vm309, %v299, 0
      %v395 = vsel %vm309, %v300, 0
      %v398 = vsel %vm309, %v301, 0
      %v401 = vsel %vm309, %v302, 0
      %v404 = vsel %vm309, %v303, 0
      %v407 = vsel %vm309, %v304, 0
      %v410 = vsel %vm309, %v305, 0
      %v413 = vsel %vm309, %v306, 0
      %v416 = vsel %vm309, %v307, 0
      %418 = vmatprep.subr.mxu0 0.0
      %419 = vmatpush1.msra.mxu0 %v308
      %420 = vmatprep.subr.mxu0 0.0
      %421 = vmatpush1.msra.mxu0 0.0
      %422 = vmatprep.subr.mxu0 0.0
      %423 = vmatpush1.msra.mxu0 0.0
      %424 = vmatprep.subr.mxu0 0.0
      %425 = vmatpush1.msra.mxu0 0.0
      %426 = vmatprep.subr.mxu0 0.0
      %427 = vmatpush1.msra.mxu0 0.0
      %428 = vmatprep.subr.mxu0 0.0
      %429 = vmatpush1.msra.mxu0 0.0
      %430 = vmatprep.subr.mxu0 0.0
      %431 = vmatpush1.msra.mxu0 0.0
      %432 = vmatprep.subr.mxu0 0.0
      %433 = vmatpush1.msra.mxu0 0.0
      %434 = vmatprep.subr.mxu0 0.0
      %435 = vmatpush1.msra.mxu0 0.0
      %436 = vmatprep.subr.mxu0 0.0
      %437 = vmatpush1.msra.mxu0 0.0
      %438 = vmatprep.subr.mxu0 0.0
      %439 = vmatpush1.msra.mxu0 0.0
      %440 = vmatprep.subr.mxu0 0.0
      %441 = vmatpush1.msra.mxu0 0.0
      %442 = vmatprep.subr.mxu0 0.0
      %443 = vmatpush1.msra.mxu0 0.0
      %444 = vmatprep.subr.mxu0 0.0
      %445 = vmatpush1.msra.mxu0 0.0
      %446 = vmatprep.subr.mxu0 0.0
      %447 = vmatpush1.msra.mxu0 0.0
      %448 = vmatprep.subr.mxu0 0.0
      %449 = vmatpush1.msra.mxu0 0.0
      %450 = vmatprep.subr.mxu0 0.0
      %451 = vmatpush1.msra.mxu0 0.0
      %452 = vmatprep.subr.mxu0 0.0
      %453 = vmatpush1.msra.mxu0 0.0
      %454 = vmatprep.subr.mxu0 0.0
      %455 = vmatpush1.msra.mxu0 0.0
      %456 = vmatprep.subr.mxu0 0.0
      %457 = vmatpush1.msra.mxu0 0.0
      %458 = vmatprep.subr.mxu0 0.0
      %459 = vmatpush1.msra.mxu0 0.0
      %460 = vmatprep.subr.mxu0 0.0
      %461 = vmatpush1.msra.mxu0 0.0
      %462 = vmatprep.subr.mxu0 0.0
      %463 = vmatpush1.msra.mxu0 0.0
      %464 = vmatprep.subr.mxu0 0.0
      %465 = vmatpush1.msra.mxu0 0.0
      %466 = vmatprep.subr.mxu0 0.0
      %467 = vmatpush1.msra.mxu0 0.0
      %468 = vmatprep.subr.mxu0 0.0
      %469 = vmatpush1.msra.mxu0 0.0
      %470 = vmatprep.subr.mxu0 0.0
      %471 = vmatpush1.msra.mxu0 0.0
      %472 = vmatprep.subr.mxu0 0.0
      %473 = vmatpush1.msra.mxu0 0.0
      %474 = vmatprep.subr.mxu0 0.0
      %475 = vmatpush1.msra.mxu0 0.0
      %476 = vmatprep.subr.mxu0 0.0
      %477 = vmatpush1.msra.mxu0 0.0
      %478 = vmatprep.subr.mxu0 0.0
      %479 = vmatpush1.msra.mxu0 0.0
      %480 = vmatprep.subr.mxu0 0.0
      %481 = vmatpush1.msra.mxu0 0.0
      %482 = vmatprep.mubr.f32.mxu0 0.0
      %483 = vmatmul.mubr.f32.gmra.mrb[0].mxu0 %v311
      %v484 = vpop.f32.mrb[0].mxu0
      %v485 = vadd.f32 0.0, %v484
      %v486 = vpop.f32.mrb[0].mxu0
      %487 = vmatprep.mubr.f32.mxu0 0.0
      %488 = vmatmul.mubr.f32.gmra.mrb[0].mxu0 %v314
      %v489 = vpop.f32.mrb[0].mxu0
      %v490 = vadd.f32 0.0, %v489
      %v491 = vpop.f32.mrb[0].mxu0
      %492 = vmatprep.mubr.f32.mxu0 0.0
      %493 = vmatmul.mubr.f32.gmra.mrb[0].mxu0 %v317
      %v494 = vpop.f32.mrb[0].mxu0
      %v495 = vadd.f32 0.0, %v494
      %v496 = vpop.f32.mrb[0].mxu0
      %497 = vmatprep.mubr.f32.mxu0 0.0
      %498 = vmatmul.mubr.f32.gmra.mrb[0].mxu0 %v320
      %v499 = vpop.f32.mrb[0].mxu0
      %v500 = vadd.f32 0.0, %v499
      %v501 = vpop.f32.mrb[0].mxu0
      %502 = vmatprep.mubr.f32.mxu0 0.0
      %503 = vmatmul.mubr.f32.gmra.mrb[0].mxu0 %v323
      %v504 = vpop.f32.mrb[0].mxu0
      %v505 = vadd.f32 0.0, %v504
      %v506 = vpop.f32.mrb[0].mxu0
      %507 = vmatprep.mubr.f32.mxu0 0.0
      %508 = vmatmul.mubr.f32.gmra.mrb[0].mxu0 %v326
      %v509 = vpop.f32.mrb[0].mxu0
      %v510 = vadd.f32 0.0, %v509
      %v511 = vpop.f32.mrb[0].mxu0
      %512 = vmatprep.mubr.f32.mxu0 0.0
      %513 = vmatmul.mubr.f32.gmra.mrb[0].mxu0 %v329
      %v514 = vpop.f32.mrb[0].mxu0
      %v515 = vadd.f32 0.0, %v514
      %v516 = vpop.f32.mrb[0].mxu0
      %517 = vmatprep.mubr.f32.mxu0 0.0
      %518 = vmatmul.mubr.f32.gmra.mrb[0].mxu0 %v332
      %v519 = vpop.f32.mrb[0].mxu0
      %v520 = vadd.f32 0.0, %v519
      %v521 = vpop.f32.mrb[0].mxu0
      %522 = vmatprep.mubr.f32.mxu0 0.0
      %523 = vmatmul.mubr.f32.gmra.mrb[0].mxu0 %v335
      %v524 = vpop.f32.mrb[0].mxu0
      %v525 = vadd.f32 0.0, %v524
      %v526 = vpop.f32.mrb[0].mxu0
      %527 = vmatprep.mubr.f32.mxu0 0.0
      %528 = vmatmul.mubr.f32.gmra.mrb[0].mxu0 %v338
      %v529 = vpop.f32.mrb[0].mxu0
      %v530 = vadd.f32 0.0, %v529
      %v531 = vpop.f32.mrb[0].mxu0
      %532 = vmatprep.mubr.f32.mxu0 0.0
      %533 = vmatmul.mubr.f32.gmra.mrb[0].mxu0 %v341
      %v534 = vpop.f32.mrb[0].mxu0
      %v535 = vadd.f32 0.0, %v534
      %v536 = vpop.f32.mrb[0].mxu0
      %537 = vmatprep.mubr.f32.mxu0 0.0
      %538 = vmatmul.mubr.f32.gmra.mrb[0].mxu0 %v344
      %v539 = vpop.f32.mrb[0].mxu0
      %v540 = vadd.f32 0.0, %v539
      %v541 = vpop.f32.mrb[0].mxu0
      %542 = vmatprep.mubr.f32.mxu0 0.0
      %543 = vmatmul.mubr.f32.gmra.mrb[0].mxu0 %v347
      %v544 = vpop.f32.mrb[0].mxu0
      %v545 = vadd.f32 0.0, %v544
      %v546 = vpop.f32.mrb[0].mxu0
      %547 = vmatprep.mubr.f32.mxu0 0.0
      %548 = vmatmul.mubr.f32.gmra.mrb[0].mxu0 %v350
      %v549 = vpop.f32.mrb[0].mxu0
      %v550 = vadd.f32 0.0, %v549
      %v551 = vpop.f32.mrb[0].mxu0
      %552 = vmatprep.mubr.f32.mxu0 0.0
      %553 = vmatmul.mubr.f32.gmra.mrb[0].mxu0 %v353
      %v554 = vpop.f32.mrb[0].mxu0
      %v555 = vadd.f32 0.0, %v554
      %v556 = vpop.f32.mrb[0].mxu0
      %557 = vmatprep.mubr.f32.mxu0 0.0
      %558 = vmatmul.mubr.f32.gmra.mrb[0].mxu0 %v356
      %v559 = vpop.f32.mrb[0].mxu0
      %v560 = vadd.f32 0.0, %v559
      %v561 = vpop.f32.mrb[0].mxu0
      %562 = vmatprep.mubr.f32.mxu0 0.0
      %563 = vmatmul.mubr.f32.gmra.mrb[0].mxu0 %v359
      %v564 = vpop.f32.mrb[0].mxu0
      %v565 = vadd.f32 0.0, %v564
      %v566 = vpop.f32.mrb[0].mxu0
      %567 = vmatprep.mubr.f32.mxu0 0.0
      %568 = vmatmul.mubr.f32.gmra.mrb[0].mxu0 %v362
      %v569 = vpop.f32.mrb[0].mxu0
      %v570 = vadd.f32 0.0, %v569
      %v571 = vpop.f32.mrb[0].mxu0
      %572 = vmatprep.mubr.f32.mxu0 0.0
      %573 = vmatmul.mubr.f32.gmra.mrb[0].mxu0 %v365
      %v574 = vpop.f32.mrb[0].mxu0
      %v575 = vadd.f32 0.0, %v574
      %v576 = vpop.f32.mrb[0].mxu0
      %577 = vmatprep.mubr.f32.mxu0 0.0
      %578 = vmatmul.mubr.f32.gmra.mrb[0].mxu0 %v368
      %v579 = vpop.f32.mrb[0].mxu0
      %v580 = vadd.f32 0.0, %v579
      %v581 = vpop.f32.mrb[0].mxu0
      %582 = vmatprep.mubr.f32.mxu0 0.0
      %583 = vmatmul.mubr.f32.gmra.mrb[0].mxu0 %v371
      %v584 = vpop.f32.mrb[0].mxu0
      %v585 = vadd.f32 0.0, %v584
      %v586 = vpop.f32.mrb[0].mxu0
      %587 = vmatprep.mubr.f32.mxu0 0.0
      %588 = vmatmul.mubr.f32.gmra.mrb[0].mxu0 %v374
      %v589 = vpop.f32.mrb[0].mxu0
      %v590 = vadd.f32 0.0, %v589
      %v591 = vpop.f32.mrb[0].mxu0
      %592 = vmatprep.mubr.f32.mxu0 0.0
      %593 = vmatmul.mubr.f32.gmra.mrb[0].mxu0 %v377
      %v594 = vpop.f32.mrb[0].mxu0
      %v595 = vadd.f32 0.0, %v594
      %v596 = vpop.f32.mrb[0].mxu0
      %597 = vmatprep.mubr.f32.mxu0 0.0
      %598 = vmatmul.mubr.f32.gmra.mrb[0].mxu0 %v380
      %v599 = vpop.f32.mrb[0].mxu0
      %v600 = vadd.f32 0.0, %v599
      %v601 = vpop.f32.mrb[0].mxu0
      %602 = vmatprep.mubr.f32.mxu0 0.0
      %603 = vmatmul.mubr.f32.gmra.mrb[0].mxu0 %v383
      %v604 = vpop.f32.mrb[0].mxu0
      %v605 = vadd.f32 0.0, %v604
      %v606 = vpop.f32.mrb[0].mxu0
      %607 = vmatprep.mubr.f32.mxu0 0.0
      %608 = vmatmul.mubr.f32.gmra.mrb[0].mxu0 %v386
      %v609 = vpop.f32.mrb[0].mxu0
      %v610 = vadd.f32 0.0, %v609
      %v611 = vpop.f32.mrb[0].mxu0
      %612 = vmatprep.mubr.f32.mxu0 0.0
      %613 = vmatmul.mubr.f32.gmra.mrb[0].mxu0 %v389
      %v614 = vpop.f32.mrb[0].mxu0
      %v615 = vadd.f32 0.0, %v614
      %v616 = vpop.f32.mrb[0].mxu0
      %617 = vmatprep.mubr.f32.mxu0 0.0
      %618 = vmatmul.mubr.f32.gmra.mrb[0].mxu0 %v392
      %v619 = vpop.f32.mrb[0].mxu0
      %v620 = vadd.f32 0.0, %v619
      %v621 = vpop.f32.mrb[0].mxu0
      %622 = vmatprep.mubr.f32.mxu0 0.0
      %623 = vmatmul.mubr.f32.gmra.mrb[0].mxu0 %v395
      %v624 = vpop.f32.mrb[0].mxu0
      %v625 = vadd.f32 0.0, %v624
      %v626 = vpop.f32.mrb[0].mxu0
      %627 = vmatprep.mubr.f32.mxu0 0.0
      %628 = vmatmul.mubr.f32.gmra.mrb[0].mxu0 %v398
      %v629 = vpop.f32.mrb[0].mxu0
      %v630 = vadd.f32 0.0, %v629
      %v631 = vpop.f32.mrb[0].mxu0
      %632 = vmatprep.mubr.f32.mxu0 0.0
      %633 = vmatmul.mubr.f32.gmra.mrb[0].mxu0 %v401
      %v634 = vpop.f32.mrb[0].mxu0
      %v635 = vadd.f32 0.0, %v634
      %v636 = vpop.f32.mrb[0].mxu0
      %637 = vmatprep.mubr.f32.mxu0 0.0
      %638 = vmatmul.mubr.f32.gmra.mrb[0].mxu0 %v404
      %v639 = vpop.f32.mrb[0].mxu0
      %v640 = vadd.f32 0.0, %v639
      %v641 = vpop.f32.mrb[0].mxu0
      %642 = vmatprep.mubr.f32.mxu0 0.0
      %643 = vmatmul.mubr.f32.gmra.mrb[0].mxu0 %v407
      %v644 = vpop.f32.mrb[0].mxu0
      %v645 = vadd.f32 0.0, %v644
      %v646 = vpop.f32.mrb[0].mxu0
      %647 = vmatprep.mubr.f32.mxu0 0.0
      %648 = vmatmul.mubr.f32.gmra.mrb[0].mxu0 %v410
      %v649 = vpop.f32.mrb[0].mxu0
      %v650 = vadd.f32 0.0, %v649
      %v651 = vpop.f32.mrb[0].mxu0
      %652 = vmatprep.mubr.f32.mxu0 0.0
      %653 = vmatmul.mubr.f32.gmra.mrb[0].mxu0 %v413
      %v654 = vpop.f32.mrb[0].mxu0
      %v655 = vadd.f32 0.0, %v654
      %v656 = vpop.f32.mrb[0].mxu0
      %657 = vmatprep.mubr.f32.mxu0 0.0
      %658 = vmatmul.mubr.f32.gmra.mrb[0].mxu0 %v416
      %v659 = vpop.f32.mrb[0].mxu0
      %v660 = vadd.f32 0.0, %v659
      %v661 = vpop.f32.mrb[0].mxu0
      %662 = vdwg.mxu0
      %v663 = vld [vmem:[%s3] sm:$0xff]
      %v664 = vld [vmem:[%s3 + $0x8] sm:$0xff]
      %v665 = vld [vmem:[%s3 + $0x10] sm:$0xff]
      %v666 = vld [vmem:[%s3 + $0x18] sm:$0xff]
      %v667 = vmul.f32 %v485, %v663
      %v668 = vmul.f32 %v490, %v664
      %v669 = vmul.f32 %v495, %v665
      %v670 = vmul.f32 %v500, %v666
      %v671 = vld [vmem:[%s261] sm:$0xff]
      %v672 = vld [vmem:[%s261 + $0x8] sm:$0xff]
      %v673 = vld [vmem:[%s261 + $0x10] sm:$0xff]
      %v674 = vld [vmem:[%s261 + $0x18] sm:$0xff]
      %v675 = vld [vmem:[%s261 + $0x20] sm:$0xff]
      %v676 = vld [vmem:[%s261 + $0x28] sm:$0xff]
      %v677 = vld [vmem:[%s261 + $0x30] sm:$0xff]
      %v678 = vld [vmem:[%s261 + $0x38] sm:$0xff]
      %v679 = vld [vmem:[%s261 + $0x40] sm:$0xff]
      %v680 = vld [vmem:[%s261 + $0x48] sm:$0xff]
      %v681 = vld [vmem:[%s261 + $0x50] sm:$0xff]
      %v682 = vld [vmem:[%s261 + $0x58] sm:$0xff]
      %v683 = vmul.f32 %v505, %v663
      %v684 = vmul.f32 %v510, %v664
      %v685 = vmul.f32 %v515, %v665
      %v686 = vmul.f32 %v520, %v666
      %699 = vrot.lane.b32.xlu0 %v671, 127
      %v700 = vpop.permute.xlu0 %699
      %701 = vrot.lane.b32.xlu0 %v672, 127
      %v702 = vpop.permute.xlu0 %701
      %703 = vrot.lane.b32.xlu0 %v673, 127
      %v704 = vpop.permute.xlu0 %703
      %705 = vrot.lane.b32.xlu0 %v674, 127
      %v706 = vpop.permute.xlu0 %705
      %707 = vrot.lane.b32.xlu0 %v675, 127
      %v708 = vpop.permute.xlu0 %707
      %709 = vrot.lane.b32.xlu0 %v676, 127
      %v710 = vpop.permute.xlu0 %709
      %711 = vrot.lane.b32.xlu0 %v677, 127
      %v712 = vpop.permute.xlu0 %711
      %713 = vrot.lane.b32.xlu0 %v678, 127
      %v714 = vpop.permute.xlu0 %713
      %715 = vrot.lane.b32.xlu0 %v679, 127
      %v716 = vpop.permute.xlu0 %715
      %717 = vrot.lane.b32.xlu0 %v680, 127
      %v718 = vpop.permute.xlu0 %717
      %719 = vrot.lane.b32.xlu0 %v681, 127
      %v720 = vpop.permute.xlu0 %719
      %721 = vrot.lane.b32.xlu0 %v682, 127
      %v722 = vpop.permute.xlu0 %721
      %vm723 = vcmask 1039360
      %v724 = vsel %vm723, %v700, %v702
      %v725 = vsel %vm723, %v702, %v704
      %v726 = vsel %vm723, %v706, %v708
      %v727 = vsel %vm723, %v708, %v710
      %v728 = vsel %vm723, %v712, %v714
      %v729 = vsel %vm723, %v714, %v716
      %v730 = vsel %vm723, %v718, %v720
      %v731 = vsel %vm723, %v720, %v722
      %vm744 = vcmask 261120
      %v746 = vsel %vm744, %v683, 0
      %v749 = vsel %vm744, %v684, 0
      %v752 = vsel %vm744, %v685, 0
      %v755 = vsel %vm744, %v686, 0
      %757 = vmatprep.subr.mxu0 %v725
      %758 = vmatpush1.msra.mxu0 %v724
      %759 = vmatprep.subr.mxu0 %v727
      %760 = vmatpush1.msra.mxu0 %v726
      %761 = vmatprep.subr.mxu0 %v729
      %762 = vmatpush1.msra.mxu0 %v728
      %763 = vmatprep.subr.mxu0 %v731
      %764 = vmatpush1.msra.mxu0 %v730
      %765 = vmatprep.subr.mxu0 0.0
      %766 = vmatpush1.msra.mxu0 0.0
      %767 = vmatprep.subr.mxu0 0.0
      %768 = vmatpush1.msra.mxu0 0.0
      %769 = vmatprep.subr.mxu0 0.0
      %770 = vmatpush1.msra.mxu0 0.0
      %771 = vmatprep.subr.mxu0 0.0
      %772 = vmatpush1.msra.mxu0 0.0
      %773 = vmatprep.subr.mxu0 0.0
      %774 = vmatpush1.msra.mxu0 0.0
      %775 = vmatprep.subr.mxu0 0.0
      %776 = vmatpush1.msra.mxu0 0.0
      %777 = vmatprep.subr.mxu0 0.0
      %778 = vmatpush1.msra.mxu0 0.0
      %779 = vmatprep.subr.mxu0 0.0
      %780 = vmatpush1.msra.mxu0 0.0
      %781 = vmatprep.subr.mxu0 0.0
      %782 = vmatpush1.msra.mxu0 0.0
      %783 = vmatprep.subr.mxu0 0.0
      %784 = vmatpush1.msra.mxu0 0.0
      %785 = vmatprep.subr.mxu0 0.0
      %786 = vmatpush1.msra.mxu0 0.0
      %787 = vmatprep.subr.mxu0 0.0
      %788 = vmatpush1.msra.mxu0 0.0
      %789 = vmatprep.subr.mxu0 0.0
      %790 = vmatpush1.msra.mxu0 0.0
      %791 = vmatprep.subr.mxu0 0.0
      %792 = vmatpush1.msra.mxu0 0.0
      %793 = vmatprep.subr.mxu0 0.0
      %794 = vmatpush1.msra.mxu0 0.0
      %795 = vmatprep.subr.mxu0 0.0
      %796 = vmatpush1.msra.mxu0 0.0
      %797 = vmatprep.subr.mxu0 0.0
      %798 = vmatpush1.msra.mxu0 0.0
      %799 = vmatprep.subr.mxu0 0.0
      %800 = vmatpush1.msra.mxu0 0.0
      %801 = vmatprep.subr.mxu0 0.0
      %802 = vmatpush1.msra.mxu0 0.0
      %803 = vmatprep.subr.mxu0 0.0
      %804 = vmatpush1.msra.mxu0 0.0
      %805 = vmatprep.subr.mxu0 0.0
      %806 = vmatpush1.msra.mxu0 0.0
      %807 = vmatprep.subr.mxu0 0.0
      %808 = vmatpush1.msra.mxu0 0.0
      %809 = vmatprep.subr.mxu0 0.0
      %810 = vmatpush1.msra.mxu0 0.0
      %811 = vmatprep.subr.mxu0 0.0
      %812 = vmatpush1.msra.mxu0 0.0
      %813 = vmatprep.subr.mxu0 0.0
      %814 = vmatpush1.msra.mxu0 0.0
      %815 = vmatprep.subr.mxu0 0.0
      %816 = vmatpush1.msra.mxu0 0.0
      %817 = vmatprep.subr.mxu0 0.0
      %818 = vmatpush1.msra.mxu0 0.0
      %819 = vmatprep.subr.mxu0 0.0
      %820 = vmatpush1.msra.mxu0 0.0
      %821 = vmatprep.mubr.f32.mxu0 0.0
      %822 = vmatmul.mubr.f32.gmra.mrb[0].mxu0 %v746
      %v823 = vpop.f32.mrb[0].mxu0
      %v824 = vadd.f32 0.0, %v823
      %v825 = vpop.f32.mrb[0].mxu0
      %v826 = vadd.f32 0.0, %v825
      %827 = vmatprep.mubr.f32.mxu0 0.0
      %828 = vmatmul.mubr.f32.gmra.mrb[0].mxu0 %v749
      %v829 = vpop.f32.mrb[0].mxu0
      %v830 = vadd.f32 0.0, %v829
      %v831 = vpop.f32.mrb[0].mxu0
      %v832 = vadd.f32 0.0, %v831
      %833 = vmatprep.mubr.f32.mxu0 0.0
      %834 = vmatmul.mubr.f32.gmra.mrb[0].mxu0 %v752
      %v835 = vpop.f32.mrb[0].mxu0
      %v836 = vadd.f32 0.0, %v835
      %v837 = vpop.f32.mrb[0].mxu0
      %v838 = vadd.f32 0.0, %v837
      %839 = vmatprep.mubr.f32.mxu0 0.0
      %840 = vmatmul.mubr.f32.gmra.mrb[0].mxu0 %v755
      %v841 = vpop.f32.mrb[0].mxu0
      %v842 = vadd.f32 0.0, %v841
      %v843 = vpop.f32.mrb[0].mxu0
      %v844 = vadd.f32 0.0, %v843
      %845 = vdwg.mxu0
      %846 = vmatprep.subr.mxu0 0.0
      %847 = vmatpush1.msra.mxu0 %v704
      %848 = vmatprep.subr.mxu0 0.0
      %849 = vmatpush1.msra.mxu0 %v710
      %850 = vmatprep.subr.mxu0 0.0
      %851 = vmatpush1.msra.mxu0 %v716
      %852 = vmatprep.subr.mxu0 0.0
      %853 = vmatpush1.msra.mxu0 %v722
      %854 = vmatprep.subr.mxu0 0.0
      %855 = vmatpush1.msra.mxu0 0.0
      %856 = vmatprep.subr.mxu0 0.0
      %857 = vmatpush1.msra.mxu0 0.0
      %858 = vmatprep.subr.mxu0 0.0
      %859 = vmatpush1.msra.mxu0 0.0
      %860 = vmatprep.subr.mxu0 0.0
      %861 = vmatpush1.msra.mxu0 0.0
      %862 = vmatprep.subr.mxu0 0.0
      %863 = vmatpush1.msra.mxu0 0.0
      %864 = vmatprep.subr.mxu0 0.0
      %865 = vmatpush1.msra.mxu0 0.0
      %866 = vmatprep.subr.mxu0 0.0
      %867 = vmatpush1.msra.mxu0 0.0
      %868 = vmatprep.subr.mxu0 0.0
      %869 = vmatpush1.msra.mxu0 0.0
      %870 = vmatprep.subr.mxu0 0.0
      %871 = vmatpush1.msra.mxu0 0.0
      %872 = vmatprep.subr.mxu0 0.0
      %873 = vmatpush1.msra.mxu0 0.0
      %874 = vmatprep.subr.mxu0 0.0
      %875 = vmatpush1.msra.mxu0 0.0
      %876 = vmatprep.subr.mxu0 0.0
      %877 = vmatpush1.msra.mxu0 0.0
      %878 = vmatprep.subr.mxu0 0.0
      %879 = vmatpush1.msra.mxu0 0.0
      %880 = vmatprep.subr.mxu0 0.0
      %881 = vmatpush1.msra.mxu0 0.0
      %882 = vmatprep.subr.mxu0 0.0
      %883 = vmatpush1.msra.mxu0 0.0
      %884 = vmatprep.subr.mxu0 0.0
      %885 = vmatpush1.msra.mxu0 0.0
      %886 = vmatprep.subr.mxu0 0.0
      %887 = vmatpush1.msra.mxu0 0.0
      %888 = vmatprep.subr.mxu0 0.0
      %889 = vmatpush1.msra.mxu0 0.0
      %890 = vmatprep.subr.mxu0 0.0
      %891 = vmatpush1.msra.mxu0 0.0
      %892 = vmatprep.subr.mxu0 0.0
      %893 = vmatpush1.msra.mxu0 0.0
      %894 = vmatprep.subr.mxu0 0.0
      %895 = vmatpush1.msra.mxu0 0.0
      %896 = vmatprep.subr.mxu0 0.0
      %897 = vmatpush1.msra.mxu0 0.0
      %898 = vmatprep.subr.mxu0 0.0
      %899 = vmatpush1.msra.mxu0 0.0
      %900 = vmatprep.subr.mxu0 0.0
      %901 = vmatpush1.msra.mxu0 0.0
      %902 = vmatprep.subr.mxu0 0.0
      %903 = vmatpush1.msra.mxu0 0.0
      %904 = vmatprep.subr.mxu0 0.0
      %905 = vmatpush1.msra.mxu0 0.0
      %906 = vmatprep.subr.mxu0 0.0
      %907 = vmatpush1.msra.mxu0 0.0
      %908 = vmatprep.subr.mxu0 0.0
      %909 = vmatpush1.msra.mxu0 0.0
      %910 = vmatprep.mubr.f32.mxu0 0.0
      %911 = vmatmul.mubr.f32.gmra.mrb[0].mxu0 %v746
      %v912 = vpop.f32.mrb[0].mxu0
      %v913 = vadd.f32 0.0, %v912
      %v914 = vpop.f32.mrb[0].mxu0
      %915 = vmatprep.mubr.f32.mxu0 0.0
      %916 = vmatmul.mubr.f32.gmra.mrb[0].mxu0 %v749
      %v917 = vpop.f32.mrb[0].mxu0
      %v918 = vadd.f32 0.0, %v917
      %v919 = vpop.f32.mrb[0].mxu0
      %920 = vmatprep.mubr.f32.mxu0 0.0
      %921 = vmatmul.mubr.f32.gmra.mrb[0].mxu0 %v752
      %v922 = vpop.f32.mrb[0].mxu0
      %v923 = vadd.f32 0.0, %v922
      %v924 = vpop.f32.mrb[0].mxu0
      %925 = vmatprep.mubr.f32.mxu0 0.0
      %926 = vmatmul.mubr.f32.gmra.mrb[0].mxu0 %v755
      %v927 = vpop.f32.mrb[0].mxu0
      %v928 = vadd.f32 0.0, %v927
      %v929 = vpop.f32.mrb[0].mxu0
      %930 = vdwg.mxu0
      %v932 = vsel %vm744, %v667, 0
      %v935 = vsel %vm744, %v668, 0
      %v938 = vsel %vm744, %v669, 0
      %v941 = vsel %vm744, %v670, 0
      %943 = vmatprep.subr.mxu0 %v672
      %944 = vmatpush1.msra.mxu0 %v671
      %945 = vmatprep.subr.mxu0 %v675
      %946 = vmatpush1.msra.mxu0 %v674
      %947 = vmatprep.subr.mxu0 %v678
      %948 = vmatpush1.msra.mxu0 %v677
      %949 = vmatprep.subr.mxu0 %v681
      %950 = vmatpush1.msra.mxu0 %v680
      %951 = vmatprep.subr.mxu0 0.0
      %952 = vmatpush1.msra.mxu0 0.0
      %953 = vmatprep.subr.mxu0 0.0
      %954 = vmatpush1.msra.mxu0 0.0
      %955 = vmatprep.subr.mxu0 0.0
      %956 = vmatpush1.msra.mxu0 0.0
      %957 = vmatprep.subr.mxu0 0.0
      %958 = vmatpush1.msra.mxu0 0.0
      %959 = vmatprep.subr.mxu0 0.0
      %960 = vmatpush1.msra.mxu0 0.0
      %961 = vmatprep.subr.mxu0 0.0
      %962 = vmatpush1.msra.mxu0 0.0
      %963 = vmatprep.subr.mxu0 0.0
      %964 = vmatpush1.msra.mxu0 0.0
      %965 = vmatprep.subr.mxu0 0.0
      %966 = vmatpush1.msra.mxu0 0.0
      %967 = vmatprep.subr.mxu0 0.0
      %968 = vmatpush1.msra.mxu0 0.0
      %969 = vmatprep.subr.mxu0 0.0
      %970 = vmatpush1.msra.mxu0 0.0
      %971 = vmatprep.subr.mxu0 0.0
      %972 = vmatpush1.msra.mxu0 0.0
      %973 = vmatprep.subr.mxu0 0.0
      %974 = vmatpush1.msra.mxu0 0.0
      %975 = vmatprep.subr.mxu0 0.0
      %976 = vmatpush1.msra.mxu0 0.0
      %977 = vmatprep.subr.mxu0 0.0
      %978 = vmatpush1.msra.mxu0 0.0
      %979 = vmatprep.subr.mxu0 0.0
      %980 = vmatpush1.msra.mxu0 0.0
      %981 = vmatprep.subr.mxu0 0.0
      %982 = vmatpush1.msra.mxu0 0.0
      %983 = vmatprep.subr.mxu0 0.0
      %984 = vmatpush1.msra.mxu0 0.0
      %985 = vmatprep.subr.mxu0 0.0
      %986 = vmatpush1.msra.mxu0 0.0
      %987 = vmatprep.subr.mxu0 0.0
      %988 = vmatpush1.msra.mxu0 0.0
      %989 = vmatprep.subr.mxu0 0.0
      %990 = vmatpush1.msra.mxu0 0.0
      %991 = vmatprep.subr.mxu0 0.0
      %992 = vmatpush1.msra.mxu0 0.0
      %993 = vmatprep.subr.mxu0 0.0
      %994 = vmatpush1.msra.mxu0 0.0
      %995 = vmatprep.subr.mxu0 0.0
      %996 = vmatpush1.msra.mxu0 0.0
      %997 = vmatprep.subr.mxu0 0.0
      %998 = vmatpush1.msra.mxu0 0.0
      %999 = vmatprep.subr.mxu0 0.0
      %1000 = vmatpush1.msra.mxu0 0.0
      %1001 = vmatprep.subr.mxu0 0.0
      %1002 = vmatpush1.msra.mxu0 0.0
      %1003 = vmatprep.subr.mxu0 0.0
      %1004 = vmatpush1.msra.mxu0 0.0
      %1005 = vmatprep.subr.mxu0 0.0
      %1006 = vmatpush1.msra.mxu0 0.0
      %1007 = vmatprep.mubr.f32.mxu0 0.0
      %1008 = vmatmul.mubr.f32.gmra.mrb[0].mxu0 %v932
      %v1009 = vpop.f32.mrb[0].mxu0
      %v1010 = vadd.f32 %v824, %v1009
      %v1011 = vpop.f32.mrb[0].mxu0
      %v1012 = vadd.f32 %v826, %v1011
      %1013 = vmatprep.mubr.f32.mxu0 0.0
      %1014 = vmatmul.mubr.f32.gmra.mrb[0].mxu0 %v935
      %v1015 = vpop.f32.mrb[0].mxu0
      %v1016 = vadd.f32 %v830, %v1015
      %v1017 = vpop.f32.mrb[0].mxu0
      %v1018 = vadd.f32 %v832, %v1017
      %1019 = vmatprep.mubr.f32.mxu0 0.0
      %1020 = vmatmul.mubr.f32.gmra.mrb[0].mxu0 %v938
      %v1021 = vpop.f32.mrb[0].mxu0
      %v1022 = vadd.f32 %v836, %v1021
      %v1023 = vpop.f32.mrb[0].mxu0
      %v1024 = vadd.f32 %v838, %v1023
      %1025 = vmatprep.mubr.f32.mxu0 0.0
      %1026 = vmatmul.mubr.f32.gmra.mrb[0].mxu0 %v941
      %v1027 = vpop.f32.mrb[0].mxu0
      %v1028 = vadd.f32 %v842, %v1027
      %v1029 = vpop.f32.mrb[0].mxu0
      %v1030 = vadd.f32 %v844, %v1029
      %1031 = vdwg.mxu0
      %1032 = vmatprep.subr.mxu0 0.0
      %1033 = vmatpush1.msra.mxu0 %v673
      %1034 = vmatprep.subr.mxu0 0.0
      %1035 = vmatpush1.msra.mxu0 %v676
      %1036 = vmatprep.subr.mxu0 0.0
      %1037 = vmatpush1.msra.mxu0 %v679
      %1038 = vmatprep.subr.mxu0 0.0
      %1039 = vmatpush1.msra.mxu0 %v682
      %1040 = vmatprep.subr.mxu0 0.0
      %1041 = vmatpush1.msra.mxu0 0.0
      %1042 = vmatprep.subr.mxu0 0.0
      %1043 = vmatpush1.msra.mxu0 0.0
      %1044 = vmatprep.subr.mxu0 0.0
      %1045 = vmatpush1.msra.mxu0 0.0
      %1046 = vmatprep.subr.mxu0 0.0
      %1047 = vmatpush1.msra.mxu0 0.0
      %1048 = vmatprep.subr.mxu0 0.0
      %1049 = vmatpush1.msra.mxu0 0.0
      %1050 = vmatprep.subr.mxu0 0.0
      %1051 = vmatpush1.msra.mxu0 0.0
      %1052 = vmatprep.subr.mxu0 0.0
      %1053 = vmatpush1.msra.mxu0 0.0
      %1054 = vmatprep.subr.mxu0 0.0
      %1055 = vmatpush1.msra.mxu0 0.0
      %1056 = vmatprep.subr.mxu0 0.0
      %1057 = vmatpush1.msra.mxu0 0.0
      %1058 = vmatprep.subr.mxu0 0.0
      %1059 = vmatpush1.msra.mxu0 0.0
      %1060 = vmatprep.subr.mxu0 0.0
      %1061 = vmatpush1.msra.mxu0 0.0
      %1062 = vmatprep.subr.mxu0 0.0
      %1063 = vmatpush1.msra.mxu0 0.0
      %1064 = vmatprep.subr.mxu0 0.0
      %1065 = vmatpush1.msra.mxu0 0.0
      %1066 = vmatprep.subr.mxu0 0.0
      %1067 = vmatpush1.msra.mxu0 0.0
      %1068 = vmatprep.subr.mxu0 0.0
      %1069 = vmatpush1.msra.mxu0 0.0
      %1070 = vmatprep.subr.mxu0 0.0
      %1071 = vmatpush1.msra.mxu0 0.0
      %1072 = vmatprep.subr.mxu0 0.0
      %1073 = vmatpush1.msra.mxu0 0.0
      %1074 = vmatprep.subr.mxu0 0.0
      %1075 = vmatpush1.msra.mxu0 0.0
      %1076 = vmatprep.subr.mxu0 0.0
      %1077 = vmatpush1.msra.mxu0 0.0
      %1078 = vmatprep.subr.mxu0 0.0
      %1079 = vmatpush1.msra.mxu0 0.0
      %1080 = vmatprep.subr.mxu0 0.0
      %1081 = vmatpush1.msra.mxu0 0.0
      %1082 = vmatprep.subr.mxu0 0.0
      %1083 = vmatpush1.msra.mxu0 0.0
      %1084 = vmatprep.subr.mxu0 0.0
      %1085 = vmatpush1.msra.mxu0 0.0
      %1086 = vmatprep.subr.mxu0 0.0
      %1087 = vmatpush1.msra.mxu0 0.0
      %1088 = vmatprep.subr.mxu0 0.0
      %1089 = vmatpush1.msra.mxu0 0.0
      %1090 = vmatprep.subr.mxu0 0.0
      %1091 = vmatpush1.msra.mxu0 0.0
      %1092 = vmatprep.subr.mxu0 0.0
      %1093 = vmatpush1.msra.mxu0 0.0
      %1094 = vmatprep.subr.mxu0 0.0
      %1095 = vmatpush1.msra.mxu0 0.0
      %1096 = vmatprep.mubr.f32.mxu0 0.0
      %1097 = vmatmul.mubr.f32.gmra.mrb[0].mxu0 %v932
      %v1098 = vpop.f32.mrb[0].mxu0
      %v1099 = vadd.f32 %v913, %v1098
      %v1100 = vpop.f32.mrb[0].mxu0
      %1101 = vmatprep.mubr.f32.mxu0 0.0
      %1102 = vmatmul.mubr.f32.gmra.mrb[0].mxu0 %v935
      %v1103 = vpop.f32.mrb[0].mxu0
      %v1104 = vadd.f32 %v918, %v1103
      %v1105 = vpop.f32.mrb[0].mxu0
      %1106 = vmatprep.mubr.f32.mxu0 0.0
      %1107 = vmatmul.mubr.f32.gmra.mrb[0].mxu0 %v938
      %v1108 = vpop.f32.mrb[0].mxu0
      %v1109 = vadd.f32 %v923, %v1108
      %v1110 = vpop.f32.mrb[0].mxu0
      %1111 = vmatprep.mubr.f32.mxu0 0.0
      %1112 = vmatmul.mubr.f32.gmra.mrb[0].mxu0 %v941
      %v1113 = vpop.f32.mrb[0].mxu0
      %v1114 = vadd.f32 %v928, %v1113
      %v1115 = vpop.f32.mrb[0].mxu0
      %1116 = vdwg.mxu0
      %v1117 = vmul.f32 %v525, %v663
      %v1118 = vmul.f32 %v530, %v664
      %v1119 = vmul.f32 %v535, %v665
      %v1120 = vmul.f32 %v540, %v666
      %1121 = vrot.lane.b32.xlu0 %v671, 126
      %v1122 = vpop.permute.xlu0 %1121
      %1123 = vrot.lane.b32.xlu0 %v672, 126
      %v1124 = vpop.permute.xlu0 %1123
      %1125 = vrot.lane.b32.xlu0 %v673, 126
      %v1126 = vpop.permute.xlu0 %1125
      %1127 = vrot.lane.b32.xlu0 %v674, 126
      %v1128 = vpop.permute.xlu0 %1127
      %1129 = vrot.lane.b32.xlu0 %v675, 126
      %v1130 = vpop.permute.xlu0 %1129
      %1131 = vrot.lane.b32.xlu0 %v676, 126
      %v1132 = vpop.permute.xlu0 %1131
      %1133 = vrot.lane.b32.xlu0 %v677, 126
      %v1134 = vpop.permute.xlu0 %1133
      %1135 = vrot.lane.b32.xlu0 %v678, 126
      %v1136 = vpop.permute.xlu0 %1135
      %1137 = vrot.lane.b32.xlu0 %v679, 126
      %v1138 = vpop.permute.xlu0 %1137
      %1139 = vrot.lane.b32.xlu0 %v680, 126
      %v1140 = vpop.permute.xlu0 %1139
      %1141 = vrot.lane.b32.xlu0 %v681, 126
      %v1142 = vpop.permute.xlu0 %1141
      %1143 = vrot.lane.b32.xlu0 %v682, 126
      %v1144 = vpop.permute.xlu0 %1143
      %vm1145 = vcmask 1031168
      %v1146 = vsel %vm1145, %v1122, %v1124
      %v1147 = vsel %vm1145, %v1124, %v1126
      %v1148 = vsel %vm1145, %v1128, %v1130
      %v1149 = vsel %vm1145, %v1130, %v1132
      %v1150 = vsel %vm1145, %v1134, %v1136
      %v1151 = vsel %vm1145, %v1136, %v1138
      %v1152 = vsel %vm1145, %v1140, %v1142
      %v1153 = vsel %vm1145, %v1142, %v1144
      %v1167 = vsel %vm744, %v1117, 0
      %v1170 = vsel %vm744, %v1118, 0
      %v1173 = vsel %vm744, %v1119, 0
      %v1176 = vsel %vm744, %v1120, 0
      %1178 = vmatprep.subr.mxu0 %v1147
      %1179 = vmatpush1.msra.mxu0 %v1146
      %1180 = vmatprep.subr.mxu0 %v1149
      %1181 = vmatpush1.msra.mxu0 %v1148
      %1182 = vmatprep.subr.mxu0 %v1151
      %1183 = vmatpush1.msra.mxu0 %v1150
      %1184 = vmatprep.subr.mxu0 %v1153
      %1185 = vmatpush1.msra.mxu0 %v1152
      %1186 = vmatprep.subr.mxu0 0.0
      %1187 = vmatpush1.msra.mxu0 0.0
      %1188 = vmatprep.subr.mxu0 0.0
      %1189 = vmatpush1.msra.mxu0 0.0
      %1190 = vmatprep.subr.mxu0 0.0
      %1191 = vmatpush1.msra.mxu0 0.0
      %1192 = vmatprep.subr.mxu0 0.0
      %1193 = vmatpush1.msra.mxu0 0.0
      %1194 = vmatprep.subr.mxu0 0.0
      %1195 = vmatpush1.msra.mxu0 0.0
      %1196 = vmatprep.subr.mxu0 0.0
      %1197 = vmatpush1.msra.mxu0 0.0
      %1198 = vmatprep.subr.mxu0 0.0
      %1199 = vmatpush1.msra.mxu0 0.0
      %1200 = vmatprep.subr.mxu0 0.0
      %1201 = vmatpush1.msra.mxu0 0.0
      %1202 = vmatprep.subr.mxu0 0.0
      %1203 = vmatpush1.msra.mxu0 0.0
      %1204 = vmatprep.subr.mxu0 0.0
      %1205 = vmatpush1.msra.mxu0 0.0
      %1206 = vmatprep.subr.mxu0 0.0
      %1207 = vmatpush1.msra.mxu0 0.0
      %1208 = vmatprep.subr.mxu0 0.0
      %1209 = vmatpush1.msra.mxu0 0.0
      %1210 = vmatprep.subr.mxu0 0.0
      %1211 = vmatpush1.msra.mxu0 0.0
      %1212 = vmatprep.subr.mxu0 0.0
      %1213 = vmatpush1.msra.mxu0 0.0
      %1214 = vmatprep.subr.mxu0 0.0
      %1215 = vmatpush1.msra.mxu0 0.0
      %1216 = vmatprep.subr.mxu0 0.0
      %1217 = vmatpush1.msra.mxu0 0.0
      %1218 = vmatprep.subr.mxu0 0.0
      %1219 = vmatpush1.msra.mxu0 0.0
      %1220 = vmatprep.subr.mxu0 0.0
      %1221 = vmatpush1.msra.mxu0 0.0
      %1222 = vmatprep.subr.mxu0 0.0
      %1223 = vmatpush1.msra.mxu0 0.0
      %1224 = vmatprep.subr.mxu0 0.0
      %1225 = vmatpush1.msra.mxu0 0.0
      %1226 = vmatprep.subr.mxu0 0.0
      %1227 = vmatpush1.msra.mxu0 0.0
      %1228 = vmatprep.subr.mxu0 0.0
      %1229 = vmatpush1.msra.mxu0 0.0
      %1230 = vmatprep.subr.mxu0 0.0
      %1231 = vmatpush1.msra.mxu0 0.0
      %1232 = vmatprep.subr.mxu0 0.0
      %1233 = vmatpush1.msra.mxu0 0.0
      %1234 = vmatprep.subr.mxu0 0.0
      %1235 = vmatpush1.msra.mxu0 0.0
      %1236 = vmatprep.subr.mxu0 0.0
      %1237 = vmatpush1.msra.mxu0 0.0
      %1238 = vmatprep.subr.mxu0 0.0
      %1239 = vmatpush1.msra.mxu0 0.0
      %1240 = vmatprep.subr.mxu0 0.0
      %1241 = vmatpush1.msra.mxu0 0.0
      %1242 = vmatprep.mubr.f32.mxu0 0.0
      %1243 = vmatmul.mubr.f32.gmra.mrb[0].mxu0 %v1167
      %v1244 = vpop.f32.mrb[0].mxu0
      %v1245 = vadd.f32 0.0, %v1244
      %v1246 = vpop.f32.mrb[0].mxu0
      %v1247 = vadd.f32 0.0, %v1246
      %1248 = vmatprep.mubr.f32.mxu0 0.0
      %1249 = vmatmul.mubr.f32.gmra.mrb[0].mxu0 %v1170
      %v1250 = vpop.f32.mrb[0].mxu0
      %v1251 = vadd.f32 0.0, %v1250
      %v1252 = vpop.f32.mrb[0].mxu0
      %v1253 = vadd.f32 0.0, %v1252
      %1254 = vmatprep.mubr.f32.mxu0 0.0
      %1255 = vmatmul.mubr.f32.gmra.mrb[0].mxu0 %v1173
      %v1256 = vpop.f32.mrb[0].mxu0
      %v1257 = vadd.f32 0.0, %v1256
      %v1258 = vpop.f32.mrb[0].mxu0
      %v1259 = vadd.f32 0.0, %v1258
      %1260 = vmatprep.mubr.f32.mxu0 0.0
      %1261 = vmatmul.mubr.f32.gmra.mrb[0].mxu0 %v1176
      %v1262 = vpop.f32.mrb[0].mxu0
      %v1263 = vadd.f32 0.0, %v1262
      %v1264 = vpop.f32.mrb[0].mxu0
      %v1265 = vadd.f32 0.0, %v1264
      %1266 = vdwg.mxu0
      %1267 = vmatprep.subr.mxu0 0.0
      %1268 = vmatpush1.msra.mxu0 %v1126
      %1269 = vmatprep.subr.mxu0 0.0
      %1270 = vmatpush1.msra.mxu0 %v1132
      %1271 = vmatprep.subr.mxu0 0.0
      %1272 = vmatpush1.msra.mxu0 %v1138
      %1273 = vmatprep.subr.mxu0 0.0
      %1274 = vmatpush1.msra.mxu0 %v1144
      %1275 = vmatprep.subr.mxu0 0.0
      %1276 = vmatpush1.msra.mxu0 0.0
      %1277 = vmatprep.subr.mxu0 0.0
      %1278 = vmatpush1.msra.mxu0 0.0
      %1279 = vmatprep.subr.mxu0 0.0
      %1280 = vmatpush1.msra.mxu0 0.0
      %1281 = vmatprep.subr.mxu0 0.0
      %1282 = vmatpush1.msra.mxu0 0.0
      %1283 = vmatprep.subr.mxu0 0.0
      %1284 = vmatpush1.msra.mxu0 0.0
      %1285 = vmatprep.subr.mxu0 0.0
      %1286 = vmatpush1.msra.mxu0 0.0
      %1287 = vmatprep.subr.mxu0 0.0
      %1288 = vmatpush1.msra.mxu0 0.0
      %1289 = vmatprep.subr.mxu0 0.0
      %1290 = vmatpush1.msra.mxu0 0.0
      %1291 = vmatprep.subr.mxu0 0.0
      %1292 = vmatpush1.msra.mxu0 0.0
      %1293 = vmatprep.subr.mxu0 0.0
      %1294 = vmatpush1.msra.mxu0 0.0
      %1295 = vmatprep.subr.mxu0 0.0
      %1296 = vmatpush1.msra.mxu0 0.0
      %1297 = vmatprep.subr.mxu0 0.0
      %1298 = vmatpush1.msra.mxu0 0.0
      %1299 = vmatprep.subr.mxu0 0.0
      %1300 = vmatpush1.msra.mxu0 0.0
      %1301 = vmatprep.subr.mxu0 0.0
      %1302 = vmatpush1.msra.mxu0 0.0
      %1303 = vmatprep.subr.mxu0 0.0
      %1304 = vmatpush1.msra.mxu0 0.0
      %1305 = vmatprep.subr.mxu0 0.0
      %1306 = vmatpush1.msra.mxu0 0.0
      %1307 = vmatprep.subr.mxu0 0.0
      %1308 = vmatpush1.msra.mxu0 0.0
      %1309 = vmatprep.subr.mxu0 0.0
      %1310 = vmatpush1.msra.mxu0 0.0
      %1311 = vmatprep.subr.mxu0 0.0
      %1312 = vmatpush1.msra.mxu0 0.0
      %1313 = vmatprep.subr.mxu0 0.0
      %1314 = vmatpush1.msra.mxu0 0.0
      %1315 = vmatprep.subr.mxu0 0.0
      %1316 = vmatpush1.msra.mxu0 0.0
      %1317 = vmatprep.subr.mxu0 0.0
      %1318 = vmatpush1.msra.mxu0 0.0
      %1319 = vmatprep.subr.mxu0 0.0
      %1320 = vmatpush1.msra.mxu0 0.0
      %1321 = vmatprep.subr.mxu0 0.0
      %1322 = vmatpush1.msra.mxu0 0.0
      %1323 = vmatprep.subr.mxu0 0.0
      %1324 = vmatpush1.msra.mxu0 0.0
      %1325 = vmatprep.subr.mxu0 0.0
      %1326 = vmatpush1.msra.mxu0 0.0
      %1327 = vmatprep.subr.mxu0 0.0
      %1328 = vmatpush1.msra.mxu0 0.0
      %1329 = vmatprep.subr.mxu0 0.0
      %1330 = vmatpush1.msra.mxu0 0.0
      %1331 = vmatprep.mubr.f32.mxu0 0.0
      %1332 = vmatmul.mubr.f32.gmra.mrb[0].mxu0 %v1167
      %v1333 = vpop.f32.mrb[0].mxu0
      %v1334 = vadd.f32 0.0, %v1333
      %v1335 = vpop.f32.mrb[0].mxu0
      %1336 = vmatprep.mubr.f32.mxu0 0.0
      %1337 = vmatmul.mubr.f32.gmra.mrb[0].mxu0 %v1170
      %v1338 = vpop.f32.mrb[0].mxu0
      %v1339 = vadd.f32 0.0, %v1338
      %v1340 = vpop.f32.mrb[0].mxu0
      %1341 = vmatprep.mubr.f32.mxu0 0.0
      %1342 = vmatmul.mubr.f32.gmra.mrb[0].mxu0 %v1173
      %v1343 = vpop.f32.mrb[0].mxu0
      %v1344 = vadd.f32 0.0, %v1343
      %v1345 = vpop.f32.mrb[0].mxu0
      %1346 = vmatprep.mubr.f32.mxu0 0.0
      %1347 = vmatmul.mubr.f32.gmra.mrb[0].mxu0 %v1176
      %v1348 = vpop.f32.mrb[0].mxu0
      %v1349 = vadd.f32 0.0, %v1348
      %v1350 = vpop.f32.mrb[0].mxu0
      %1351 = vdwg.mxu0
      %v1352 = vadd.f32 %v1010, %v1245
      %v1353 = vadd.f32 %v1012, %v1247
      %v1354 = vadd.f32 %v1099, %v1334
      %v1355 = vadd.f32 %v1016, %v1251
      %v1356 = vadd.f32 %v1018, %v1253
      %v1357 = vadd.f32 %v1104, %v1339
      %v1358 = vadd.f32 %v1022, %v1257
      %v1359 = vadd.f32 %v1024, %v1259
      %v1360 = vadd.f32 %v1109, %v1344
      %v1361 = vadd.f32 %v1028, %v1263
      %v1362 = vadd.f32 %v1030, %v1265
      %v1363 = vadd.f32 %v1114, %v1349
      %v1364 = vmul.f32 %v545, %v663
      %v1365 = vmul.f32 %v550, %v664
      %v1366 = vmul.f32 %v555, %v665
      %v1367 = vmul.f32 %v560, %v666
      %1368 = vrot.lane.b32.xlu0 %v671, 110
      %v1369 = vpop.permute.xlu0 %1368
      %1370 = vrot.lane.b32.xlu0 %v672, 110
      %v1371 = vpop.permute.xlu0 %1370
      %1372 = vrot.lane.b32.xlu0 %v673, 110
      %v1373 = vpop.permute.xlu0 %1372
      %1374 = vrot.lane.b32.xlu0 %v674, 110
      %v1375 = vpop.permute.xlu0 %1374
      %1376 = vrot.lane.b32.xlu0 %v675, 110
      %v1377 = vpop.permute.xlu0 %1376
      %1378 = vrot.lane.b32.xlu0 %v676, 110
      %v1379 = vpop.permute.xlu0 %1378
      %1380 = vrot.lane.b32.xlu0 %v677, 110
      %v1381 = vpop.permute.xlu0 %1380
      %1382 = vrot.lane.b32.xlu0 %v678, 110
      %v1383 = vpop.permute.xlu0 %1382
      %1384 = vrot.lane.b32.xlu0 %v679, 110
      %v1385 = vpop.permute.xlu0 %1384
      %1386 = vrot.lane.b32.xlu0 %v680, 110
      %v1387 = vpop.permute.xlu0 %1386
      %1388 = vrot.lane.b32.xlu0 %v681, 110
      %v1389 = vpop.permute.xlu0 %1388
      %1390 = vrot.lane.b32.xlu0 %v682, 110
      %v1391 = vpop.permute.xlu0 %1390
      %vm1392 = vcmask 900096
      %v1393 = vsel %vm1392, %v1369, %v1371
      %v1394 = vsel %vm1392, %v1371, %v1373
      %v1395 = vsel %vm1392, %v1375, %v1377
      %v1396 = vsel %vm1392, %v1377, %v1379
      %v1397 = vsel %vm1392, %v1381, %v1383
      %v1398 = vsel %vm1392, %v1383, %v1385
      %v1399 = vsel %vm1392, %v1387, %v1389
      %v1400 = vsel %vm1392, %v1389, %v1391
      %v1414 = vsel %vm744, %v1364, 0
      %v1417 = vsel %vm744, %v1365, 0
      %v1420 = vsel %vm744, %v1366, 0
      %v1423 = vsel %vm744, %v1367, 0
      %1425 = vmatprep.subr.mxu0 %v1394
      %1426 = vmatpush1.msra.mxu0 %v1393
      %1427 = vmatprep.subr.mxu0 %v1396
      %1428 = vmatpush1.msra.mxu0 %v1395
      %1429 = vmatprep.subr.mxu0 %v1398
      %1430 = vmatpush1.msra.mxu0 %v1397
      %1431 = vmatprep.subr.mxu0 %v1400
      %1432 = vmatpush1.msra.mxu0 %v1399
      %1433 = vmatprep.subr.mxu0 0.0
      %1434 = vmatpush1.msra.mxu0 0.0
      %1435 = vmatprep.subr.mxu0 0.0
      %1436 = vmatpush1.msra.mxu0 0.0
      %1437 = vmatprep.subr.mxu0 0.0
      %1438 = vmatpush1.msra.mxu0 0.0
      %1439 = vmatprep.subr.mxu0 0.0
      %1440 = vmatpush1.msra.mxu0 0.0
      %1441 = vmatprep.subr.mxu0 0.0
      %1442 = vmatpush1.msra.mxu0 0.0
      %1443 = vmatprep.subr.mxu0 0.0
      %1444 = vmatpush1.msra.mxu0 0.0
      %1445 = vmatprep.subr.mxu0 0.0
      %1446 = vmatpush1.msra.mxu0 0.0
      %1447 = vmatprep.subr.mxu0 0.0
      %1448 = vmatpush1.msra.mxu0 0.0
      %1449 = vmatprep.subr.mxu0 0.0
      %1450 = vmatpush1.msra.mxu0 0.0
      %1451 = vmatprep.subr.mxu0 0.0
      %1452 = vmatpush1.msra.mxu0 0.0
      %1453 = vmatprep.subr.mxu0 0.0
      %1454 = vmatpush1.msra.mxu0 0.0
      %1455 = vmatprep.subr.mxu0 0.0
      %1456 = vmatpush1.msra.mxu0 0.0
      %1457 = vmatprep.subr.mxu0 0.0
      %1458 = vmatpush1.msra.mxu0 0.0
      %1459 = vmatprep.subr.mxu0 0.0
      %1460 = vmatpush1.msra.mxu0 0.0
      %1461 = vmatprep.subr.mxu0 0.0
      %1462 = vmatpush1.msra.mxu0 0.0
      %1463 = vmatprep.subr.mxu0 0.0
      %1464 = vmatpush1.msra.mxu0 0.0
      %1465 = vmatprep.subr.mxu0 0.0
      %1466 = vmatpush1.msra.mxu0 0.0
      %1467 = vmatprep.subr.mxu0 0.0
      %1468 = vmatpush1.msra.mxu0 0.0
      %1469 = vmatprep.subr.mxu0 0.0
      %1470 = vmatpush1.msra.mxu0 0.0
      %1471 = vmatprep.subr.mxu0 0.0
      %1472 = vmatpush1.msra.mxu0 0.0
      %1473 = vmatprep.subr.mxu0 0.0
      %1474 = vmatpush1.msra.mxu0 0.0
      %1475 = vmatprep.subr.mxu0 0.0
      %1476 = vmatpush1.msra.mxu0 0.0
      %1477 = vmatprep.subr.mxu0 0.0
      %1478 = vmatpush1.msra.mxu0 0.0
      %1479 = vmatprep.subr.mxu0 0.0
      %1480 = vmatpush1.msra.mxu0 0.0
      %1481 = vmatprep.subr.mxu0 0.0
      %1482 = vmatpush1.msra.mxu0 0.0
      %1483 = vmatprep.subr.mxu0 0.0
      %1484 = vmatpush1.msra.mxu0 0.0
      %1485 = vmatprep.subr.mxu0 0.0
      %1486 = vmatpush1.msra.mxu0 0.0
      %1487 = vmatprep.subr.mxu0 0.0
      %1488 = vmatpush1.msra.mxu0 0.0
      %1489 = vmatprep.mubr.f32.mxu0 0.0
      %1490 = vmatmul.mubr.f32.gmra.mrb[0].mxu0 %v1414
      %v1491 = vpop.f32.mrb[0].mxu0
      %v1492 = vadd.f32 0.0, %v1491
      %v1493 = vpop.f32.mrb[0].mxu0
      %v1494 = vadd.f32 0.0, %v1493
      %1495 = vmatprep.mubr.f32.mxu0 0.0
      %1496 = vmatmul.mubr.f32.gmra.mrb[0].mxu0 %v1417
      %v1497 = vpop.f32.mrb[0].mxu0
      %v1498 = vadd.f32 0.0, %v1497
      %v1499 = vpop.f32.mrb[0].mxu0
      %v1500 = vadd.f32 0.0, %v1499
      %1501 = vmatprep.mubr.f32.mxu0 0.0
      %1502 = vmatmul.mubr.f32.gmra.mrb[0].mxu0 %v1420
      %v1503 = vpop.f32.mrb[0].mxu0
      %v1504 = vadd.f32 0.0, %v1503
      %v1505 = vpop.f32.mrb[0].mxu0
      %v1506 = vadd.f32 0.0, %v1505
      %1507 = vmatprep.mubr.f32.mxu0 0.0
      %1508 = vmatmul.mubr.f32.gmra.mrb[0].mxu0 %v1423
      %v1509 = vpop.f32.mrb[0].mxu0
      %v1510 = vadd.f32 0.0, %v1509
      %v1511 = vpop.f32.mrb[0].mxu0
      %v1512 = vadd.f32 0.0, %v1511
      %1513 = vdwg.mxu0
      %1514 = vmatprep.subr.mxu0 0.0
      %1515 = vmatpush1.msra.mxu0 %v1373
      %1516 = vmatprep.subr.mxu0 0.0
      %1517 = vmatpush1.msra.mxu0 %v1379
      %1518 = vmatprep.subr.mxu0 0.0
      %1519 = vmatpush1.msra.mxu0 %v1385
      %1520 = vmatprep.subr.mxu0 0.0
      %1521 = vmatpush1.msra.mxu0 %v1391
      %1522 = vmatprep.subr.mxu0 0.0
      %1523 = vmatpush1.msra.mxu0 0.0
      %1524 = vmatprep.subr.mxu0 0.0
      %1525 = vmatpush1.msra.mxu0 0.0
      %1526 = vmatprep.subr.mxu0 0.0
      %1527 = vmatpush1.msra.mxu0 0.0
      %1528 = vmatprep.subr.mxu0 0.0
      %1529 = vmatpush1.msra.mxu0 0.0
      %1530 = vmatprep.subr.mxu0 0.0
      %1531 = vmatpush1.msra.mxu0 0.0
      %1532 = vmatprep.subr.mxu0 0.0
      %1533 = vmatpush1.msra.mxu0 0.0
      %1534 = vmatprep.subr.mxu0 0.0
      %1535 = vmatpush1.msra.mxu0 0.0
      %1536 = vmatprep.subr.mxu0 0.0
      %1537 = vmatpush1.msra.mxu0 0.0
      %1538 = vmatprep.subr.mxu0 0.0
      %1539 = vmatpush1.msra.mxu0 0.0
      %1540 = vmatprep.subr.mxu0 0.0
      %1541 = vmatpush1.msra.mxu0 0.0
      %1542 = vmatprep.subr.mxu0 0.0
      %1543 = vmatpush1.msra.mxu0 0.0
      %1544 = vmatprep.subr.mxu0 0.0
      %1545 = vmatpush1.msra.mxu0 0.0
      %1546 = vmatprep.subr.mxu0 0.0
      %1547 = vmatpush1.msra.mxu0 0.0
      %1548 = vmatprep.subr.mxu0 0.0
      %1549 = vmatpush1.msra.mxu0 0.0
      %1550 = vmatprep.subr.mxu0 0.0
      %1551 = vmatpush1.msra.mxu0 0.0
      %1552 = vmatprep.subr.mxu0 0.0
      %1553 = vmatpush1.msra.mxu0 0.0
      %1554 = vmatprep.subr.mxu0 0.0
      %1555 = vmatpush1.msra.mxu0 0.0
      %1556 = vmatprep.subr.mxu0 0.0
      %1557 = vmatpush1.msra.mxu0 0.0
      %1558 = vmatprep.subr.mxu0 0.0
      %1559 = vmatpush1.msra.mxu0 0.0
      %1560 = vmatprep.subr.mxu0 0.0
      %1561 = vmatpush1.msra.mxu0 0.0
      %1562 = vmatprep.subr.mxu0 0.0
      %1563 = vmatpush1.msra.mxu0 0.0
      %1564 = vmatprep.subr.mxu0 0.0
      %1565 = vmatpush1.msra.mxu0 0.0
      %1566 = vmatprep.subr.mxu0 0.0
      %1567 = vmatpush1.msra.mxu0 0.0
      %1568 = vmatprep.subr.mxu0 0.0
      %1569 = vmatpush1.msra.mxu0 0.0
      %1570 = vmatprep.subr.mxu0 0.0
      %1571 = vmatpush1.msra.mxu0 0.0
      %1572 = vmatprep.subr.mxu0 0.0
      %1573 = vmatpush1.msra.mxu0 0.0
      %1574 = vmatprep.subr.mxu0 0.0
      %1575 = vmatpush1.msra.mxu0 0.0
      %1576 = vmatprep.subr.mxu0 0.0
      %1577 = vmatpush1.msra.mxu0 0.0
      %1578 = vmatprep.mubr.f32.mxu0 0.0
      %1579 = vmatmul.mubr.f32.gmra.mrb[0].mxu0 %v1414
      %v1580 = vpop.f32.mrb[0].mxu0
      %v1581 = vadd.f32 0.0, %v1580
      %v1582 = vpop.f32.mrb[0].mxu0
      %1583 = vmatprep.mubr.f32.mxu0 0.0
      %1584 = vmatmul.mubr.f32.gmra.mrb[0].mxu0 %v1417
      %v1585 = vpop.f32.mrb[0].mxu0
      %v1586 = vadd.f32 0.0, %v1585
      %v1587 = vpop.f32.mrb[0].mxu0
      %1588 = vmatprep.mubr.f32.mxu0 0.0
      %1589 = vmatmul.mubr.f32.gmra.mrb[0].mxu0 %v1420
      %v1590 = vpop.f32.mrb[0].mxu0
      %v1591 = vadd.f32 0.0, %v1590
      %v1592 = vpop.f32.mrb[0].mxu0
      %1593 = vmatprep.mubr.f32.mxu0 0.0
      %1594 = vmatmul.mubr.f32.gmra.mrb[0].mxu0 %v1423
      %v1595 = vpop.f32.mrb[0].mxu0
      %v1596 = vadd.f32 0.0, %v1595
      %v1597 = vpop.f32.mrb[0].mxu0
      %1598 = vdwg.mxu0
      %v1599 = vadd.f32 %v1352, %v1492
      %v1600 = vadd.f32 %v1353, %v1494
      %v1601 = vadd.f32 %v1354, %v1581
      %v1602 = vadd.f32 %v1355, %v1498
      %v1603 = vadd.f32 %v1356, %v1500
      %v1604 = vadd.f32 %v1357, %v1586
      %v1605 = vadd.f32 %v1358, %v1504
      %v1606 = vadd.f32 %v1359, %v1506
      %v1607 = vadd.f32 %v1360, %v1591
      %v1608 = vadd.f32 %v1361, %v1510
      %v1609 = vadd.f32 %v1362, %v1512
      %v1610 = vadd.f32 %v1363, %v1596
      %v1611 = vmul.f32 %v565, %v663
      %v1612 = vmul.f32 %v570, %v664
      %v1613 = vmul.f32 %v575, %v665
      %v1614 = vmul.f32 %v580, %v666
      %1615 = vrot.lane.b32.xlu0 %v671, 109
      %v1616 = vpop.permute.xlu0 %1615
      %1617 = vrot.lane.b32.xlu0 %v672, 109
      %v1618 = vpop.permute.xlu0 %1617
      %1619 = vrot.lane.b32.xlu0 %v673, 109
      %v1620 = vpop.permute.xlu0 %1619
      %1621 = vrot.lane.b32.xlu0 %v674, 109
      %v1622 = vpop.permute.xlu0 %1621
      %1623 = vrot.lane.b32.xlu0 %v675, 109
      %v1624 = vpop.permute.xlu0 %1623
      %1625 = vrot.lane.b32.xlu0 %v676, 109
      %v1626 = vpop.permute.xlu0 %1625
      %1627 = vrot.lane.b32.xlu0 %v677, 109
      %v1628 = vpop.permute.xlu0 %1627
      %1629 = vrot.lane.b32.xlu0 %v678, 109
      %v1630 = vpop.permute.xlu0 %1629
      %1631 = vrot.lane.b32.xlu0 %v679, 109
      %v1632 = vpop.permute.xlu0 %1631
      %1633 = vrot.lane.b32.xlu0 %v680, 109
      %v1634 = vpop.permute.xlu0 %1633
      %1635 = vrot.lane.b32.xlu0 %v681, 109
      %v1636 = vpop.permute.xlu0 %1635
      %1637 = vrot.lane.b32.xlu0 %v682, 109
      %v1638 = vpop.permute.xlu0 %1637
      %vm1639 = vcmask 891904
      %v1640 = vsel %vm1639, %v1616, %v1618
      %v1641 = vsel %vm1639, %v1618, %v1620
      %v1642 = vsel %vm1639, %v1622, %v1624
      %v1643 = vsel %vm1639, %v1624, %v1626
      %v1644 = vsel %vm1639, %v1628, %v1630
      %v1645 = vsel %vm1639, %v1630, %v1632
      %v1646 = vsel %vm1639, %v1634, %v1636
      %v1647 = vsel %vm1639, %v1636, %v1638
      %v1661 = vsel %vm744, %v1611, 0
      %v1664 = vsel %vm744, %v1612, 0
      %v1667 = vsel %vm744, %v1613, 0
      %v1670 = vsel %vm744, %v1614, 0
      %1672 = vmatprep.subr.mxu0 %v1641
      %1673 = vmatpush1.msra.mxu0 %v1640
      %1674 = vmatprep.subr.mxu0 %v1643
      %1675 = vmatpush1.msra.mxu0 %v1642
      %1676 = vmatprep.subr.mxu0 %v1645
      %1677 = vmatpush1.msra.mxu0 %v1644
      %1678 = vmatprep.subr.mxu0 %v1647
      %1679 = vmatpush1.msra.mxu0 %v1646
      %1680 = vmatprep.subr.mxu0 0.0
      %1681 = vmatpush1.msra.mxu0 0.0
      %1682 = vmatprep.subr.mxu0 0.0
      %1683 = vmatpush1.msra.mxu0 0.0
      %1684 = vmatprep.subr.mxu0 0.0
      %1685 = vmatpush1.msra.mxu0 0.0
      %1686 = vmatprep.subr.mxu0 0.0
      %1687 = vmatpush1.msra.mxu0 0.0
      %1688 = vmatprep.subr.mxu0 0.0
      %1689 = vmatpush1.msra.mxu0 0.0
      %1690 = vmatprep.subr.mxu0 0.0
      %1691 = vmatpush1.msra.mxu0 0.0
      %1692 = vmatprep.subr.mxu0 0.0
      %1693 = vmatpush1.msra.mxu0 0.0
      %1694 = vmatprep.subr.mxu0 0.0
      %1695 = vmatpush1.msra.mxu0 0.0
      %1696 = vmatprep.subr.mxu0 0.0
      %1697 = vmatpush1.msra.mxu0 0.0
      %1698 = vmatprep.subr.mxu0 0.0
      %1699 = vmatpush1.msra.mxu0 0.0
      %1700 = vmatprep.subr.mxu0 0.0
      %1701 = vmatpush1.msra.mxu0 0.0
      %1702 = vmatprep.subr.mxu0 0.0
      %1703 = vmatpush1.msra.mxu0 0.0
      %1704 = vmatprep.subr.mxu0 0.0
      %1705 = vmatpush1.msra.mxu0 0.0
      %1706 = vmatprep.subr.mxu0 0.0
      %1707 = vmatpush1.msra.mxu0 0.0
      %1708 = vmatprep.subr.mxu0 0.0
      %1709 = vmatpush1.msra.mxu0 0.0
      %1710 = vmatprep.subr.mxu0 0.0
      %1711 = vmatpush1.msra.mxu0 0.0
      %1712 = vmatprep.subr.mxu0 0.0
      %1713 = vmatpush1.msra.mxu0 0.0
      %1714 = vmatprep.subr.mxu0 0.0
      %1715 = vmatpush1.msra.mxu0 0.0
      %1716 = vmatprep.subr.mxu0 0.0
      %1717 = vmatpush1.msra.mxu0 0.0
      %1718 = vmatprep.subr.mxu0 0.0
      %1719 = vmatpush1.msra.mxu0 0.0
      %1720 = vmatprep.subr.mxu0 0.0
      %1721 = vmatpush1.msra.mxu0 0.0
      %1722 = vmatprep.subr.mxu0 0.0
      %1723 = vmatpush1.msra.mxu0 0.0
      %1724 = vmatprep.subr.mxu0 0.0
      %1725 = vmatpush1.msra.mxu0 0.0
      %1726 = vmatprep.subr.mxu0 0.0
      %1727 = vmatpush1.msra.mxu0 0.0
      %1728 = vmatprep.subr.mxu0 0.0
      %1729 = vmatpush1.msra.mxu0 0.0
      %1730 = vmatprep.subr.mxu0 0.0
      %1731 = vmatpush1.msra.mxu0 0.0
      %1732 = vmatprep.subr.mxu0 0.0
      %1733 = vmatpush1.msra.mxu0 0.0
      %1734 = vmatprep.subr.mxu0 0.0
      %1735 = vmatpush1.msra.mxu0 0.0
      %1736 = vmatprep.mubr.f32.mxu0 0.0
      %1737 = vmatmul.mubr.f32.gmra.mrb[0].mxu0 %v1661
      %v1738 = vpop.f32.mrb[0].mxu0
      %v1739 = vadd.f32 0.0, %v1738
      %v1740 = vpop.f32.mrb[0].mxu0
      %v1741 = vadd.f32 0.0, %v1740
      %1742 = vmatprep.mubr.f32.mxu0 0.0
      %1743 = vmatmul.mubr.f32.gmra.mrb[0].mxu0 %v1664
      %v1744 = vpop.f32.mrb[0].mxu0
      %v1745 = vadd.f32 0.0, %v1744
      %v1746 = vpop.f32.mrb[0].mxu0
      %v1747 = vadd.f32 0.0, %v1746
      %1748 = vmatprep.mubr.f32.mxu0 0.0
      %1749 = vmatmul.mubr.f32.gmra.mrb[0].mxu0 %v1667
      %v1750 = vpop.f32.mrb[0].mxu0
      %v1751 = vadd.f32 0.0, %v1750
      %v1752 = vpop.f32.mrb[0].mxu0
      %v1753 = vadd.f32 0.0, %v1752
      %1754 = vmatprep.mubr.f32.mxu0 0.0
      %1755 = vmatmul.mubr.f32.gmra.mrb[0].mxu0 %v1670
      %v1756 = vpop.f32.mrb[0].mxu0
      %v1757 = vadd.f32 0.0, %v1756
      %v1758 = vpop.f32.mrb[0].mxu0
      %v1759 = vadd.f32 0.0, %v1758
      %1760 = vdwg.mxu0
      %1761 = vmatprep.subr.mxu0 0.0
      %1762 = vmatpush1.msra.mxu0 %v1620
      %1763 = vmatprep.subr.mxu0 0.0
      %1764 = vmatpush1.msra.mxu0 %v1626
      %1765 = vmatprep.subr.mxu0 0.0
      %1766 = vmatpush1.msra.mxu0 %v1632
      %1767 = vmatprep.subr.mxu0 0.0
      %1768 = vmatpush1.msra.mxu0 %v1638
      %1769 = vmatprep.subr.mxu0 0.0
      %1770 = vmatpush1.msra.mxu0 0.0
      %1771 = vmatprep.subr.mxu0 0.0
      %1772 = vmatpush1.msra.mxu0 0.0
      %1773 = vmatprep.subr.mxu0 0.0
      %1774 = vmatpush1.msra.mxu0 0.0
      %1775 = vmatprep.subr.mxu0 0.0
      %1776 = vmatpush1.msra.mxu0 0.0
      %1777 = vmatprep.subr.mxu0 0.0
      %1778 = vmatpush1.msra.mxu0 0.0
      %1779 = vmatprep.subr.mxu0 0.0
      %1780 = vmatpush1.msra.mxu0 0.0
      %1781 = vmatprep.subr.mxu0 0.0
      %1782 = vmatpush1.msra.mxu0 0.0
      %1783 = vmatprep.subr.mxu0 0.0
      %1784 = vmatpush1.msra.mxu0 0.0
      %1785 = vmatprep.subr.mxu0 0.0
      %1786 = vmatpush1.msra.mxu0 0.0
      %1787 = vmatprep.subr.mxu0 0.0
      %1788 = vmatpush1.msra.mxu0 0.0
      %1789 = vmatprep.subr.mxu0 0.0
      %1790 = vmatpush1.msra.mxu0 0.0
      %1791 = vmatprep.subr.mxu0 0.0
      %1792 = vmatpush1.msra.mxu0 0.0
      %1793 = vmatprep.subr.mxu0 0.0
      %1794 = vmatpush1.msra.mxu0 0.0
      %1795 = vmatprep.subr.mxu0 0.0
      %1796 = vmatpush1.msra.mxu0 0.0
      %1797 = vmatprep.subr.mxu0 0.0
      %1798 = vmatpush1.msra.mxu0 0.0
      %1799 = vmatprep.subr.mxu0 0.0
      %1800 = vmatpush1.msra.mxu0 0.0
      %1801 = vmatprep.subr.mxu0 0.0
      %1802 = vmatpush1.msra.mxu0 0.0
      %1803 = vmatprep.subr.mxu0 0.0
      %1804 = vmatpush1.msra.mxu0 0.0
      %1805 = vmatprep.subr.mxu0 0.0
      %1806 = vmatpush1.msra.mxu0 0.0
      %1807 = vmatprep.subr.mxu0 0.0
      %1808 = vmatpush1.msra.mxu0 0.0
      %1809 = vmatprep.subr.mxu0 0.0
      %1810 = vmatpush1.msra.mxu0 0.0
      %1811 = vmatprep.subr.mxu0 0.0
      %1812 = vmatpush1.msra.mxu0 0.0
      %1813 = vmatprep.subr.mxu0 0.0
      %1814 = vmatpush1.msra.mxu0 0.0
      %1815 = vmatprep.subr.mxu0 0.0
      %1816 = vmatpush1.msra.mxu0 0.0
      %1817 = vmatprep.subr.mxu0 0.0
      %1818 = vmatpush1.msra.mxu0 0.0
      %1819 = vmatprep.subr.mxu0 0.0
      %1820 = vmatpush1.msra.mxu0 0.0
      %1821 = vmatprep.subr.mxu0 0.0
      %1822 = vmatpush1.msra.mxu0 0.0
      %1823 = vmatprep.subr.mxu0 0.0
      %1824 = vmatpush1.msra.mxu0 0.0
      %1825 = vmatprep.mubr.f32.mxu0 0.0
      %1826 = vmatmul.mubr.f32.gmra.mrb[0].mxu0 %v1661
      %v1827 = vpop.f32.mrb[0].mxu0
      %v1828 = vadd.f32 0.0, %v1827
      %v1829 = vpop.f32.mrb[0].mxu0
      %1830 = vmatprep.mubr.f32.mxu0 0.0
      %1831 = vmatmul.mubr.f32.gmra.mrb[0].mxu0 %v1664
      %v1832 = vpop.f32.mrb[0].mxu0
      %v1833 = vadd.f32 0.0, %v1832
      %v1834 = vpop.f32.mrb[0].mxu0
      %1835 = vmatprep.mubr.f32.mxu0 0.0
      %1836 = vmatmul.mubr.f32.gmra.mrb[0].mxu0 %v1667
      %v1837 = vpop.f32.mrb[0].mxu0
      %v1838 = vadd.f32 0.0, %v1837
      %v1839 = vpop.f32.mrb[0].mxu0
      %1840 = vmatprep.mubr.f32.mxu0 0.0
      %1841 = vmatmul.mubr.f32.gmra.mrb[0].mxu0 %v1670
      %v1842 = vpop.f32.mrb[0].mxu0
      %v1843 = vadd.f32 0.0, %v1842
      %v1844 = vpop.f32.mrb[0].mxu0
      %1845 = vdwg.mxu0
      %v1846 = vadd.f32 %v1599, %v1739
      %v1847 = vadd.f32 %v1600, %v1741
      %v1848 = vadd.f32 %v1601, %v1828
      %v1849 = vadd.f32 %v1602, %v1745
      %v1850 = vadd.f32 %v1603, %v1747
      %v1851 = vadd.f32 %v1604, %v1833
      %v1852 = vadd.f32 %v1605, %v1751
      %v1853 = vadd.f32 %v1606, %v1753
      %v1854 = vadd.f32 %v1607, %v1838
      %v1855 = vadd.f32 %v1608, %v1757
      %v1856 = vadd.f32 %v1609, %v1759
      %v1857 = vadd.f32 %v1610, %v1843
      %v1858 = vmul.f32 %v585, %v663
      %v1859 = vmul.f32 %v590, %v664
      %v1860 = vmul.f32 %v595, %v665
      %v1861 = vmul.f32 %v600, %v666
      %1862 = vrot.lane.b32.xlu0 %v671, 108
      %v1863 = vpop.permute.xlu0 %1862
      %1864 = vrot.lane.b32.xlu0 %v672, 108
      %v1865 = vpop.permute.xlu0 %1864
      %1866 = vrot.lane.b32.xlu0 %v673, 108
      %v1867 = vpop.permute.xlu0 %1866
      %1868 = vrot.lane.b32.xlu0 %v674, 108
      %v1869 = vpop.permute.xlu0 %1868
      %1870 = vrot.lane.b32.xlu0 %v675, 108
      %v1871 = vpop.permute.xlu0 %1870
      %1872 = vrot.lane.b32.xlu0 %v676, 108
      %v1873 = vpop.permute.xlu0 %1872
      %1874 = vrot.lane.b32.xlu0 %v677, 108
      %v1875 = vpop.permute.xlu0 %1874
      %1876 = vrot.lane.b32.xlu0 %v678, 108
      %v1877 = vpop.permute.xlu0 %1876
      %1878 = vrot.lane.b32.xlu0 %v679, 108
      %v1879 = vpop.permute.xlu0 %1878
      %1880 = vrot.lane.b32.xlu0 %v680, 108
      %v1881 = vpop.permute.xlu0 %1880
      %1882 = vrot.lane.b32.xlu0 %v681, 108
      %v1883 = vpop.permute.xlu0 %1882
      %1884 = vrot.lane.b32.xlu0 %v682, 108
      %v1885 = vpop.permute.xlu0 %1884
      %vm1886 = vcmask 883712
      %v1887 = vsel %vm1886, %v1863, %v1865
      %v1888 = vsel %vm1886, %v1865, %v1867
      %v1889 = vsel %vm1886, %v1869, %v1871
      %v1890 = vsel %vm1886, %v1871, %v1873
      %v1891 = vsel %vm1886, %v1875, %v1877
      %v1892 = vsel %vm1886, %v1877, %v1879
      %v1893 = vsel %vm1886, %v1881, %v1883
      %v1894 = vsel %vm1886, %v1883, %v1885
      %v1908 = vsel %vm744, %v1858, 0
      %v1911 = vsel %vm744, %v1859, 0
      %v1914 = vsel %vm744, %v1860, 0
      %v1917 = vsel %vm744, %v1861, 0
      %1919 = vmatprep.subr.mxu0 %v1888
      %1920 = vmatpush1.msra.mxu0 %v1887
      %1921 = vmatprep.subr.mxu0 %v1890
      %1922 = vmatpush1.msra.mxu0 %v1889
      %1923 = vmatprep.subr.mxu0 %v1892
      %1924 = vmatpush1.msra.mxu0 %v1891
      %1925 = vmatprep.subr.mxu0 %v1894
      %1926 = vmatpush1.msra.mxu0 %v1893
      %1927 = vmatprep.subr.mxu0 0.0
      %1928 = vmatpush1.msra.mxu0 0.0
      %1929 = vmatprep.subr.mxu0 0.0
      %1930 = vmatpush1.msra.mxu0 0.0
      %1931 = vmatprep.subr.mxu0 0.0
      %1932 = vmatpush1.msra.mxu0 0.0
      %1933 = vmatprep.subr.mxu0 0.0
      %1934 = vmatpush1.msra.mxu0 0.0
      %1935 = vmatprep.subr.mxu0 0.0
      %1936 = vmatpush1.msra.mxu0 0.0
      %1937 = vmatprep.subr.mxu0 0.0
      %1938 = vmatpush1.msra.mxu0 0.0
      %1939 = vmatprep.subr.mxu0 0.0
      %1940 = vmatpush1.msra.mxu0 0.0
      %1941 = vmatprep.subr.mxu0 0.0
      %1942 = vmatpush1.msra.mxu0 0.0
      %1943 = vmatprep.subr.mxu0 0.0
      %1944 = vmatpush1.msra.mxu0 0.0
      %1945 = vmatprep.subr.mxu0 0.0
      %1946 = vmatpush1.msra.mxu0 0.0
      %1947 = vmatprep.subr.mxu0 0.0
      %1948 = vmatpush1.msra.mxu0 0.0
      %1949 = vmatprep.subr.mxu0 0.0
      %1950 = vmatpush1.msra.mxu0 0.0
      %1951 = vmatprep.subr.mxu0 0.0
      %1952 = vmatpush1.msra.mxu0 0.0
      %1953 = vmatprep.subr.mxu0 0.0
      %1954 = vmatpush1.msra.mxu0 0.0
      %1955 = vmatprep.subr.mxu0 0.0
      %1956 = vmatpush1.msra.mxu0 0.0
      %1957 = vmatprep.subr.mxu0 0.0
      %1958 = vmatpush1.msra.mxu0 0.0
      %1959 = vmatprep.subr.mxu0 0.0
      %1960 = vmatpush1.msra.mxu0 0.0
      %1961 = vmatprep.subr.mxu0 0.0
      %1962 = vmatpush1.msra.mxu0 0.0
      %1963 = vmatprep.subr.mxu0 0.0
      %1964 = vmatpush1.msra.mxu0 0.0
      %1965 = vmatprep.subr.mxu0 0.0
      %1966 = vmatpush1.msra.mxu0 0.0
      %1967 = vmatprep.subr.mxu0 0.0
      %1968 = vmatpush1.msra.mxu0 0.0
      %1969 = vmatprep.subr.mxu0 0.0
      %1970 = vmatpush1.msra.mxu0 0.0
      %1971 = vmatprep.subr.mxu0 0.0
      %1972 = vmatpush1.msra.mxu0 0.0
      %1973 = vmatprep.subr.mxu0 0.0
      %1974 = vmatpush1.msra.mxu0 0.0
      %1975 = vmatprep.subr.mxu0 0.0
      %1976 = vmatpush1.msra.mxu0 0.0
      %1977 = vmatprep.subr.mxu0 0.0
      %1978 = vmatpush1.msra.mxu0 0.0
      %1979 = vmatprep.subr.mxu0 0.0
      %1980 = vmatpush1.msra.mxu0 0.0
      %1981 = vmatprep.subr.mxu0 0.0
      %1982 = vmatpush1.msra.mxu0 0.0
      %1983 = vmatprep.mubr.f32.mxu0 0.0
      %1984 = vmatmul.mubr.f32.gmra.mrb[0].mxu0 %v1908
      %v1985 = vpop.f32.mrb[0].mxu0
      %v1986 = vadd.f32 0.0, %v1985
      %v1987 = vpop.f32.mrb[0].mxu0
      %v1988 = vadd.f32 0.0, %v1987
      %1989 = vmatprep.mubr.f32.mxu0 0.0
      %1990 = vmatmul.mubr.f32.gmra.mrb[0].mxu0 %v1911
      %v1991 = vpop.f32.mrb[0].mxu0
      %v1992 = vadd.f32 0.0, %v1991
      %v1993 = vpop.f32.mrb[0].mxu0
      %v1994 = vadd.f32 0.0, %v1993
      %1995 = vmatprep.mubr.f32.mxu0 0.0
      %1996 = vmatmul.mubr.f32.gmra.mrb[0].mxu0 %v1914
      %v1997 = vpop.f32.mrb[0].mxu0
      %v1998 = vadd.f32 0.0, %v1997
      %v1999 = vpop.f32.mrb[0].mxu0
      %v2000 = vadd.f32 0.0, %v1999
      %2001 = vmatprep.mubr.f32.mxu0 0.0
      %2002 = vmatmul.mubr.f32.gmra.mrb[0].mxu0 %v1917
      %v2003 = vpop.f32.mrb[0].mxu0
      %v2004 = vadd.f32 0.0, %v2003
      %v2005 = vpop.f32.mrb[0].mxu0
      %v2006 = vadd.f32 0.0, %v2005
      %2007 = vdwg.mxu0
      %2008 = vmatprep.subr.mxu0 0.0
      %2009 = vmatpush1.msra.mxu0 %v1867
      %2010 = vmatprep.subr.mxu0 0.0
      %2011 = vmatpush1.msra.mxu0 %v1873
      %2012 = vmatprep.subr.mxu0 0.0
      %2013 = vmatpush1.msra.mxu0 %v1879
      %2014 = vmatprep.subr.mxu0 0.0
      %2015 = vmatpush1.msra.mxu0 %v1885
      %2016 = vmatprep.subr.mxu0 0.0
      %2017 = vmatpush1.msra.mxu0 0.0
      %2018 = vmatprep.subr.mxu0 0.0
      %2019 = vmatpush1.msra.mxu0 0.0
      %2020 = vmatprep.subr.mxu0 0.0
      %2021 = vmatpush1.msra.mxu0 0.0
      %2022 = vmatprep.subr.mxu0 0.0
      %2023 = vmatpush1.msra.mxu0 0.0
      %2024 = vmatprep.subr.mxu0 0.0
      %2025 = vmatpush1.msra.mxu0 0.0
      %2026 = vmatprep.subr.mxu0 0.0
      %2027 = vmatpush1.msra.mxu0 0.0
      %2028 = vmatprep.subr.mxu0 0.0
      %2029 = vmatpush1.msra.mxu0 0.0
      %2030 = vmatprep.subr.mxu0 0.0
      %2031 = vmatpush1.msra.mxu0 0.0
      %2032 = vmatprep.subr.mxu0 0.0
      %2033 = vmatpush1.msra.mxu0 0.0
      %2034 = vmatprep.subr.mxu0 0.0
      %2035 = vmatpush1.msra.mxu0 0.0
      %2036 = vmatprep.subr.mxu0 0.0
      %2037 = vmatpush1.msra.mxu0 0.0
      %2038 = vmatprep.subr.mxu0 0.0
      %2039 = vmatpush1.msra.mxu0 0.0
      %2040 = vmatprep.subr.mxu0 0.0
      %2041 = vmatpush1.msra.mxu0 0.0
      %2042 = vmatprep.subr.mxu0 0.0
      %2043 = vmatpush1.msra.mxu0 0.0
      %2044 = vmatprep.subr.mxu0 0.0
      %2045 = vmatpush1.msra.mxu0 0.0
      %2046 = vmatprep.subr.mxu0 0.0
      %2047 = vmatpush1.msra.mxu0 0.0
      %2048 = vmatprep.subr.mxu0 0.0
      %2049 = vmatpush1.msra.mxu0 0.0
      %2050 = vmatprep.subr.mxu0 0.0
      %2051 = vmatpush1.msra.mxu0 0.0
      %2052 = vmatprep.subr.mxu0 0.0
      %2053 = vmatpush1.msra.mxu0 0.0
      %2054 = vmatprep.subr.mxu0 0.0
      %2055 = vmatpush1.msra.mxu0 0.0
      %2056 = vmatprep.subr.mxu0 0.0
      %2057 = vmatpush1.msra.mxu0 0.0
      %2058 = vmatprep.subr.mxu0 0.0
      %2059 = vmatpush1.msra.mxu0 0.0
      %2060 = vmatprep.subr.mxu0 0.0
      %2061 = vmatpush1.msra.mxu0 0.0
      %2062 = vmatprep.subr.mxu0 0.0
      %2063 = vmatpush1.msra.mxu0 0.0
      %2064 = vmatprep.subr.mxu0 0.0
      %2065 = vmatpush1.msra.mxu0 0.0
      %2066 = vmatprep.subr.mxu0 0.0
      %2067 = vmatpush1.msra.mxu0 0.0
      %2068 = vmatprep.subr.mxu0 0.0
      %2069 = vmatpush1.msra.mxu0 0.0
      %2070 = vmatprep.subr.mxu0 0.0
      %2071 = vmatpush1.msra.mxu0 0.0
      %2072 = vmatprep.mubr.f32.mxu0 0.0
      %2073 = vmatmul.mubr.f32.gmra.mrb[0].mxu0 %v1908
      %v2074 = vpop.f32.mrb[0].mxu0
      %v2075 = vadd.f32 0.0, %v2074
      %v2076 = vpop.f32.mrb[0].mxu0
      %2077 = vmatprep.mubr.f32.mxu0 0.0
      %2078 = vmatmul.mubr.f32.gmra.mrb[0].mxu0 %v1911
      %v2079 = vpop.f32.mrb[0].mxu0
      %v2080 = vadd.f32 0.0, %v2079
      %v2081 = vpop.f32.mrb[0].mxu0
      %2082 = vmatprep.mubr.f32.mxu0 0.0
      %2083 = vmatmul.mubr.f32.gmra.mrb[0].mxu0 %v1914
      %v2084 = vpop.f32.mrb[0].mxu0
      %v2085 = vadd.f32 0.0, %v2084
      %v2086 = vpop.f32.mrb[0].mxu0
      %2087 = vmatprep.mubr.f32.mxu0 0.0
      %2088 = vmatmul.mubr.f32.gmra.mrb[0].mxu0 %v1917
      %v2089 = vpop.f32.mrb[0].mxu0
      %v2090 = vadd.f32 0.0, %v2089
      %v2091 = vpop.f32.mrb[0].mxu0
      %2092 = vdwg.mxu0
      %v2093 = vadd.f32 %v1846, %v1986
      %v2094 = vadd.f32 %v1847, %v1988
      %v2095 = vadd.f32 %v1848, %v2075
      %v2096 = vadd.f32 %v1849, %v1992
      %v2097 = vadd.f32 %v1850, %v1994
      %v2098 = vadd.f32 %v1851, %v2080
      %v2099 = vadd.f32 %v1852, %v1998
      %v2100 = vadd.f32 %v1853, %v2000
      %v2101 = vadd.f32 %v1854, %v2085
      %v2102 = vadd.f32 %v1855, %v2004
      %v2103 = vadd.f32 %v1856, %v2006
      %v2104 = vadd.f32 %v1857, %v2090
      %v2105 = vmul.f32 %v605, %v663
      %v2106 = vmul.f32 %v610, %v664
      %v2107 = vmul.f32 %v615, %v665
      %v2108 = vmul.f32 %v620, %v666
      %2109 = vrot.lane.b32.xlu0 %v671, 92
      %v2110 = vpop.permute.xlu0 %2109
      %2111 = vrot.lane.b32.xlu0 %v672, 92
      %v2112 = vpop.permute.xlu0 %2111
      %2113 = vrot.lane.b32.xlu0 %v673, 92
      %v2114 = vpop.permute.xlu0 %2113
      %2115 = vrot.lane.b32.xlu0 %v674, 92
      %v2116 = vpop.permute.xlu0 %2115
      %2117 = vrot.lane.b32.xlu0 %v675, 92
      %v2118 = vpop.permute.xlu0 %2117
      %2119 = vrot.lane.b32.xlu0 %v676, 92
      %v2120 = vpop.permute.xlu0 %2119
      %2121 = vrot.lane.b32.xlu0 %v677, 92
      %v2122 = vpop.permute.xlu0 %2121
      %2123 = vrot.lane.b32.xlu0 %v678, 92
      %v2124 = vpop.permute.xlu0 %2123
      %2125 = vrot.lane.b32.xlu0 %v679, 92
      %v2126 = vpop.permute.xlu0 %2125
      %2127 = vrot.lane.b32.xlu0 %v680, 92
      %v2128 = vpop.permute.xlu0 %2127
      %2129 = vrot.lane.b32.xlu0 %v681, 92
      %v2130 = vpop.permute.xlu0 %2129
      %2131 = vrot.lane.b32.xlu0 %v682, 92
      %v2132 = vpop.permute.xlu0 %2131
      %vm2133 = vcmask 752640
      %v2134 = vsel %vm2133, %v2110, %v2112
      %v2135 = vsel %vm2133, %v2112, %v2114
      %v2136 = vsel %vm2133, %v2116, %v2118
      %v2137 = vsel %vm2133, %v2118, %v2120
      %v2138 = vsel %vm2133, %v2122, %v2124
      %v2139 = vsel %vm2133, %v2124, %v2126
      %v2140 = vsel %vm2133, %v2128, %v2130
      %v2141 = vsel %vm2133, %v2130, %v2132
      %v2155 = vsel %vm744, %v2105, 0
      %v2158 = vsel %vm744, %v2106, 0
      %v2161 = vsel %vm744, %v2107, 0
      %v2164 = vsel %vm744, %v2108, 0
      %2166 = vmatprep.subr.mxu0 %v2135
      %2167 = vmatpush1.msra.mxu0 %v2134
      %2168 = vmatprep.subr.mxu0 %v2137
      %2169 = vmatpush1.msra.mxu0 %v2136
      %2170 = vmatprep.subr.mxu0 %v2139
      %2171 = vmatpush1.msra.mxu0 %v2138
      %2172 = vmatprep.subr.mxu0 %v2141
      %2173 = vmatpush1.msra.mxu0 %v2140
      %2174 = vmatprep.subr.mxu0 0.0
      %2175 = vmatpush1.msra.mxu0 0.0
      %2176 = vmatprep.subr.mxu0 0.0
      %2177 = vmatpush1.msra.mxu0 0.0
      %2178 = vmatprep.subr.mxu0 0.0
      %2179 = vmatpush1.msra.mxu0 0.0
      %2180 = vmatprep.subr.mxu0 0.0
      %2181 = vmatpush1.msra.mxu0 0.0
      %2182 = vmatprep.subr.mxu0 0.0
      %2183 = vmatpush1.msra.mxu0 0.0
      %2184 = vmatprep.subr.mxu0 0.0
      %2185 = vmatpush1.msra.mxu0 0.0
      %2186 = vmatprep.subr.mxu0 0.0
      %2187 = vmatpush1.msra.mxu0 0.0
      %2188 = vmatprep.subr.mxu0 0.0
      %2189 = vmatpush1.msra.mxu0 0.0
      %2190 = vmatprep.subr.mxu0 0.0
      %2191 = vmatpush1.msra.mxu0 0.0
      %2192 = vmatprep.subr.mxu0 0.0
      %2193 = vmatpush1.msra.mxu0 0.0
      %2194 = vmatprep.subr.mxu0 0.0
      %2195 = vmatpush1.msra.mxu0 0.0
      %2196 = vmatprep.subr.mxu0 0.0
      %2197 = vmatpush1.msra.mxu0 0.0
      %2198 = vmatprep.subr.mxu0 0.0
      %2199 = vmatpush1.msra.mxu0 0.0
      %2200 = vmatprep.subr.mxu0 0.0
      %2201 = vmatpush1.msra.mxu0 0.0
      %2202 = vmatprep.subr.mxu0 0.0
      %2203 = vmatpush1.msra.mxu0 0.0
      %2204 = vmatprep.subr.mxu0 0.0
      %2205 = vmatpush1.msra.mxu0 0.0
      %2206 = vmatprep.subr.mxu0 0.0
      %2207 = vmatpush1.msra.mxu0 0.0
      %2208 = vmatprep.subr.mxu0 0.0
      %2209 = vmatpush1.msra.mxu0 0.0
      %2210 = vmatprep.subr.mxu0 0.0
      %2211 = vmatpush1.msra.mxu0 0.0
      %2212 = vmatprep.subr.mxu0 0.0
      %2213 = vmatpush1.msra.mxu0 0.0
      %2214 = vmatprep.subr.mxu0 0.0
      %2215 = vmatpush1.msra.mxu0 0.0
      %2216 = vmatprep.subr.mxu0 0.0
      %2217 = vmatpush1.msra.mxu0 0.0
      %2218 = vmatprep.subr.mxu0 0.0
      %2219 = vmatpush1.msra.mxu0 0.0
      %2220 = vmatprep.subr.mxu0 0.0
      %2221 = vmatpush1.msra.mxu0 0.0
      %2222 = vmatprep.subr.mxu0 0.0
      %2223 = vmatpush1.msra.mxu0 0.0
      %2224 = vmatprep.subr.mxu0 0.0
      %2225 = vmatpush1.msra.mxu0 0.0
      %2226 = vmatprep.subr.mxu0 0.0
      %2227 = vmatpush1.msra.mxu0 0.0
      %2228 = vmatprep.subr.mxu0 0.0
      %2229 = vmatpush1.msra.mxu0 0.0
      %2230 = vmatprep.mubr.f32.mxu0 0.0
      %2231 = vmatmul.mubr.f32.gmra.mrb[0].mxu0 %v2155
      %v2232 = vpop.f32.mrb[0].mxu0
      %v2233 = vadd.f32 0.0, %v2232
      %v2234 = vpop.f32.mrb[0].mxu0
      %v2235 = vadd.f32 0.0, %v2234
      %2236 = vmatprep.mubr.f32.mxu0 0.0
      %2237 = vmatmul.mubr.f32.gmra.mrb[0].mxu0 %v2158
      %v2238 = vpop.f32.mrb[0].mxu0
      %v2239 = vadd.f32 0.0, %v2238
      %v2240 = vpop.f32.mrb[0].mxu0
      %v2241 = vadd.f32 0.0, %v2240
      %2242 = vmatprep.mubr.f32.mxu0 0.0
      %2243 = vmatmul.mubr.f32.gmra.mrb[0].mxu0 %v2161
      %v2244 = vpop.f32.mrb[0].mxu0
      %v2245 = vadd.f32 0.0, %v2244
      %v2246 = vpop.f32.mrb[0].mxu0
      %v2247 = vadd.f32 0.0, %v2246
      %2248 = vmatprep.mubr.f32.mxu0 0.0
      %2249 = vmatmul.mubr.f32.gmra.mrb[0].mxu0 %v2164
      %v2250 = vpop.f32.mrb[0].mxu0
      %v2251 = vadd.f32 0.0, %v2250
      %v2252 = vpop.f32.mrb[0].mxu0
      %v2253 = vadd.f32 0.0, %v2252
      %2254 = vdwg.mxu0
      %2255 = vmatprep.subr.mxu0 0.0
      %2256 = vmatpush1.msra.mxu0 %v2114
      %2257 = vmatprep.subr.mxu0 0.0
      %2258 = vmatpush1.msra.mxu0 %v2120
      %2259 = vmatprep.subr.mxu0 0.0
      %2260 = vmatpush1.msra.mxu0 %v2126
      %2261 = vmatprep.subr.mxu0 0.0
      %2262 = vmatpush1.msra.mxu0 %v2132
      %2263 = vmatprep.subr.mxu0 0.0
      %2264 = vmatpush1.msra.mxu0 0.0
      %2265 = vmatprep.subr.mxu0 0.0
      %2266 = vmatpush1.msra.mxu0 0.0
      %2267 = vmatprep.subr.mxu0 0.0
      %2268 = vmatpush1.msra.mxu0 0.0
      %2269 = vmatprep.subr.mxu0 0.0
      %2270 = vmatpush1.msra.mxu0 0.0
      %2271 = vmatprep.subr.mxu0 0.0
      %2272 = vmatpush1.msra.mxu0 0.0
      %2273 = vmatprep.subr.mxu0 0.0
      %2274 = vmatpush1.msra.mxu0 0.0
      %2275 = vmatprep.subr.mxu0 0.0
      %2276 = vmatpush1.msra.mxu0 0.0
      %2277 = vmatprep.subr.mxu0 0.0
      %2278 = vmatpush1.msra.mxu0 0.0
      %2279 = vmatprep.subr.mxu0 0.0
      %2280 = vmatpush1.msra.mxu0 0.0
      %2281 = vmatprep.subr.mxu0 0.0
      %2282 = vmatpush1.msra.mxu0 0.0
      %2283 = vmatprep.subr.mxu0 0.0
      %2284 = vmatpush1.msra.mxu0 0.0
      %2285 = vmatprep.subr.mxu0 0.0
      %2286 = vmatpush1.msra.mxu0 0.0
      %2287 = vmatprep.subr.mxu0 0.0
      %2288 = vmatpush1.msra.mxu0 0.0
      %2289 = vmatprep.subr.mxu0 0.0
      %2290 = vmatpush1.msra.mxu0 0.0
      %2291 = vmatprep.subr.mxu0 0.0
      %2292 = vmatpush1.msra.mxu0 0.0
      %2293 = vmatprep.subr.mxu0 0.0
      %2294 = vmatpush1.msra.mxu0 0.0
      %2295 = vmatprep.subr.mxu0 0.0
      %2296 = vmatpush1.msra.mxu0 0.0
      %2297 = vmatprep.subr.mxu0 0.0
      %2298 = vmatpush1.msra.mxu0 0.0
      %2299 = vmatprep.subr.mxu0 0.0
      %2300 = vmatpush1.msra.mxu0 0.0
      %2301 = vmatprep.subr.mxu0 0.0
      %2302 = vmatpush1.msra.mxu0 0.0
      %2303 = vmatprep.subr.mxu0 0.0
      %2304 = vmatpush1.msra.mxu0 0.0
      %2305 = vmatprep.subr.mxu0 0.0
      %2306 = vmatpush1.msra.mxu0 0.0
      %2307 = vmatprep.subr.mxu0 0.0
      %2308 = vmatpush1.msra.mxu0 0.0
      %2309 = vmatprep.subr.mxu0 0.0
      %2310 = vmatpush1.msra.mxu0 0.0
      %2311 = vmatprep.subr.mxu0 0.0
      %2312 = vmatpush1.msra.mxu0 0.0
      %2313 = vmatprep.subr.mxu0 0.0
      %2314 = vmatpush1.msra.mxu0 0.0
      %2315 = vmatprep.subr.mxu0 0.0
      %2316 = vmatpush1.msra.mxu0 0.0
      %2317 = vmatprep.subr.mxu0 0.0
      %2318 = vmatpush1.msra.mxu0 0.0
      %2319 = vmatprep.mubr.f32.mxu0 0.0
      %2320 = vmatmul.mubr.f32.gmra.mrb[0].mxu0 %v2155
      %v2321 = vpop.f32.mrb[0].mxu0
      %v2322 = vadd.f32 0.0, %v2321
      %v2323 = vpop.f32.mrb[0].mxu0
      %2324 = vmatprep.mubr.f32.mxu0 0.0
      %2325 = vmatmul.mubr.f32.gmra.mrb[0].mxu0 %v2158
      %v2326 = vpop.f32.mrb[0].mxu0
      %v2327 = vadd.f32 0.0, %v2326
      %v2328 = vpop.f32.mrb[0].mxu0
      %2329 = vmatprep.mubr.f32.mxu0 0.0
      %2330 = vmatmul.mubr.f32.gmra.mrb[0].mxu0 %v2161
      %v2331 = vpop.f32.mrb[0].mxu0
      %v2332 = vadd.f32 0.0, %v2331
      %v2333 = vpop.f32.mrb[0].mxu0
      %2334 = vmatprep.mubr.f32.mxu0 0.0
      %2335 = vmatmul.mubr.f32.gmra.mrb[0].mxu0 %v2164
      %v2336 = vpop.f32.mrb[0].mxu0
      %v2337 = vadd.f32 0.0, %v2336
      %v2338 = vpop.f32.mrb[0].mxu0
      %2339 = vdwg.mxu0
      %v2340 = vadd.f32 %v2093, %v2233
      %v2341 = vadd.f32 %v2094, %v2235
      %v2342 = vadd.f32 %v2095, %v2322
      %v2343 = vadd.f32 %v2096, %v2239
      %v2344 = vadd.f32 %v2097, %v2241
      %v2345 = vadd.f32 %v2098, %v2327
      %v2346 = vadd.f32 %v2099, %v2245
      %v2347 = vadd.f32 %v2100, %v2247
      %v2348 = vadd.f32 %v2101, %v2332
      %v2349 = vadd.f32 %v2102, %v2251
      %v2350 = vadd.f32 %v2103, %v2253
      %v2351 = vadd.f32 %v2104, %v2337
      %v2352 = vmul.f32 %v625, %v663
      %v2353 = vmul.f32 %v630, %v664
      %v2354 = vmul.f32 %v635, %v665
      %v2355 = vmul.f32 %v640, %v666
      %2356 = vrot.lane.b32.xlu0 %v671, 91
      %v2357 = vpop.permute.xlu0 %2356
      %2358 = vrot.lane.b32.xlu0 %v672, 91
      %v2359 = vpop.permute.xlu0 %2358
      %2360 = vrot.lane.b32.xlu0 %v673, 91
      %v2361 = vpop.permute.xlu0 %2360
      %2362 = vrot.lane.b32.xlu0 %v674, 91
      %v2363 = vpop.permute.xlu0 %2362
      %2364 = vrot.lane.b32.xlu0 %v675, 91
      %v2365 = vpop.permute.xlu0 %2364
      %2366 = vrot.lane.b32.xlu0 %v676, 91
      %v2367 = vpop.permute.xlu0 %2366
      %2368 = vrot.lane.b32.xlu0 %v677, 91
      %v2369 = vpop.permute.xlu0 %2368
      %2370 = vrot.lane.b32.xlu0 %v678, 91
      %v2371 = vpop.permute.xlu0 %2370
      %2372 = vrot.lane.b32.xlu0 %v679, 91
      %v2373 = vpop.permute.xlu0 %2372
      %2374 = vrot.lane.b32.xlu0 %v680, 91
      %v2375 = vpop.permute.xlu0 %2374
      %2376 = vrot.lane.b32.xlu0 %v681, 91
      %v2377 = vpop.permute.xlu0 %2376
      %2378 = vrot.lane.b32.xlu0 %v682, 91
      %v2379 = vpop.permute.xlu0 %2378
      %vm2380 = vcmask 744448
      %v2381 = vsel %vm2380, %v2357, %v2359
      %v2382 = vsel %vm2380, %v2359, %v2361
      %v2383 = vsel %vm2380, %v2363, %v2365
      %v2384 = vsel %vm2380, %v2365, %v2367
      %v2385 = vsel %vm2380, %v2369, %v2371
      %v2386 = vsel %vm2380, %v2371, %v2373
      %v2387 = vsel %vm2380, %v2375, %v2377
      %v2388 = vsel %vm2380, %v2377, %v2379
      %v2402 = vsel %vm744, %v2352, 0
      %v2405 = vsel %vm744, %v2353, 0
      %v2408 = vsel %vm744, %v2354, 0
      %v2411 = vsel %vm744, %v2355, 0
      %2413 = vmatprep.subr.mxu0 %v2382
      %2414 = vmatpush1.msra.mxu0 %v2381
      %2415 = vmatprep.subr.mxu0 %v2384
      %2416 = vmatpush1.msra.mxu0 %v2383
      %2417 = vmatprep.subr.mxu0 %v2386
      %2418 = vmatpush1.msra.mxu0 %v2385
      %2419 = vmatprep.subr.mxu0 %v2388
      %2420 = vmatpush1.msra.mxu0 %v2387
      %2421 = vmatprep.subr.mxu0 0.0
      %2422 = vmatpush1.msra.mxu0 0.0
      %2423 = vmatprep.subr.mxu0 0.0
      %2424 = vmatpush1.msra.mxu0 0.0
      %2425 = vmatprep.subr.mxu0 0.0
      %2426 = vmatpush1.msra.mxu0 0.0
      %2427 = vmatprep.subr.mxu0 0.0
      %2428 = vmatpush1.msra.mxu0 0.0
      %2429 = vmatprep.subr.mxu0 0.0
      %2430 = vmatpush1.msra.mxu0 0.0
      %2431 = vmatprep.subr.mxu0 0.0
      %2432 = vmatpush1.msra.mxu0 0.0
      %2433 = vmatprep.subr.mxu0 0.0
      %2434 = vmatpush1.msra.mxu0 0.0
      %2435 = vmatprep.subr.mxu0 0.0
      %2436 = vmatpush1.msra.mxu0 0.0
      %2437 = vmatprep.subr.mxu0 0.0
      %2438 = vmatpush1.msra.mxu0 0.0
      %2439 = vmatprep.subr.mxu0 0.0
      %2440 = vmatpush1.msra.mxu0 0.0
      %2441 = vmatprep.subr.mxu0 0.0
      %2442 = vmatpush1.msra.mxu0 0.0
      %2443 = vmatprep.subr.mxu0 0.0
      %2444 = vmatpush1.msra.mxu0 0.0
      %2445 = vmatprep.subr.mxu0 0.0
      %2446 = vmatpush1.msra.mxu0 0.0
      %2447 = vmatprep.subr.mxu0 0.0
      %2448 = vmatpush1.msra.mxu0 0.0
      %2449 = vmatprep.subr.mxu0 0.0
      %2450 = vmatpush1.msra.mxu0 0.0
      %2451 = vmatprep.subr.mxu0 0.0
      %2452 = vmatpush1.msra.mxu0 0.0
      %2453 = vmatprep.subr.mxu0 0.0
      %2454 = vmatpush1.msra.mxu0 0.0
      %2455 = vmatprep.subr.mxu0 0.0
      %2456 = vmatpush1.msra.mxu0 0.0
      %2457 = vmatprep.subr.mxu0 0.0
      %2458 = vmatpush1.msra.mxu0 0.0
      %2459 = vmatprep.subr.mxu0 0.0
      %2460 = vmatpush1.msra.mxu0 0.0
      %2461 = vmatprep.subr.mxu0 0.0
      %2462 = vmatpush1.msra.mxu0 0.0
      %2463 = vmatprep.subr.mxu0 0.0
      %2464 = vmatpush1.msra.mxu0 0.0
      %2465 = vmatprep.subr.mxu0 0.0
      %2466 = vmatpush1.msra.mxu0 0.0
      %2467 = vmatprep.subr.mxu0 0.0
      %2468 = vmatpush1.msra.mxu0 0.0
      %2469 = vmatprep.subr.mxu0 0.0
      %2470 = vmatpush1.msra.mxu0 0.0
      %2471 = vmatprep.subr.mxu0 0.0
      %2472 = vmatpush1.msra.mxu0 0.0
      %2473 = vmatprep.subr.mxu0 0.0
      %2474 = vmatpush1.msra.mxu0 0.0
      %2475 = vmatprep.subr.mxu0 0.0
      %2476 = vmatpush1.msra.mxu0 0.0
      %2477 = vmatprep.mubr.f32.mxu0 0.0
      %2478 = vmatmul.mubr.f32.gmra.mrb[0].mxu0 %v2402
      %v2479 = vpop.f32.mrb[0].mxu0
      %v2480 = vadd.f32 0.0, %v2479
      %v2481 = vpop.f32.mrb[0].mxu0
      %v2482 = vadd.f32 0.0, %v2481
      %2483 = vmatprep.mubr.f32.mxu0 0.0
      %2484 = vmatmul.mubr.f32.gmra.mrb[0].mxu0 %v2405
      %v2485 = vpop.f32.mrb[0].mxu0
      %v2486 = vadd.f32 0.0, %v2485
      %v2487 = vpop.f32.mrb[0].mxu0
      %v2488 = vadd.f32 0.0, %v2487
      %2489 = vmatprep.mubr.f32.mxu0 0.0
      %2490 = vmatmul.mubr.f32.gmra.mrb[0].mxu0 %v2408
      %v2491 = vpop.f32.mrb[0].mxu0
      %v2492 = vadd.f32 0.0, %v2491
      %v2493 = vpop.f32.mrb[0].mxu0
      %v2494 = vadd.f32 0.0, %v2493
      %2495 = vmatprep.mubr.f32.mxu0 0.0
      %2496 = vmatmul.mubr.f32.gmra.mrb[0].mxu0 %v2411
      %v2497 = vpop.f32.mrb[0].mxu0
      %v2498 = vadd.f32 0.0, %v2497
      %v2499 = vpop.f32.mrb[0].mxu0
      %v2500 = vadd.f32 0.0, %v2499
      %2501 = vdwg.mxu0
      %2502 = vmatprep.subr.mxu0 0.0
      %2503 = vmatpush1.msra.mxu0 %v2361
      %2504 = vmatprep.subr.mxu0 0.0
      %2505 = vmatpush1.msra.mxu0 %v2367
      %2506 = vmatprep.subr.mxu0 0.0
      %2507 = vmatpush1.msra.mxu0 %v2373
      %2508 = vmatprep.subr.mxu0 0.0
      %2509 = vmatpush1.msra.mxu0 %v2379
      %2510 = vmatprep.subr.mxu0 0.0
      %2511 = vmatpush1.msra.mxu0 0.0
      %2512 = vmatprep.subr.mxu0 0.0
      %2513 = vmatpush1.msra.mxu0 0.0
      %2514 = vmatprep.subr.mxu0 0.0
      %2515 = vmatpush1.msra.mxu0 0.0
      %2516 = vmatprep.subr.mxu0 0.0
      %2517 = vmatpush1.msra.mxu0 0.0
      %2518 = vmatprep.subr.mxu0 0.0
      %2519 = vmatpush1.msra.mxu0 0.0
      %2520 = vmatprep.subr.mxu0 0.0
      %2521 = vmatpush1.msra.mxu0 0.0
      %2522 = vmatprep.subr.mxu0 0.0
      %2523 = vmatpush1.msra.mxu0 0.0
      %2524 = vmatprep.subr.mxu0 0.0
      %2525 = vmatpush1.msra.mxu0 0.0
      %2526 = vmatprep.subr.mxu0 0.0
      %2527 = vmatpush1.msra.mxu0 0.0
      %2528 = vmatprep.subr.mxu0 0.0
      %2529 = vmatpush1.msra.mxu0 0.0
      %2530 = vmatprep.subr.mxu0 0.0
      %2531 = vmatpush1.msra.mxu0 0.0
      %2532 = vmatprep.subr.mxu0 0.0
      %2533 = vmatpush1.msra.mxu0 0.0
      %2534 = vmatprep.subr.mxu0 0.0
      %2535 = vmatpush1.msra.mxu0 0.0
      %2536 = vmatprep.subr.mxu0 0.0
      %2537 = vmatpush1.msra.mxu0 0.0
      %2538 = vmatprep.subr.mxu0 0.0
      %2539 = vmatpush1.msra.mxu0 0.0
      %2540 = vmatprep.subr.mxu0 0.0
      %2541 = vmatpush1.msra.mxu0 0.0
      %2542 = vmatprep.subr.mxu0 0.0
      %2543 = vmatpush1.msra.mxu0 0.0
      %2544 = vmatprep.subr.mxu0 0.0
      %2545 = vmatpush1.msra.mxu0 0.0
      %2546 = vmatprep.subr.mxu0 0.0
      %2547 = vmatpush1.msra.mxu0 0.0
      %2548 = vmatprep.subr.mxu0 0.0
      %2549 = vmatpush1.msra.mxu0 0.0
      %2550 = vmatprep.subr.mxu0 0.0
      %2551 = vmatpush1.msra.mxu0 0.0
      %2552 = vmatprep.subr.mxu0 0.0
      %2553 = vmatpush1.msra.mxu0 0.0
      %2554 = vmatprep.subr.mxu0 0.0
      %2555 = vmatpush1.msra.mxu0 0.0
      %2556 = vmatprep.subr.mxu0 0.0
      %2557 = vmatpush1.msra.mxu0 0.0
      %2558 = vmatprep.subr.mxu0 0.0
      %2559 = vmatpush1.msra.mxu0 0.0
      %2560 = vmatprep.subr.mxu0 0.0
      %2561 = vmatpush1.msra.mxu0 0.0
      %2562 = vmatprep.subr.mxu0 0.0
      %2563 = vmatpush1.msra.mxu0 0.0
      %2564 = vmatprep.subr.mxu0 0.0
      %2565 = vmatpush1.msra.mxu0 0.0
      %2566 = vmatprep.mubr.f32.mxu0 0.0
      %2567 = vmatmul.mubr.f32.gmra.mrb[0].mxu0 %v2402
      %v2568 = vpop.f32.mrb[0].mxu0
      %v2569 = vadd.f32 0.0, %v2568
      %v2570 = vpop.f32.mrb[0].mxu0
      %2571 = vmatprep.mubr.f32.mxu0 0.0
      %2572 = vmatmul.mubr.f32.gmra.mrb[0].mxu0 %v2405
      %v2573 = vpop.f32.mrb[0].mxu0
      %v2574 = vadd.f32 0.0, %v2573
      %v2575 = vpop.f32.mrb[0].mxu0
      %2576 = vmatprep.mubr.f32.mxu0 0.0
      %2577 = vmatmul.mubr.f32.gmra.mrb[0].mxu0 %v2408
      %v2578 = vpop.f32.mrb[0].mxu0
      %v2579 = vadd.f32 0.0, %v2578
      %v2580 = vpop.f32.mrb[0].mxu0
      %2581 = vmatprep.mubr.f32.mxu0 0.0
      %2582 = vmatmul.mubr.f32.gmra.mrb[0].mxu0 %v2411
      %v2583 = vpop.f32.mrb[0].mxu0
      %v2584 = vadd.f32 0.0, %v2583
      %v2585 = vpop.f32.mrb[0].mxu0
      %2586 = vdwg.mxu0
      %v2587 = vadd.f32 %v2340, %v2480
      %v2588 = vadd.f32 %v2341, %v2482
      %v2589 = vadd.f32 %v2342, %v2569
      %v2590 = vadd.f32 %v2343, %v2486
      %v2591 = vadd.f32 %v2344, %v2488
      %v2592 = vadd.f32 %v2345, %v2574
      %v2593 = vadd.f32 %v2346, %v2492
      %v2594 = vadd.f32 %v2347, %v2494
      %v2595 = vadd.f32 %v2348, %v2579
      %v2596 = vadd.f32 %v2349, %v2498
      %v2597 = vadd.f32 %v2350, %v2500
      %v2598 = vadd.f32 %v2351, %v2584
      %v2599 = vmul.f32 %v645, %v663
      %v2600 = vmul.f32 %v650, %v664
      %v2601 = vmul.f32 %v655, %v665
      %v2602 = vmul.f32 %v660, %v666
      %2603 = vrot.lane.b32.xlu0 %v671, 90
      %v2604 = vpop.permute.xlu0 %2603
      %2605 = vrot.lane.b32.xlu0 %v672, 90
      %v2606 = vpop.permute.xlu0 %2605
      %2607 = vrot.lane.b32.xlu0 %v673, 90
      %v2608 = vpop.permute.xlu0 %2607
      %2609 = vrot.lane.b32.xlu0 %v674, 90
      %v2610 = vpop.permute.xlu0 %2609
      %2611 = vrot.lane.b32.xlu0 %v675, 90
      %v2612 = vpop.permute.xlu0 %2611
      %2613 = vrot.lane.b32.xlu0 %v676, 90
      %v2614 = vpop.permute.xlu0 %2613
      %2615 = vrot.lane.b32.xlu0 %v677, 90
      %v2616 = vpop.permute.xlu0 %2615
      %2617 = vrot.lane.b32.xlu0 %v678, 90
      %v2618 = vpop.permute.xlu0 %2617
      %2619 = vrot.lane.b32.xlu0 %v679, 90
      %v2620 = vpop.permute.xlu0 %2619
      %2621 = vrot.lane.b32.xlu0 %v680, 90
      %v2622 = vpop.permute.xlu0 %2621
      %2623 = vrot.lane.b32.xlu0 %v681, 90
      %v2624 = vpop.permute.xlu0 %2623
      %2625 = vrot.lane.b32.xlu0 %v682, 90
      %v2626 = vpop.permute.xlu0 %2625
      %vm2627 = vcmask 736256
      %v2628 = vsel %vm2627, %v2604, %v2606
      %v2629 = vsel %vm2627, %v2606, %v2608
      %v2630 = vsel %vm2627, %v2610, %v2612
      %v2631 = vsel %vm2627, %v2612, %v2614
      %v2632 = vsel %vm2627, %v2616, %v2618
      %v2633 = vsel %vm2627, %v2618, %v2620
      %v2634 = vsel %vm2627, %v2622, %v2624
      %v2635 = vsel %vm2627, %v2624, %v2626
      %v2649 = vsel %vm744, %v2599, 0
      %v2652 = vsel %vm744, %v2600, 0
      %v2655 = vsel %vm744, %v2601, 0
      %v2658 = vsel %vm744, %v2602, 0
      %2660 = vmatprep.subr.mxu0 %v2629
      %2661 = vmatpush1.msra.mxu0 %v2628
      %2662 = vmatprep.subr.mxu0 %v2631
      %2663 = vmatpush1.msra.mxu0 %v2630
      %2664 = vmatprep.subr.mxu0 %v2633
      %2665 = vmatpush1.msra.mxu0 %v2632
      %2666 = vmatprep.subr.mxu0 %v2635
      %2667 = vmatpush1.msra.mxu0 %v2634
      %2668 = vmatprep.subr.mxu0 0.0
      %2669 = vmatpush1.msra.mxu0 0.0
      %2670 = vmatprep.subr.mxu0 0.0
      %2671 = vmatpush1.msra.mxu0 0.0
      %2672 = vmatprep.subr.mxu0 0.0
      %2673 = vmatpush1.msra.mxu0 0.0
      %2674 = vmatprep.subr.mxu0 0.0
      %2675 = vmatpush1.msra.mxu0 0.0
      %2676 = vmatprep.subr.mxu0 0.0
      %2677 = vmatpush1.msra.mxu0 0.0
      %2678 = vmatprep.subr.mxu0 0.0
      %2679 = vmatpush1.msra.mxu0 0.0
      %2680 = vmatprep.subr.mxu0 0.0
      %2681 = vmatpush1.msra.mxu0 0.0
      %2682 = vmatprep.subr.mxu0 0.0
      %2683 = vmatpush1.msra.mxu0 0.0
      %2684 = vmatprep.subr.mxu0 0.0
      %2685 = vmatpush1.msra.mxu0 0.0
      %2686 = vmatprep.subr.mxu0 0.0
      %2687 = vmatpush1.msra.mxu0 0.0
      %2688 = vmatprep.subr.mxu0 0.0
      %2689 = vmatpush1.msra.mxu0 0.0
      %2690 = vmatprep.subr.mxu0 0.0
      %2691 = vmatpush1.msra.mxu0 0.0
      %2692 = vmatprep.subr.mxu0 0.0
      %2693 = vmatpush1.msra.mxu0 0.0
      %2694 = vmatprep.subr.mxu0 0.0
      %2695 = vmatpush1.msra.mxu0 0.0
      %2696 = vmatprep.subr.mxu0 0.0
      %2697 = vmatpush1.msra.mxu0 0.0
      %2698 = vmatprep.subr.mxu0 0.0
      %2699 = vmatpush1.msra.mxu0 0.0
      %2700 = vmatprep.subr.mxu0 0.0
      %2701 = vmatpush1.msra.mxu0 0.0
      %2702 = vmatprep.subr.mxu0 0.0
      %2703 = vmatpush1.msra.mxu0 0.0
      %2704 = vmatprep.subr.mxu0 0.0
      %2705 = vmatpush1.msra.mxu0 0.0
      %2706 = vmatprep.subr.mxu0 0.0
      %2707 = vmatpush1.msra.mxu0 0.0
      %2708 = vmatprep.subr.mxu0 0.0
      %2709 = vmatpush1.msra.mxu0 0.0
      %2710 = vmatprep.subr.mxu0 0.0
      %2711 = vmatpush1.msra.mxu0 0.0
      %2712 = vmatprep.subr.mxu0 0.0
      %2713 = vmatpush1.msra.mxu0 0.0
      %2714 = vmatprep.subr.mxu0 0.0
      %2715 = vmatpush1.msra.mxu0 0.0
      %2716 = vmatprep.subr.mxu0 0.0
      %2717 = vmatpush1.msra.mxu0 0.0
      %2718 = vmatprep.subr.mxu0 0.0
      %2719 = vmatpush1.msra.mxu0 0.0
      %2720 = vmatprep.subr.mxu0 0.0
      %2721 = vmatpush1.msra.mxu0 0.0
      %2722 = vmatprep.subr.mxu0 0.0
      %2723 = vmatpush1.msra.mxu0 0.0
      %2724 = vmatprep.mubr.f32.mxu0 0.0
      %2725 = vmatmul.mubr.f32.gmra.mrb[0].mxu0 %v2649
      %v2726 = vpop.f32.mrb[0].mxu0
      %v2727 = vadd.f32 0.0, %v2726
      %v2728 = vpop.f32.mrb[0].mxu0
      %v2729 = vadd.f32 0.0, %v2728
      %2730 = vmatprep.mubr.f32.mxu0 0.0
      %2731 = vmatmul.mubr.f32.gmra.mrb[0].mxu0 %v2652
      %v2732 = vpop.f32.mrb[0].mxu0
      %v2733 = vadd.f32 0.0, %v2732
      %v2734 = vpop.f32.mrb[0].mxu0
      %v2735 = vadd.f32 0.0, %v2734
      %2736 = vmatprep.mubr.f32.mxu0 0.0
      %2737 = vmatmul.mubr.f32.gmra.mrb[0].mxu0 %v2655
      %v2738 = vpop.f32.mrb[0].mxu0
      %v2739 = vadd.f32 0.0, %v2738
      %v2740 = vpop.f32.mrb[0].mxu0
      %v2741 = vadd.f32 0.0, %v2740
      %2742 = vmatprep.mubr.f32.mxu0 0.0
      %2743 = vmatmul.mubr.f32.gmra.mrb[0].mxu0 %v2658
      %v2744 = vpop.f32.mrb[0].mxu0
      %v2745 = vadd.f32 0.0, %v2744
      %v2746 = vpop.f32.mrb[0].mxu0
      %v2747 = vadd.f32 0.0, %v2746
      %2748 = vdwg.mxu0
      %2749 = vmatprep.subr.mxu0 0.0
      %2750 = vmatpush1.msra.mxu0 %v2608
      %2751 = vmatprep.subr.mxu0 0.0
      %2752 = vmatpush1.msra.mxu0 %v2614
      %2753 = vmatprep.subr.mxu0 0.0
      %2754 = vmatpush1.msra.mxu0 %v2620
      %2755 = vmatprep.subr.mxu0 0.0
      %2756 = vmatpush1.msra.mxu0 %v2626
      %2757 = vmatprep.subr.mxu0 0.0
      %2758 = vmatpush1.msra.mxu0 0.0
      %2759 = vmatprep.subr.mxu0 0.0
      %2760 = vmatpush1.msra.mxu0 0.0
      %2761 = vmatprep.subr.mxu0 0.0
      %2762 = vmatpush1.msra.mxu0 0.0
      %2763 = vmatprep.subr.mxu0 0.0
      %2764 = vmatpush1.msra.mxu0 0.0
      %2765 = vmatprep.subr.mxu0 0.0
      %2766 = vmatpush1.msra.mxu0 0.0
      %2767 = vmatprep.subr.mxu0 0.0
      %2768 = vmatpush1.msra.mxu0 0.0
      %2769 = vmatprep.subr.mxu0 0.0
      %2770 = vmatpush1.msra.mxu0 0.0
      %2771 = vmatprep.subr.mxu0 0.0
      %2772 = vmatpush1.msra.mxu0 0.0
      %2773 = vmatprep.subr.mxu0 0.0
      %2774 = vmatpush1.msra.mxu0 0.0
      %2775 = vmatprep.subr.mxu0 0.0
      %2776 = vmatpush1.msra.mxu0 0.0
      %2777 = vmatprep.subr.mxu0 0.0
      %2778 = vmatpush1.msra.mxu0 0.0
      %2779 = vmatprep.subr.mxu0 0.0
      %2780 = vmatpush1.msra.mxu0 0.0
      %2781 = vmatprep.subr.mxu0 0.0
      %2782 = vmatpush1.msra.mxu0 0.0
      %2783 = vmatprep.subr.mxu0 0.0
      %2784 = vmatpush1.msra.mxu0 0.0
      %2785 = vmatprep.subr.mxu0 0.0
      %2786 = vmatpush1.msra.mxu0 0.0
      %2787 = vmatprep.subr.mxu0 0.0
      %2788 = vmatpush1.msra.mxu0 0.0
      %2789 = vmatprep.subr.mxu0 0.0
      %2790 = vmatpush1.msra.mxu0 0.0
      %2791 = vmatprep.subr.mxu0 0.0
      %2792 = vmatpush1.msra.mxu0 0.0
      %2793 = vmatprep.subr.mxu0 0.0
      %2794 = vmatpush1.msra.mxu0 0.0
      %2795 = vmatprep.subr.mxu0 0.0
      %2796 = vmatpush1.msra.mxu0 0.0
      %2797 = vmatprep.subr.mxu0 0.0
      %2798 = vmatpush1.msra.mxu0 0.0
      %2799 = vmatprep.subr.mxu0 0.0
      %2800 = vmatpush1.msra.mxu0 0.0
      %2801 = vmatprep.subr.mxu0 0.0
      %2802 = vmatpush1.msra.mxu0 0.0
      %2803 = vmatprep.subr.mxu0 0.0
      %2804 = vmatpush1.msra.mxu0 0.0
      %2805 = vmatprep.subr.mxu0 0.0
      %2806 = vmatpush1.msra.mxu0 0.0
      %2807 = vmatprep.subr.mxu0 0.0
      %2808 = vmatpush1.msra.mxu0 0.0
      %2809 = vmatprep.subr.mxu0 0.0
      %2810 = vmatpush1.msra.mxu0 0.0
      %2811 = vmatprep.subr.mxu0 0.0
      %2812 = vmatpush1.msra.mxu0 0.0
      %2813 = vmatprep.mubr.f32.mxu0 0.0
      %2814 = vmatmul.mubr.f32.gmra.mrb[0].mxu0 %v2649
      %v2815 = vpop.f32.mrb[0].mxu0
      %v2816 = vadd.f32 0.0, %v2815
      %v2817 = vpop.f32.mrb[0].mxu0
      %2818 = vmatprep.mubr.f32.mxu0 0.0
      %2819 = vmatmul.mubr.f32.gmra.mrb[0].mxu0 %v2652
      %v2820 = vpop.f32.mrb[0].mxu0
      %v2821 = vadd.f32 0.0, %v2820
      %v2822 = vpop.f32.mrb[0].mxu0
      %2823 = vmatprep.mubr.f32.mxu0 0.0
      %2824 = vmatmul.mubr.f32.gmra.mrb[0].mxu0 %v2655
      %v2825 = vpop.f32.mrb[0].mxu0
      %v2826 = vadd.f32 0.0, %v2825
      %v2827 = vpop.f32.mrb[0].mxu0
      %2828 = vmatprep.mubr.f32.mxu0 0.0
      %2829 = vmatmul.mubr.f32.gmra.mrb[0].mxu0 %v2658
      %v2830 = vpop.f32.mrb[0].mxu0
      %v2831 = vadd.f32 0.0, %v2830
      %v2832 = vpop.f32.mrb[0].mxu0
      %2833 = vdwg.mxu0
      %v2834 = vadd.f32 %v2587, %v2727
      %v2835 = vadd.f32 %v2588, %v2729
      %v2836 = vadd.f32 %v2589, %v2816
      %v2837 = vadd.f32 %v2590, %v2733
      %v2838 = vadd.f32 %v2591, %v2735
      %v2839 = vadd.f32 %v2592, %v2821
      %v2840 = vadd.f32 %v2593, %v2739
      %v2841 = vadd.f32 %v2594, %v2741
      %v2842 = vadd.f32 %v2595, %v2826
      %v2843 = vadd.f32 %v2596, %v2745
      %v2844 = vadd.f32 %v2597, %v2747
      %v2845 = vadd.f32 %v2598, %v2831
      %v2846 = vmax.f32 %v2834, 0.0
      %v2847 = vmax.f32 %v2835, 0.0
      %v2848 = vmax.f32 %v2836, 0.0
      %v2849 = vmax.f32 %v2837, 0.0
      %v2850 = vmax.f32 %v2838, 0.0
      %v2851 = vmax.f32 %v2839, 0.0
      %v2852 = vmax.f32 %v2840, 0.0
      %v2853 = vmax.f32 %v2841, 0.0
      %v2854 = vmax.f32 %v2842, 0.0
      %v2855 = vmax.f32 %v2843, 0.0
      %v2856 = vmax.f32 %v2844, 0.0
      %v2857 = vmax.f32 %v2845, 0.0
      %v2858 = vld [vmem:[%s4] sm:$0xff]
      %v2859 = vld [vmem:[%s4 + $0x8] sm:$0xff]
      %v2860 = vld [vmem:[%s4 + $0x10] sm:$0xff]
      %v2861 = vld [vmem:[%s4 + $0x18] sm:$0xff]
      %2863 = vset.pattern.permute.xlu0 0
      %2864 = vperm.xlu0 %2863, %v2858
      %v2865 = vpop.permute.xlu0 %2864
      %2868 = vset.pattern.permute.xlu0 0
      %2869 = vperm.xlu0 %2868, %v2859
      %v2870 = vpop.permute.xlu0 %2869
      %2873 = vset.pattern.permute.xlu0 0
      %2874 = vperm.xlu0 %2873, %v2860
      %v2875 = vpop.permute.xlu0 %2874
      %2878 = vset.pattern.permute.xlu0 0
      %2879 = vperm.xlu0 %2878, %v2861
      %v2880 = vpop.permute.xlu0 %2879
      %v2882 = vmul.f32 %v2846, %v2865
      %v2883 = vmul.f32 %v2847, %v2865
      %v2884 = vmul.f32 %v2848, %v2865
      %v2885 = vmul.f32 %v2849, %v2870
      %v2886 = vmul.f32 %v2850, %v2870
      %v2887 = vmul.f32 %v2851, %v2870
      %v2888 = vmul.f32 %v2852, %v2875
      %v2889 = vmul.f32 %v2853, %v2875
      %v2890 = vmul.f32 %v2854, %v2875
      %v2891 = vmul.f32 %v2855, %v2880
      %v2892 = vmul.f32 %v2856, %v2880
      %v2893 = vmul.f32 %v2857, %v2880
      %v2894 = vld [vmem:[%s5] sm:$0xff]
      %v2895 = vld [vmem:[%s5 + $0x8] sm:$0xff]
      %v2896 = vld [vmem:[%s5 + $0x10] sm:$0xff]
      %v2897 = vld [vmem:[%s5 + $0x18] sm:$0xff]
      %2899 = vset.pattern.permute.xlu0 0
      %2900 = vperm.xlu0 %2899, %v2894
      %v2901 = vpop.permute.xlu0 %2900
      %2904 = vset.pattern.permute.xlu0 0
      %2905 = vperm.xlu0 %2904, %v2895
      %v2906 = vpop.permute.xlu0 %2905
      %2909 = vset.pattern.permute.xlu0 0
      %2910 = vperm.xlu0 %2909, %v2896
      %v2911 = vpop.permute.xlu0 %2910
      %2914 = vset.pattern.permute.xlu0 0
      %2915 = vperm.xlu0 %2914, %v2897
      %v2916 = vpop.permute.xlu0 %2915
      %v2918 = vadd.f32 %v2882, %v2901
      %v2919 = vadd.f32 %v2883, %v2901
      %v2920 = vadd.f32 %v2884, %v2901
      %v2921 = vadd.f32 %v2885, %v2906
      %v2922 = vadd.f32 %v2886, %v2906
      %v2923 = vadd.f32 %v2887, %v2906
      %v2924 = vadd.f32 %v2888, %v2911
      %v2925 = vadd.f32 %v2889, %v2911
      %v2926 = vadd.f32 %v2890, %v2911
      %v2927 = vadd.f32 %v2891, %v2916
      %v2928 = vadd.f32 %v2892, %v2916
      %v2929 = vadd.f32 %v2893, %v2916
      %2930 = vst [vmem:[%s271] sm:$0xff] %v2918
      %2931 = vst [vmem:[%s271 + $0x8] sm:$0xff] %v2919
      %2932 = vst.msk [vmem:[%s271 + $0x10] sm:$0xff] %vm744, %v2920
      %2933 = vst [vmem:[%s271 + $0x18] sm:$0xff] %v2921
      %2934 = vst [vmem:[%s271 + $0x20] sm:$0xff] %v2922
      %2935 = vst.msk [vmem:[%s271 + $0x28] sm:$0xff] %vm744, %v2923
      %2936 = vst [vmem:[%s271 + $0x30] sm:$0xff] %v2924
      %2937 = vst [vmem:[%s271 + $0x38] sm:$0xff] %v2925
      %2938 = vst.msk [vmem:[%s271 + $0x40] sm:$0xff] %vm744, %v2926
      %2939 = vst [vmem:[%s271 + $0x48] sm:$0xff] %v2927
      %2940 = vst [vmem:[%s271 + $0x50] sm:$0xff] %v2928
      %2941 = vst.msk [vmem:[%s271 + $0x58] sm:$0xff] %vm744, %v2929
      %p2942 = scmp.lt.s32.totalorder %s17, 1
      %s2943 = scalar_select %p2942, %s17, 1
      %s2944 = smul.addr %s2943, 12
      %s2945 = smul.addr %s2944, 8
      %s2946 = scalar_lea.vmem %s6, %s2945
      // Predicated region
      $region45: #{ac_block_forward.3} parent=43 // pred_check
        %p2947 = pneg %p171
      $region46: #{ac_block_forward.3} parent=43 // pred_check_branch
        %2949 = sbr.rel (%p2947) target = $region48
      $region47: #{ac_block_forward.3} parent=43 // pred_region
        _
      $region48: #{ac_block_forward.3} parent=43 // pred_fallthru
        _
    $region44: #{ac_block_forward.3} parent=5 // pred_fallthru
      _
    %p2950 = scmp.le.s32.totalorder 2, %s12
    // Predicated region
    $region49: #{ac_block_forward.3} parent=5 // pred_check
      %p2951 = pneg %p2950
    $region50: #{ac_block_forward.3} parent=5 // pred_check_branch
      %2953 = sbr.rel (%p2951) target = $region52
    $region51: #{ac_block_forward.3} parent=5 // pred_region
      %s2954 = ssub.s32 %s12, 2
      // Predicated region
      $region53: #{ac_block_forward.3} parent=51 // pred_check
        %p2955 = pneg %p177
      $region54: #{ac_block_forward.3} parent=51 // pred_check_branch
        %2957 = sbr.rel (%p2955) target = $region56
      $region55: #{ac_block_forward.3} parent=51 // pred_region
        %p2958 = scmp.lt.s32.totalorder %s18, 1
        %s2959 = scalar_select %p2958, %s18, 1
        %s2960 = smul.addr %s2959, 12
        %s2961 = smul.addr %s2960, 8
        %s2962 = scalar_lea.vmem %s6, %s2961
      $region56: #{ac_block_forward.3} parent=51 // pred_fallthru
        _
    $region52: #{ac_block_forward.3} parent=5 // pred_fallthru
      _
  $region6: #{ac_block_forward.3} parent=0 // loop_footer
    %s16 = sadd.s32 1, %s12
  $region7: #{ac_block_forward.3} parent=0 // loop_footer_branch
    %11 = sbr.rel target = $region3
  $region8: #{ac_block_forward.3} parent=0 // loop_exit
    _

</llo_original>
